<compile_context>
chip_gen: v7x
topology: tpu7x:2x2x1
jax: 0.10.0
libtpu: 0.0.40
codegen_flags: <defaults>
</compile_context>

<pallas_src>
import jax
import jax.numpy as jnp
from jax.experimental import pallas as pl
from jax.experimental.pallas import tpu as pltpu

LATENT_DIM = 100
LATENT_PAD = 128          # padded contraction dim of the first matmul
HIDDEN = (128, 256, 512, 1024)
OUT_DIM = 784
OUT_PAD = 896             # 7 * 128: lane-dense output slab
EPS = 1e-5
SLOPE = 0.2

# Packed vector-parameter layout (all offsets are multiples of 128 lanes).
_VEC_SIZES = (128, 256, 256, 512, 512, 1024, 1024, OUT_PAD)   # b1 g2 be2 g3 be3 g4 be4 b5
_VEC_OFFS = [0]
for _s in _VEC_SIZES:
    _VEC_OFFS.append(_VEC_OFFS[-1] + _s)
VEC_TOTAL = _VEC_OFFS[-1]                                       # 4608 = 36 * 128


def _leaky_relu(x):
    return jnp.where(x > 0, x, SLOPE * x)


def _batchnorm(x, gamma, beta):
    # Training-mode BatchNorm1d: batch mean, biased batch variance, eps=1e-5.
    mean = jnp.mean(x, axis=0, keepdims=True)
    var = jnp.mean((x - mean) ** 2, axis=0, keepdims=True)
    xhat = (x - mean) * jax.lax.rsqrt(var + EPS)
    return xhat * gamma + beta


def _mm(x_f32, w_bf16):
    # bf16 MXU matmul with f32 accumulation; elementwise math stays f32.
    return jnp.dot(x_f32.astype(jnp.bfloat16), w_bf16,
                   preferred_element_type=jnp.float32)


def generator_kernel(z_ref, w1_ref, vec_ref,
                     w2_hbm, w3_hbm, w4_hbm, w5_hbm,
                     out_ref,
                     w2_buf, w3_buf, w4_buf, w5_buf, sems):
    # Kick off all weight DMAs immediately; they complete roughly in issue
    # order (= use order) and overlap the preceding layers' compute.
    cp2 = pltpu.make_async_copy(w2_hbm, w2_buf, sems.at[0]); cp2.start()
    cp3 = pltpu.make_async_copy(w3_hbm, w3_buf, sems.at[1]); cp3.start()
    cp4 = pltpu.make_async_copy(w4_hbm, w4_buf, sems.at[2]); cp4.start()
    cp5 = pltpu.make_async_copy(w5_hbm, w5_buf, sems.at[3]); cp5.start()

    # Static, 128-lane-aligned slices of the packed vector parameters (free).
    o = _VEC_OFFS
    b1  = vec_ref[:, o[0]:o[1]]
    g2  = vec_ref[:, o[1]:o[2]]
    be2 = vec_ref[:, o[2]:o[3]]
    g3  = vec_ref[:, o[3]:o[4]]
    be3 = vec_ref[:, o[4]:o[5]]
    g4  = vec_ref[:, o[5]:o[6]]
    be4 = vec_ref[:, o[6]:o[7]]
    b5  = vec_ref[:, o[7]:o[8]]

    # Block 1: Linear + LeakyReLU (z pre-padded 100 -> 128 with zeros).
    h = _leaky_relu(_mm(z_ref[...], w1_ref[...]) + b1)

    # Blocks 2-4: Linear (bias folded away by train-mode BN) + BN + LeakyReLU.
    cp2.wait()
    h = _leaky_relu(_batchnorm(_mm(h, w2_buf[...]), g2, be2))
    cp3.wait()
    h = _leaky_relu(_batchnorm(_mm(h, w3_buf[...]), g3, be3))
    cp4.wait()
    h = _leaky_relu(_batchnorm(_mm(h, w4_buf[...]), g4, be4))

    # Output: Linear + Tanh into a lane-dense 896-wide slab (sliced in wrapper).
    cp5.wait()
    out_ref[...] = jnp.tanh(_mm(h, w5_buf[...]) + b5)


def init_params(key):
    """Deterministic PyTorch-style init: U(-1/sqrt(fan_in), 1/sqrt(fan_in)).

    Weights stored as (in_features, out_features) f32; 1-D params as (1, H).
    Includes b2/b3/b4 for full PyTorch parity (the kernel skips them since
    they are mathematically cancelled by train-mode BatchNorm)."""
    dims = (LATENT_DIM,) + HIDDEN + (OUT_DIM,)
    params = []
    bn_layers = {1, 2, 3}   # layers whose output gets BatchNorm (256/512/1024)
    for li in range(len(dims) - 1):
        fan_in, fan_out = dims[li], dims[li + 1]
        key, kw, kb = jax.random.split(key, 3)
        bound = 1.0 / (fan_in ** 0.5)
        w = jax.random.uniform(kw, (fan_in, fan_out), jnp.float32, -bound, bound)
        b = jax.random.uniform(kb, (1, fan_out), jnp.float32, -bound, bound)
        params += [w, b]
        if li in bn_layers:
            params += [jnp.ones((1, fan_out), jnp.float32),    # gamma
                       jnp.zeros((1, fan_out), jnp.float32)]   # beta
    return params


def prepare_params(params):
    """One-time (per parameter update) prep: pad + cast weights to bf16 and pack
    the vector parameters.  Hoisted out of the forward so the per-call HBM
    traffic is only the 3.3 MB of bf16 weights the kernel actually reads."""
    (w1, b1,
     w2, _b2, g2, be2,
     w3, _b3, g3, be3,
     w4, _b4, g4, be4,
     w5, b5) = params
    bf16 = jnp.bfloat16

    w1_p = jnp.pad(w1, ((0, LATENT_PAD - LATENT_DIM), (0, 0))).astype(bf16)
    w5_p = jnp.pad(w5, ((0, 0), (0, OUT_PAD - OUT_DIM))).astype(bf16)
    b5_p = jnp.pad(b5, ((0, 0), (0, OUT_PAD - OUT_DIM)))

    vec = jnp.concatenate([b1, g2, be2, g3, be3, g4, be4, b5_p], axis=1)
    assert vec.shape == (1, VEC_TOTAL)

    return dict(
        w1=w1_p,
        vec=vec,
        w2=w2.astype(bf16),
        w3=w3.astype(bf16),
        w4=w4.astype(bf16),
        w5=w5_p,
    )


def generator_forward(z, prepared):
    batch = z.shape[0]

    # Pad the first contraction dim 100 -> 128 (zero lanes contribute nothing).
    z_p = jnp.pad(z, ((0, 0), (0, LATENT_PAD - LATENT_DIM)))

    vmem = pl.BlockSpec(memory_space=pltpu.MemorySpace.VMEM)
    hbm = pl.BlockSpec(memory_space=pl.ANY)

    out_pad = pl.pallas_call(
        generator_kernel,
        out_shape=jax.ShapeDtypeStruct((batch, OUT_PAD), jnp.float32),
        in_specs=[vmem,            # z (padded)
                  vmem,            # w1 (128x128 bf16, needed first)
                  vmem,            # packed vector params (1, 4608) f32
                  hbm, hbm, hbm, hbm],   # w2..w5 streamed manually
        out_specs=vmem,
        scratch_shapes=[
            pltpu.VMEM((HIDDEN[0], HIDDEN[1]), jnp.bfloat16),   # w2 buf
            pltpu.VMEM((HIDDEN[1], HIDDEN[2]), jnp.bfloat16),   # w3 buf
            pltpu.VMEM((HIDDEN[2], HIDDEN[3]), jnp.bfloat16),   # w4 buf
            pltpu.VMEM((HIDDEN[3], OUT_PAD), jnp.bfloat16),     # w5 buf
            pltpu.SemaphoreType.DMA((4,)),
        ],
        compiler_params=pltpu.CompilerParams(vmem_limit_bytes=16 << 20),
    )(z_p, prepared["w1"], prepared["vec"],
      prepared["w2"], prepared["w3"], prepared["w4"], prepared["w5"])
    return out_pad[:, :OUT_DIM]


def generator_reference(z, params):
    """Pure-JAX reference with full PyTorch semantics (incl. b2/b3/b4) at the
    same numerics (bf16 weights/activations into the matmul, f32 accumulation)."""
    (w1, b1,
     w2, b2, g2, be2,
     w3, b3, g3, be3,
     w4, b4, g4, be4,
     w5, b5) = params
    bf16 = jnp.bfloat16

    def mm(x, w):
        return jnp.dot(x.astype(bf16), w.astype(bf16),
                       preferred_element_type=jnp.float32)

    h = _leaky_relu(mm(z, w1) + b1)
    h = _leaky_relu(_batchnorm(mm(h, w2) + b2, g2, be2))
    h = _leaky_relu(_batchnorm(mm(h, w3) + b3, g3, be3))
    h = _leaky_relu(_batchnorm(mm(h, w4) + b4, g4, be4))
    return jnp.tanh(mm(h, w5) + b5)


if __name__ == "__main__":
    key = jax.random.PRNGKey(0)
    kz, kp = jax.random.split(key)

    batch = 8  # BatchNorm1d needs batch > 1 in training mode
    z = jax.random.normal(kz, (batch, LATENT_DIM), jnp.float32)
    params = init_params(kp)
    prepared = prepare_params(params)          # one-time weight pad/cast/pack

    out = generator_forward(z, prepared)
    out = jax.block_until_ready(out)

    ref = generator_reference(z, params)
    assert out.shape == (batch, OUT_DIM), out.shape
    assert jnp.allclose(out, ref, atol=2e-2, rtol=2e-2), "mismatch vs reference"

    print("KERNEL_OK")
</pallas_src>

<mosaic_0001>
module attributes {stable_mosaic.version = 11 : i64} {
  func.func @generator_kernel(%arg0: memref<8x128xf32, #tpu.memory_space<vmem>>, %arg1: memref<128x128xbf16, #tpu.memory_space<vmem>>, %arg2: memref<1x4608xf32, #tpu.memory_space<vmem>>, %arg3: memref<128x256xbf16, #tpu.memory_space<any>>, %arg4: memref<256x512xbf16, #tpu.memory_space<any>>, %arg5: memref<512x1024xbf16, #tpu.memory_space<any>>, %arg6: memref<1024x896xbf16, #tpu.memory_space<any>>, %arg7: memref<8x896xf32, #tpu.memory_space<vmem>>, %arg8: memref<128x256xbf16, #tpu.memory_space<vmem>>, %arg9: memref<256x512xbf16, #tpu.memory_space<vmem>>, %arg10: memref<512x1024xbf16, #tpu.memory_space<vmem>>, %arg11: memref<1024x896xbf16, #tpu.memory_space<vmem>>, %arg12: memref<4x!tpu.dma_semaphore, #tpu.memory_space<semaphore_mem>>) attributes {dimension_semantics = [], scalar_prefetch = 0 : i64, scratch_operands = 5 : i64, tpu.core_type = #tpu.core_type<tc>} {
    %c0_i32 = arith.constant 0 : i32
    %0 = tpu.memref_slice %arg12[%c0_i32] : memref<4x!tpu.dma_semaphore, #tpu.memory_space<semaphore_mem>> -> memref<1x!tpu.dma_semaphore, #tpu.memory_space<semaphore_mem>>
    %1 = tpu.memref_squeeze %0 : memref<1x!tpu.dma_semaphore, #tpu.memory_space<semaphore_mem>> -> memref<!tpu.dma_semaphore, #tpu.memory_space<semaphore_mem>>
    tpu.enqueue_dma source(%arg3 : memref<128x256xbf16, #tpu.memory_space<any>>) target(%arg8 : memref<128x256xbf16, #tpu.memory_space<vmem>>) target_semaphore(%1 : memref<!tpu.dma_semaphore, #tpu.memory_space<semaphore_mem>>)
    %c1_i32 = arith.constant 1 : i32
    %2 = tpu.memref_slice %arg12[%c1_i32] : memref<4x!tpu.dma_semaphore, #tpu.memory_space<semaphore_mem>> -> memref<1x!tpu.dma_semaphore, #tpu.memory_space<semaphore_mem>>
    %3 = tpu.memref_squeeze %2 : memref<1x!tpu.dma_semaphore, #tpu.memory_space<semaphore_mem>> -> memref<!tpu.dma_semaphore, #tpu.memory_space<semaphore_mem>>
    tpu.enqueue_dma source(%arg4 : memref<256x512xbf16, #tpu.memory_space<any>>) target(%arg9 : memref<256x512xbf16, #tpu.memory_space<vmem>>) target_semaphore(%3 : memref<!tpu.dma_semaphore, #tpu.memory_space<semaphore_mem>>)
    %c2_i32 = arith.constant 2 : i32
    %4 = tpu.memref_slice %arg12[%c2_i32] : memref<4x!tpu.dma_semaphore, #tpu.memory_space<semaphore_mem>> -> memref<1x!tpu.dma_semaphore, #tpu.memory_space<semaphore_mem>>
    %5 = tpu.memref_squeeze %4 : memref<1x!tpu.dma_semaphore, #tpu.memory_space<semaphore_mem>> -> memref<!tpu.dma_semaphore, #tpu.memory_space<semaphore_mem>>
    tpu.enqueue_dma source(%arg5 : memref<512x1024xbf16, #tpu.memory_space<any>>) target(%arg10 : memref<512x1024xbf16, #tpu.memory_space<vmem>>) target_semaphore(%5 : memref<!tpu.dma_semaphore, #tpu.memory_space<semaphore_mem>>)
    %c3_i32 = arith.constant 3 : i32
    %6 = tpu.memref_slice %arg12[%c3_i32] : memref<4x!tpu.dma_semaphore, #tpu.memory_space<semaphore_mem>> -> memref<1x!tpu.dma_semaphore, #tpu.memory_space<semaphore_mem>>
    %7 = tpu.memref_squeeze %6 : memref<1x!tpu.dma_semaphore, #tpu.memory_space<semaphore_mem>> -> memref<!tpu.dma_semaphore, #tpu.memory_space<semaphore_mem>>
    tpu.enqueue_dma source(%arg6 : memref<1024x896xbf16, #tpu.memory_space<any>>) target(%arg11 : memref<1024x896xbf16, #tpu.memory_space<vmem>>) target_semaphore(%7 : memref<!tpu.dma_semaphore, #tpu.memory_space<semaphore_mem>>)
    %c0 = arith.constant 0 : index
    %c0_0 = arith.constant 0 : index
    %8 = vector.load %arg2[%c0, %c0_0] : memref<1x4608xf32, #tpu.memory_space<vmem>>, vector<1x128xf32>
    %c0_1 = arith.constant 0 : index
    %c128 = arith.constant 128 : index
    %9 = vector.load %arg2[%c0_1, %c128] : memref<1x4608xf32, #tpu.memory_space<vmem>>, vector<1x256xf32>
    %c0_2 = arith.constant 0 : index
    %c384 = arith.constant 384 : index
    %10 = vector.load %arg2[%c0_2, %c384] : memref<1x4608xf32, #tpu.memory_space<vmem>>, vector<1x256xf32>
    %c0_3 = arith.constant 0 : index
    %c640 = arith.constant 640 : index
    %11 = vector.load %arg2[%c0_3, %c640] : memref<1x4608xf32, #tpu.memory_space<vmem>>, vector<1x512xf32>
    %c0_4 = arith.constant 0 : index
    %c1152 = arith.constant 1152 : index
    %12 = vector.load %arg2[%c0_4, %c1152] : memref<1x4608xf32, #tpu.memory_space<vmem>>, vector<1x512xf32>
    %c0_5 = arith.constant 0 : index
    %c1664 = arith.constant 1664 : index
    %13 = vector.load %arg2[%c0_5, %c1664] : memref<1x4608xf32, #tpu.memory_space<vmem>>, vector<1x1024xf32>
    %c0_6 = arith.constant 0 : index
    %c2688 = arith.constant 2688 : index
    %14 = vector.load %arg2[%c0_6, %c2688] : memref<1x4608xf32, #tpu.memory_space<vmem>>, vector<1x1024xf32>
    %c0_7 = arith.constant 0 : index
    %c3712 = arith.constant 3712 : index
    %15 = vector.load %arg2[%c0_7, %c3712] : memref<1x4608xf32, #tpu.memory_space<vmem>>, vector<1x896xf32>
    %c0_8 = arith.constant 0 : index
    %c0_9 = arith.constant 0 : index
    %16 = vector.load %arg0[%c0_8, %c0_9] : memref<8x128xf32, #tpu.memory_space<vmem>>, vector<8x128xf32>
    %c0_10 = arith.constant 0 : index
    %c0_11 = arith.constant 0 : index
    %17 = vector.load %arg1[%c0_10, %c0_11] : memref<128x128xbf16, #tpu.memory_space<vmem>>, vector<128x128xbf16>
    %18 = arith.truncf %16 : vector<8x128xf32> to vector<8x128xbf16>
    %cst = arith.constant dense<0.000000e+00> : vector<8x128xf32>
    %19 = tpu.matmul %18, %17, %cst {dimension_numbers = #tpu.dot_dimension_numbers<[1], [0], [0], [1], [0, 0, 1, 1], [], []>} : vector<8x128xbf16>, vector<128x128xbf16>, vector<8x128xf32> -> vector<8x128xf32>
    %20 = vector.broadcast %8 : vector<1x128xf32> to vector<8x128xf32>
    %21 = arith.addf %19, %20 : vector<8x128xf32>
    %cst_12 = arith.constant 0.000000e+00 : f32
    %22 = vector.broadcast %cst_12 : f32 to vector<8x128xf32>
    %23 = arith.cmpf ogt, %21, %22 : vector<8x128xf32>
    %cst_13 = arith.constant 2.000000e-01 : f32
    %24 = vector.broadcast %cst_13 : f32 to vector<8x128xf32>
    %25 = arith.mulf %24, %21 : vector<8x128xf32>
    %26 = arith.select %23, %21, %25 : vector<8x128xi1>, vector<8x128xf32>
    %c0_i32_14 = arith.constant 0 : i32
    %27 = tpu.memref_slice %arg12[%c0_i32_14] : memref<4x!tpu.dma_semaphore, #tpu.memory_space<semaphore_mem>> -> memref<1x!tpu.dma_semaphore, #tpu.memory_space<semaphore_mem>>
    %28 = tpu.memref_squeeze %27 : memref<1x!tpu.dma_semaphore, #tpu.memory_space<semaphore_mem>> -> memref<!tpu.dma_semaphore, #tpu.memory_space<semaphore_mem>>
    tpu.wait_dma2 semaphore(%28 : memref<!tpu.dma_semaphore, #tpu.memory_space<semaphore_mem>>) src(%arg3 : memref<128x256xbf16, #tpu.memory_space<any>>) dst(%arg8 : memref<128x256xbf16, #tpu.memory_space<vmem>>)
    %c0_15 = arith.constant 0 : index
    %c0_16 = arith.constant 0 : index
    %29 = vector.load %arg8[%c0_15, %c0_16] : memref<128x256xbf16, #tpu.memory_space<vmem>>, vector<128x256xbf16>
    %30 = arith.truncf %26 : vector<8x128xf32> to vector<8x128xbf16>
    %cst_17 = arith.constant dense<0.000000e+00> : vector<8x256xf32>
    %31 = tpu.matmul %30, %29, %cst_17 {dimension_numbers = #tpu.dot_dimension_numbers<[1], [0], [0], [1], [0, 0, 1, 1], [], []>} : vector<8x128xbf16>, vector<128x256xbf16>, vector<8x256xf32> -> vector<8x256xf32>
    %cst_18 = arith.constant dense<0.000000e+00> : vector<256xf32>
    %32 = vector.multi_reduction <add>, %31, %cst_18 [0] : vector<8x256xf32> to vector<256xf32>
    %33 = vector.shape_cast %32 : vector<256xf32> to vector<1x256xf32>
    %cst_19 = arith.constant 8.000000e+00 : f32
    %34 = vector.broadcast %cst_19 : f32 to vector<1x256xf32>
    %35 = arith.divf %33, %34 : vector<1x256xf32>
    %36 = vector.broadcast %35 : vector<1x256xf32> to vector<8x256xf32>
    %37 = arith.subf %31, %36 : vector<8x256xf32>
    %38 = arith.mulf %37, %37 : vector<8x256xf32>
    %cst_20 = arith.constant dense<0.000000e+00> : vector<256xf32>
    %39 = vector.multi_reduction <add>, %38, %cst_20 [0] : vector<8x256xf32> to vector<256xf32>
    %40 = vector.shape_cast %39 : vector<256xf32> to vector<1x256xf32>
    %cst_21 = arith.constant 8.000000e+00 : f32
    %41 = vector.broadcast %cst_21 : f32 to vector<1x256xf32>
    %42 = arith.divf %40, %41 : vector<1x256xf32>
    %43 = vector.broadcast %35 : vector<1x256xf32> to vector<8x256xf32>
    %44 = arith.subf %31, %43 : vector<8x256xf32>
    %cst_22 = arith.constant 9.99999974E-6 : f32
    %45 = vector.broadcast %cst_22 : f32 to vector<1x256xf32>
    %46 = arith.addf %42, %45 : vector<1x256xf32>
    %47 = math.rsqrt %46 : vector<1x256xf32>
    %48 = vector.broadcast %47 : vector<1x256xf32> to vector<8x256xf32>
    %49 = arith.mulf %44, %48 : vector<8x256xf32>
    %50 = vector.broadcast %9 : vector<1x256xf32> to vector<8x256xf32>
    %51 = arith.mulf %49, %50 : vector<8x256xf32>
    %52 = vector.broadcast %10 : vector<1x256xf32> to vector<8x256xf32>
    %53 = arith.addf %51, %52 : vector<8x256xf32>
    %cst_23 = arith.constant 0.000000e+00 : f32
    %54 = vector.broadcast %cst_23 : f32 to vector<8x256xf32>
    %55 = arith.cmpf ogt, %53, %54 : vector<8x256xf32>
    %cst_24 = arith.constant 2.000000e-01 : f32
    %56 = vector.broadcast %cst_24 : f32 to vector<8x256xf32>
    %57 = arith.mulf %56, %53 : vector<8x256xf32>
    %58 = arith.select %55, %53, %57 : vector<8x256xi1>, vector<8x256xf32>
    %c1_i32_25 = arith.constant 1 : i32
    %59 = tpu.memref_slice %arg12[%c1_i32_25] : memref<4x!tpu.dma_semaphore, #tpu.memory_space<semaphore_mem>> -> memref<1x!tpu.dma_semaphore, #tpu.memory_space<semaphore_mem>>
    %60 = tpu.memref_squeeze %59 : memref<1x!tpu.dma_semaphore, #tpu.memory_space<semaphore_mem>> -> memref<!tpu.dma_semaphore, #tpu.memory_space<semaphore_mem>>
    tpu.wait_dma2 semaphore(%60 : memref<!tpu.dma_semaphore, #tpu.memory_space<semaphore_mem>>) src(%arg4 : memref<256x512xbf16, #tpu.memory_space<any>>) dst(%arg9 : memref<256x512xbf16, #tpu.memory_space<vmem>>)
    %c0_26 = arith.constant 0 : index
    %c0_27 = arith.constant 0 : index
    %61 = vector.load %arg9[%c0_26, %c0_27] : memref<256x512xbf16, #tpu.memory_space<vmem>>, vector<256x512xbf16>
    %62 = arith.truncf %58 : vector<8x256xf32> to vector<8x256xbf16>
    %cst_28 = arith.constant dense<0.000000e+00> : vector<8x512xf32>
    %63 = tpu.matmul %62, %61, %cst_28 {dimension_numbers = #tpu.dot_dimension_numbers<[1], [0], [0], [1], [0, 0, 1, 1], [], []>} : vector<8x256xbf16>, vector<256x512xbf16>, vector<8x512xf32> -> vector<8x512xf32>
    %cst_29 = arith.constant dense<0.000000e+00> : vector<512xf32>
    %64 = vector.multi_reduction <add>, %63, %cst_29 [0] : vector<8x512xf32> to vector<512xf32>
    %65 = vector.shape_cast %64 : vector<512xf32> to vector<1x512xf32>
    %cst_30 = arith.constant 8.000000e+00 : f32
    %66 = vector.broadcast %cst_30 : f32 to vector<1x512xf32>
    %67 = arith.divf %65, %66 : vector<1x512xf32>
    %68 = vector.broadcast %67 : vector<1x512xf32> to vector<8x512xf32>
    %69 = arith.subf %63, %68 : vector<8x512xf32>
    %70 = arith.mulf %69, %69 : vector<8x512xf32>
    %cst_31 = arith.constant dense<0.000000e+00> : vector<512xf32>
    %71 = vector.multi_reduction <add>, %70, %cst_31 [0] : vector<8x512xf32> to vector<512xf32>
    %72 = vector.shape_cast %71 : vector<512xf32> to vector<1x512xf32>
    %cst_32 = arith.constant 8.000000e+00 : f32
    %73 = vector.broadcast %cst_32 : f32 to vector<1x512xf32>
    %74 = arith.divf %72, %73 : vector<1x512xf32>
    %75 = vector.broadcast %67 : vector<1x512xf32> to vector<8x512xf32>
    %76 = arith.subf %63, %75 : vector<8x512xf32>
    %cst_33 = arith.constant 9.99999974E-6 : f32
    %77 = vector.broadcast %cst_33 : f32 to vector<1x512xf32>
    %78 = arith.addf %74, %77 : vector<1x512xf32>
    %79 = math.rsqrt %78 : vector<1x512xf32>
    %80 = vector.broadcast %79 : vector<1x512xf32> to vector<8x512xf32>
    %81 = arith.mulf %76, %80 : vector<8x512xf32>
    %82 = vector.broadcast %11 : vector<1x512xf32> to vector<8x512xf32>
    %83 = arith.mulf %81, %82 : vector<8x512xf32>
    %84 = vector.broadcast %12 : vector<1x512xf32> to vector<8x512xf32>
    %85 = arith.addf %83, %84 : vector<8x512xf32>
    %cst_34 = arith.constant 0.000000e+00 : f32
    %86 = vector.broadcast %cst_34 : f32 to vector<8x512xf32>
    %87 = arith.cmpf ogt, %85, %86 : vector<8x512xf32>
    %cst_35 = arith.constant 2.000000e-01 : f32
    %88 = vector.broadcast %cst_35 : f32 to vector<8x512xf32>
    %89 = arith.mulf %88, %85 : vector<8x512xf32>
    %90 = arith.select %87, %85, %89 : vector<8x512xi1>, vector<8x512xf32>
    %c2_i32_36 = arith.constant 2 : i32
    %91 = tpu.memref_slice %arg12[%c2_i32_36] : memref<4x!tpu.dma_semaphore, #tpu.memory_space<semaphore_mem>> -> memref<1x!tpu.dma_semaphore, #tpu.memory_space<semaphore_mem>>
    %92 = tpu.memref_squeeze %91 : memref<1x!tpu.dma_semaphore, #tpu.memory_space<semaphore_mem>> -> memref<!tpu.dma_semaphore, #tpu.memory_space<semaphore_mem>>
    tpu.wait_dma2 semaphore(%92 : memref<!tpu.dma_semaphore, #tpu.memory_space<semaphore_mem>>) src(%arg5 : memref<512x1024xbf16, #tpu.memory_space<any>>) dst(%arg10 : memref<512x1024xbf16, #tpu.memory_space<vmem>>)
    %c0_37 = arith.constant 0 : index
    %c0_38 = arith.constant 0 : index
    %93 = vector.load %arg10[%c0_37, %c0_38] : memref<512x1024xbf16, #tpu.memory_space<vmem>>, vector<512x1024xbf16>
    %94 = arith.truncf %90 : vector<8x512xf32> to vector<8x512xbf16>
    %cst_39 = arith.constant dense<0.000000e+00> : vector<8x1024xf32>
    %95 = tpu.matmul %94, %93, %cst_39 {dimension_numbers = #tpu.dot_dimension_numbers<[1], [0], [0], [1], [0, 0, 1, 1], [], []>} : vector<8x512xbf16>, vector<512x1024xbf16>, vector<8x1024xf32> -> vector<8x1024xf32>
    %cst_40 = arith.constant dense<0.000000e+00> : vector<1024xf32>
    %96 = vector.multi_reduction <add>, %95, %cst_40 [0] : vector<8x1024xf32> to vector<1024xf32>
    %97 = vector.shape_cast %96 : vector<1024xf32> to vector<1x1024xf32>
    %cst_41 = arith.constant 8.000000e+00 : f32
    %98 = vector.broadcast %cst_41 : f32 to vector<1x1024xf32>
    %99 = arith.divf %97, %98 : vector<1x1024xf32>
    %100 = vector.broadcast %99 : vector<1x1024xf32> to vector<8x1024xf32>
    %101 = arith.subf %95, %100 : vector<8x1024xf32>
    %102 = arith.mulf %101, %101 : vector<8x1024xf32>
    %cst_42 = arith.constant dense<0.000000e+00> : vector<1024xf32>
    %103 = vector.multi_reduction <add>, %102, %cst_42 [0] : vector<8x1024xf32> to vector<1024xf32>
    %104 = vector.shape_cast %103 : vector<1024xf32> to vector<1x1024xf32>
    %cst_43 = arith.constant 8.000000e+00 : f32
    %105 = vector.broadcast %cst_43 : f32 to vector<1x1024xf32>
    %106 = arith.divf %104, %105 : vector<1x1024xf32>
    %107 = vector.broadcast %99 : vector<1x1024xf32> to vector<8x1024xf32>
    %108 = arith.subf %95, %107 : vector<8x1024xf32>
    %cst_44 = arith.constant 9.99999974E-6 : f32
    %109 = vector.broadcast %cst_44 : f32 to vector<1x1024xf32>
    %110 = arith.addf %106, %109 : vector<1x1024xf32>
    %111 = math.rsqrt %110 : vector<1x1024xf32>
    %112 = vector.broadcast %111 : vector<1x1024xf32> to vector<8x1024xf32>
    %113 = arith.mulf %108, %112 : vector<8x1024xf32>
    %114 = vector.broadcast %13 : vector<1x1024xf32> to vector<8x1024xf32>
    %115 = arith.mulf %113, %114 : vector<8x1024xf32>
    %116 = vector.broadcast %14 : vector<1x1024xf32> to vector<8x1024xf32>
    %117 = arith.addf %115, %116 : vector<8x1024xf32>
    %cst_45 = arith.constant 0.000000e+00 : f32
    %118 = vector.broadcast %cst_45 : f32 to vector<8x1024xf32>
    %119 = arith.cmpf ogt, %117, %118 : vector<8x1024xf32>
    %cst_46 = arith.constant 2.000000e-01 : f32
    %120 = vector.broadcast %cst_46 : f32 to vector<8x1024xf32>
    %121 = arith.mulf %120, %117 : vector<8x1024xf32>
    %122 = arith.select %119, %117, %121 : vector<8x1024xi1>, vector<8x1024xf32>
    %c3_i32_47 = arith.constant 3 : i32
    %123 = tpu.memref_slice %arg12[%c3_i32_47] : memref<4x!tpu.dma_semaphore, #tpu.memory_space<semaphore_mem>> -> memref<1x!tpu.dma_semaphore, #tpu.memory_space<semaphore_mem>>
    %124 = tpu.memref_squeeze %123 : memref<1x!tpu.dma_semaphore, #tpu.memory_space<semaphore_mem>> -> memref<!tpu.dma_semaphore, #tpu.memory_space<semaphore_mem>>
    tpu.wait_dma2 semaphore(%124 : memref<!tpu.dma_semaphore, #tpu.memory_space<semaphore_mem>>) src(%arg6 : memref<1024x896xbf16, #tpu.memory_space<any>>) dst(%arg11 : memref<1024x896xbf16, #tpu.memory_space<vmem>>)
    %c0_48 = arith.constant 0 : index
    %c0_49 = arith.constant 0 : index
    %125 = vector.load %arg11[%c0_48, %c0_49] : memref<1024x896xbf16, #tpu.memory_space<vmem>>, vector<1024x896xbf16>
    %126 = arith.truncf %122 : vector<8x1024xf32> to vector<8x1024xbf16>
    %cst_50 = arith.constant dense<0.000000e+00> : vector<8x896xf32>
    %127 = tpu.matmul %126, %125, %cst_50 {dimension_numbers = #tpu.dot_dimension_numbers<[1], [0], [0], [1], [0, 0, 1, 1], [], []>} : vector<8x1024xbf16>, vector<1024x896xbf16>, vector<8x896xf32> -> vector<8x896xf32>
    %128 = vector.broadcast %15 : vector<1x896xf32> to vector<8x896xf32>
    %129 = arith.addf %127, %128 : vector<8x896xf32>
    %130 = math.tanh %129 : vector<8x896xf32>
    %c0_51 = arith.constant 0 : index
    %c0_52 = arith.constant 0 : index
    %131 = vector.load %arg7[%c0_51, %c0_52] : memref<8x896xf32, #tpu.memory_space<vmem>>, vector<8x896xf32>
    tpu.vector_store %arg7[%c0_51, %c0_52], %130 {strides = array<i32>} : memref<8x896xf32, #tpu.memory_space<vmem>>, vector<8x896xf32>,
    return
  }
}

</mosaic_0001>

<llo_original>
// kernel: tpu_custom_call.1
$region0: #{tpu_custom_call.1}
  #allocation0 [shape = 'u32[]', space=smem, size = 0x4, offset = 0x4, fixed_abs, tag = 'smem constant byte address 0x4 - core index']
  #allocation1 [shape = 'u32[144,128]{1,0:T(1,128)}', space=vmem, size = 0x12000, scoped, tag = 'internal scratch']
  #allocation2 [shape = 'bf16[128,256]{1,0:T(16,128)(2,1)}', space=vmem, size = 0x10000, scoped, tag = 'scratch operand']
  #allocation3 [shape = 'bf16[256,512]{1,0:T(16,128)(2,1)}', space=vmem, size = 0x40000, scoped, tag = 'scratch operand']
  #allocation4 [shape = 'bf16[512,1024]{1,0:T(16,128)(2,1)}', space=vmem, size = 0x100000, scoped, tag = 'scratch operand']
  #allocation5 [shape = 'bf16[1024,896]{1,0:T(16,128)(2,1)}', space=vmem, size = 0x1c0000, scoped, tag = 'scratch operand']
  #allocation6 [shape = 's32[4]{0}', space=sflag, size = 0x10, scoped, tag = 'scratch operand']
  #allocation14 [shape = 's32[]', space=sflag, size = 0x4, offset = 0, fixed_abs, tag = 'sflag constant byte address 0x0 - dummy sync flag']
  #allocation16 [shape = 's32[]', space=sflag, size = 0x4, offset = 0, fixed_abs, tag = 'sflag constant byte address 0x0 - dummy sync flag']
  #allocation18 [shape = 's32[]', space=sflag, size = 0x4, offset = 0, fixed_abs, tag = 'sflag constant byte address 0x0 - dummy sync flag']
  #allocation20 [shape = 's32[]', space=sflag, size = 0x4, offset = 0, fixed_abs, tag = 'sflag constant byte address 0x0 - dummy sync flag']
  %s0 = inlined_call_operand.hbm [shape: f32[8,128], index: 0, kind: input, shape index: {}]
  %s1 = inlined_call_operand.hbm [shape: bf16[128,128], index: 1, kind: input, shape index: {}]
  %s2 = inlined_call_operand.hbm [shape: f32[1,4608], index: 2, kind: input, shape index: {}]
  %s3 = inlined_call_operand.hbm [shape: bf16[128,256], index: 3, kind: input, shape index: {}]
  %s4 = inlined_call_operand.hbm [shape: bf16[256,512], index: 4, kind: input, shape index: {}]
  %s5 = inlined_call_operand.hbm [shape: bf16[512,1024], index: 5, kind: input, shape index: {}]
  %s6 = inlined_call_operand.hbm [shape: bf16[1024,896], index: 6, kind: input, shape index: {}]
  %s7 = inlined_call_operand.hbm [shape: f32[8,896], index: 7, kind: output, shape index: {}]
  %s8 = sld [smem:[#allocation0]]
  $region34: #{tpu_custom_call.1} parent=0
    _
  %s10 = ssub.s32 1, %s8
  %s11 = scalar_select 0, %s10, %s8
  $region1: #{tpu_custom_call.1} parent=0
    #allocation7 [shape = 'u8[4096]{0}', space=vmem, size = 0x1000, scoped, tag = 'input window, operand 0, single buffered']
    #allocation8 [shape = 's32[1]{0}', space=sflag, size = 0x4, scoped, tag = 'scoped memory for tpu_custom_call.1']
    #allocation9 [shape = 's32[1]{0}', space=sflag, size = 0x4, scoped, tag = 'scoped memory for tpu_custom_call.1']
    #allocation10 [shape = 'u8[32768]{0}', space=vmem, size = 0x8000, scoped, tag = 'input window, operand 1, single buffered']
    #allocation11 [shape = 's32[1]{0}', space=sflag, size = 0x4, scoped, tag = 'scoped memory for tpu_custom_call.1']
    #allocation12 [shape = 'u8[18432]{0}', space=vmem, size = 0x4800, scoped, tag = 'input window, operand 2, single buffered']
    #allocation13 [shape = 'u8[28672]{0}', space=vmem, size = 0x7000, scoped, tag = 'output window, operand 0, single buffered']
    #allocation15 [shape = 'u32[9]{0}', space=smem, size = 0x24, scoped, tag = 'DMA stride descriptor']
    #allocation17 [shape = 'u32[9]{0}', space=smem, size = 0x24, scoped, tag = 'DMA stride descriptor']
    #allocation19 [shape = 'u32[9]{0}', space=smem, size = 0x24, scoped, tag = 'DMA stride descriptor']
    #allocation21 [shape = 'u32[9]{0}', space=smem, size = 0x24, scoped, tag = 'DMA stride descriptor']
    %12 = vsyncpa [#allocation8], 0
    %13 = vsyncpa [#allocation11], 0
    %14 = vsyncpa [#allocation9], 0
    // Predicated region
    $region2: #{tpu_custom_call.1} parent=1 // pred_check
      _
    $region3: #{tpu_custom_call.1} parent=1 // pred_check_branch
      %16 = sbr.rel (0) target = $region5
    $region4: #{tpu_custom_call.1} parent=1 // pred_region
      %s18 = ssub.s32 128, 128
      %19 = vsyncadd [#allocation8], %s18
      %s21 = sshll.u32 [#allocation7], 4
      %s22 = int_to_ptr.vmem [resolvable:$true] %s21
      %24 = dma.hbm_to_vmem [thread:$0]  %s0, 128, %s22, [#allocation8]
    $region5: #{tpu_custom_call.1} parent=1 // pred_fallthru
      _
    // Predicated region
    $region6: #{tpu_custom_call.1} parent=1 // pred_check
      _
    $region7: #{tpu_custom_call.1} parent=1 // pred_check_branch
      %26 = sbr.rel (0) target = $region9
    $region8: #{tpu_custom_call.1} parent=1 // pred_region
      %s28 = ssub.s32 1024, 1024
      %29 = vsyncadd [#allocation11], %s28
      %s30 = sshll.u32 [#allocation10], 4
      %s31 = int_to_ptr.vmem [resolvable:$true] %s30
      %36 = dma.hbm_to_vmem [thread:$0]  %s1, 1024, %s31, [#allocation11], 64, 64, 4
    $region9: #{tpu_custom_call.1} parent=1 // pred_fallthru
      _
    // Predicated region
    $region10: #{tpu_custom_call.1} parent=1 // pred_check
      _
    $region11: #{tpu_custom_call.1} parent=1 // pred_check_branch
      %38 = sbr.rel (0) target = $region13
    $region12: #{tpu_custom_call.1} parent=1 // pred_region
      %s40 = ssub.s32 576, 576
      %41 = vsyncadd [#allocation11], %s40
      %s43 = sshll.u32 [#allocation12], 4
      %s44 = int_to_ptr.vmem [resolvable:$true] %s43
      %46 = dma.hbm_to_vmem [thread:$0]  %s2, 576, %s44, [#allocation11]
    $region13: #{tpu_custom_call.1} parent=1 // pred_fallthru
      _
    // Predicated region
    $region14: #{tpu_custom_call.1} parent=1 // pred_check
      _
    $region15: #{tpu_custom_call.1} parent=1 // pred_check_branch
      %48 = sbr.rel (0) target = $region17
    $region16: #{tpu_custom_call.1} parent=1 // pred_region
      %49 = dma.done [#allocation8], 128
    $region17: #{tpu_custom_call.1} parent=1 // pred_fallthru
      _
    // Predicated region
    $region18: #{tpu_custom_call.1} parent=1 // pred_check
      _
    $region19: #{tpu_custom_call.1} parent=1 // pred_check_branch
      %51 = sbr.rel (0) target = $region21
    $region20: #{tpu_custom_call.1} parent=1 // pred_region
      %52 = dma.done [#allocation11], 1024
    $region21: #{tpu_custom_call.1} parent=1 // pred_fallthru
      _
    // Predicated region
    $region22: #{tpu_custom_call.1} parent=1 // pred_check
      _
    $region23: #{tpu_custom_call.1} parent=1 // pred_check_branch
      %54 = sbr.rel (0) target = $region25
    $region24: #{tpu_custom_call.1} parent=1 // pred_region
      %55 = dma.done [#allocation11], 576
    $region25: #{tpu_custom_call.1} parent=1 // pred_fallthru
      _
    %s58 = sshll.u32 1, 14
    %s59 = sxor.u32 4294967295, %s58
    %s61 = sld [smem:[#allocation0]]
    %s62 = sadd.s32 2, %s61
    %s64 = sshll.u32 7, 26
    %s65 = sxor.u32 4294967295, %s64
    %s66 = sand.u32 0, %s65
    %s67 = sshll.u32 %s62, 26
    %s68 = sor.u32 %s66, %s67
    %s69 = sshll.u32 [#allocation2], 4
    %s70 = int_to_ptr.vmem [resolvable:$true] %s69
    %73 = sst [smem:[#allocation15]] 256
    %s74 = scalar_lea.smem [#allocation15], 1
    %75 = sst [smem:[%s74]] 256
    %s76 = scalar_lea.smem [#allocation15], 2
    %77 = sst [smem:[%s76]] 2
    %s78 = scalar_lea.smem [#allocation15], 3
    %79 = sst [smem:[%s78]] 64
    %s80 = scalar_lea.smem [#allocation15], 4
    %81 = sst [smem:[%s80]] 128
    %s82 = scalar_lea.smem [#allocation15], 5
    %83 = sst [smem:[%s82]] 2
    %s84 = scalar_lea.smem [#allocation15], 6
    %85 = sst [smem:[%s84]] 128
    %s86 = scalar_lea.smem [#allocation15], 7
    %87 = sst [smem:[%s86]] 64
    %s88 = scalar_lea.smem [#allocation15], 8
    %89 = sst [smem:[%s88]] 4
    %91 = dma.general %s3, 2048, %s70, [#allocation6], [#allocation14], [#allocation15], %s68, 0
    %s92 = scalar_lea.sflag [#allocation6], 1
    %s94 = sshll.u32 1, 14
    %s95 = sxor.u32 4294967295, %s94
    %s97 = sadd.s32 2, %s61
    %s99 = sshll.u32 7, 26
    %s100 = sxor.u32 4294967295, %s99
    %s101 = sand.u32 0, %s100
    %s102 = sshll.u32 %s97, 26
    %s103 = sor.u32 %s101, %s102
    %s104 = sshll.u32 [#allocation3], 4
    %s105 = int_to_ptr.vmem [resolvable:$true] %s104
    %108 = sst [smem:[#allocation17]] 512
    %s109 = scalar_lea.smem [#allocation17], 1
    %110 = sst [smem:[%s109]] 512
    %s111 = scalar_lea.smem [#allocation17], 2
    %112 = sst [smem:[%s111]] 4
    %s113 = scalar_lea.smem [#allocation17], 3
    %114 = sst [smem:[%s113]] 64
    %s115 = scalar_lea.smem [#allocation17], 4
    %116 = sst [smem:[%s115]] 128
    %s117 = scalar_lea.smem [#allocation17], 5
    %118 = sst [smem:[%s117]] 2
    %s119 = scalar_lea.smem [#allocation17], 6
    %120 = sst [smem:[%s119]] 256
    %s121 = scalar_lea.smem [#allocation17], 7
    %122 = sst [smem:[%s121]] 64
    %s123 = scalar_lea.smem [#allocation17], 8
    %124 = sst [smem:[%s123]] 4
    %126 = dma.general %s4, 8192, %s105, %s92, [#allocation16], [#allocation17], %s103, 0
    %s127 = scalar_lea.sflag [#allocation6], 2
    %s129 = sshll.u32 1, 14
    %s130 = sxor.u32 4294967295, %s129
    %s132 = sadd.s32 2, %s61
    %s134 = sshll.u32 7, 26
    %s135 = sxor.u32 4294967295, %s134
    %s136 = sand.u32 0, %s135
    %s137 = sshll.u32 %s132, 26
    %s138 = sor.u32 %s136, %s137
    %s139 = sshll.u32 [#allocation4], 4
    %s140 = int_to_ptr.vmem [resolvable:$true] %s139
    %143 = sst [smem:[#allocation19]] 1024
    %s144 = scalar_lea.smem [#allocation19], 1
    %145 = sst [smem:[%s144]] 1024
    %s146 = scalar_lea.smem [#allocation19], 2
    %147 = sst [smem:[%s146]] 8
    %s148 = scalar_lea.smem [#allocation19], 3
    %149 = sst [smem:[%s148]] 64
    %s150 = scalar_lea.smem [#allocation19], 4
    %151 = sst [smem:[%s150]] 128
    %s152 = scalar_lea.smem [#allocation19], 5
    %153 = sst [smem:[%s152]] 2
    %s154 = scalar_lea.smem [#allocation19], 6
    %155 = sst [smem:[%s154]] 512
    %s156 = scalar_lea.smem [#allocation19], 7
    %157 = sst [smem:[%s156]] 64
    %s158 = scalar_lea.smem [#allocation19], 8
    %159 = sst [smem:[%s158]] 4
    %161 = dma.general %s5, 32768, %s140, %s127, [#allocation18], [#allocation19], %s138, 0
    %s162 = scalar_lea.sflag [#allocation6], 3
    %s164 = sshll.u32 1, 14
    %s165 = sxor.u32 4294967295, %s164
    %s167 = sadd.s32 2, %s61
    %s169 = sshll.u32 7, 26
    %s170 = sxor.u32 4294967295, %s169
    %s171 = sand.u32 0, %s170
    %s172 = sshll.u32 %s167, 26
    %s173 = sor.u32 %s171, %s172
    %s174 = sshll.u32 [#allocation5], 4
    %s175 = int_to_ptr.vmem [resolvable:$true] %s174
    %178 = sst [smem:[#allocation21]] 896
    %s179 = scalar_lea.smem [#allocation21], 1
    %180 = sst [smem:[%s179]] 896
    %s181 = scalar_lea.smem [#allocation21], 2
    %182 = sst [smem:[%s181]] 7
    %s183 = scalar_lea.smem [#allocation21], 3
    %184 = sst [smem:[%s183]] 64
    %s185 = scalar_lea.smem [#allocation21], 4
    %186 = sst [smem:[%s185]] 128
    %s187 = scalar_lea.smem [#allocation21], 5
    %188 = sst [smem:[%s187]] 2
    %s189 = scalar_lea.smem [#allocation21], 6
    %190 = sst [smem:[%s189]] 448
    %s191 = scalar_lea.smem [#allocation21], 7
    %192 = sst [smem:[%s191]] 64
    %s193 = scalar_lea.smem [#allocation21], 8
    %194 = sst [smem:[%s193]] 4
    %196 = dma.general %s6, 57344, %s175, %s162, [#allocation20], [#allocation21], %s173, 0
    %v197 = vld [vmem:[#allocation12] sm:$0x1]
    %v198 = vld [vmem:[#allocation12 + $0x1] sm:$0x3]
    %v199 = vld [vmem:[#allocation12 + $0x3] sm:$0x3]
    %v200 = vld [vmem:[#allocation12 + $0x5] sm:$0xf]
    %v201 = vld [vmem:[#allocation12 + $0x9] sm:$0xf]
    %v202 = vld [vmem:[#allocation12 + $0xd] sm:$0xff]
    %v203 = vld [vmem:[#allocation12 + $0x15] sm:$0xff]
    %v204 = vld [vmem:[#allocation12 + $0x1d] sm:$0xff]
    %v205 = vld [vmem:[#allocation7] sm:$0xff]
    %v206 = vld [vmem:[#allocation10] sm:$0xf]
    %v207 = vld [vmem:[#allocation10 + $0x4] sm:$0xf]
    %v208 = vld [vmem:[#allocation10 + $0x8] sm:$0xf]
    %v209 = vld [vmem:[#allocation10 + $0xc] sm:$0xf]
    %v210 = vld [vmem:[#allocation10 + $0x10] sm:$0xf]
    %v211 = vld [vmem:[#allocation10 + $0x14] sm:$0xf]
    %v212 = vld [vmem:[#allocation10 + $0x18] sm:$0xf]
    %v213 = vld [vmem:[#allocation10 + $0x1c] sm:$0xf]
    %v214 = vld [vmem:[#allocation10 + $0x20] sm:$0xf]
    %v215 = vld [vmem:[#allocation10 + $0x24] sm:$0xf]
    %v216 = vld [vmem:[#allocation10 + $0x28] sm:$0xf]
    %v217 = vld [vmem:[#allocation10 + $0x2c] sm:$0xf]
    %v218 = vld [vmem:[#allocation10 + $0x30] sm:$0xf]
    %v219 = vld [vmem:[#allocation10 + $0x34] sm:$0xf]
    %v220 = vld [vmem:[#allocation10 + $0x38] sm:$0xf]
    %v221 = vld [vmem:[#allocation10 + $0x3c] sm:$0xf]
    %v222 = vpack.c.bf16 %v205, %v205
    %v224 = vlaneseq
    %v225 = vshrl.u32 %v224, 7
    %v226 = vsub.s32 0, %v225
    %v227 = vrot.slane %v197, %v226
    %v245 = vunpack.c.l.b16 %v206
    %v246 = vunpack.c.l.b16 %v207
    %v247 = vunpack.c.l.b16 %v208
    %v248 = vunpack.c.l.b16 %v209
    %v249 = vunpack.c.l.b16 %v210
    %v250 = vunpack.c.l.b16 %v211
    %v251 = vunpack.c.l.b16 %v212
    %v252 = vunpack.c.l.b16 %v213
    %v253 = vunpack.c.l.b16 %v214
    %v254 = vunpack.c.l.b16 %v215
    %v255 = vunpack.c.l.b16 %v216
    %v256 = vunpack.c.l.b16 %v217
    %v257 = vunpack.c.l.b16 %v218
    %v258 = vunpack.c.l.b16 %v219
    %v259 = vunpack.c.l.b16 %v220
    %v260 = vunpack.c.l.b16 %v221
    %v261 = vpack.c.b16 %v246, %v245
    %v262 = vpack.c.b16 %v248, %v247
    %v263 = vpack.c.b16 %v250, %v249
    %v264 = vpack.c.b16 %v252, %v251
    %v265 = vpack.c.b16 %v254, %v253
    %v266 = vpack.c.b16 %v256, %v255
    %v267 = vpack.c.b16 %v258, %v257
    %v268 = vpack.c.b16 %v260, %v259
    %277 = vmatprep.subr.bf16.mxu0 0
    %278 = vmatpush1.bf16.msra.mxu0 %v261
    %279 = vmatprep.subr.bf16.mxu0 0
    %280 = vmatpush1.bf16.msra.mxu0 %v262
    %281 = vmatprep.subr.bf16.mxu0 0
    %282 = vmatpush1.bf16.msra.mxu0 %v263
    %283 = vmatprep.subr.bf16.mxu0 0
    %284 = vmatpush1.bf16.msra.mxu0 %v264
    %285 = vmatprep.subr.bf16.mxu0 0
    %286 = vmatpush1.bf16.msra.mxu0 %v265
    %287 = vmatprep.subr.bf16.mxu0 0
    %288 = vmatpush1.bf16.msra.mxu0 %v266
    %289 = vmatprep.subr.bf16.mxu0 0
    %290 = vmatpush1.bf16.msra.mxu0 %v267
    %291 = vmatprep.subr.bf16.mxu0 0
    %292 = vmatpush1.bf16.msra.mxu0 %v268
    %293 = vmatprep.subr.bf16.mxu0 0
    %294 = vmatpush1.bf16.msra.mxu0 0
    %295 = vmatprep.subr.bf16.mxu0 0
    %296 = vmatpush1.bf16.msra.mxu0 0
    %297 = vmatprep.subr.bf16.mxu0 0
    %298 = vmatpush1.bf16.msra.mxu0 0
    %299 = vmatprep.subr.bf16.mxu0 0
    %300 = vmatpush1.bf16.msra.mxu0 0
    %301 = vmatprep.subr.bf16.mxu0 0
    %302 = vmatpush1.bf16.msra.mxu0 0
    %303 = vmatprep.subr.bf16.mxu0 0
    %304 = vmatpush1.bf16.msra.mxu0 0
    %305 = vmatprep.subr.bf16.mxu0 0
    %306 = vmatpush1.bf16.msra.mxu0 0
    %307 = vmatprep.subr.bf16.mxu0 0
    %308 = vmatpush1.bf16.msra.mxu0 0
    %309 = vmatprep.mubr.bf16.mxu0 0
    %310 = vmatmul.mubr.bf16.gmra.mrb[0].mxu0 %v222
    %v311 = vpop.f32.mrb[0].mxu0
    %v312 = vadd.f32 %v227, %v311
    %v313 = vpop.f32.mrb[0].mxu0
    %v314 = vpop.f32.mrb[0].mxu0
    %v315 = vpop.f32.mrb[0].mxu0
    %316 = vdwg.mxu0
    %vm317 = vcmp.gt.f32.partialorder %v312, 0.0
    %v318 = vmul.f32 %v312, 0.2
    %v319 = vsel %vm317, %v312, %v318
    %s320 = smul.u32 4, 16
    %s321 = smul.u32 %s320, 2
    %s322 = sshll.u32 %s321, 4
    %323 = dma.done [#allocation6], %s322
    %v324 = vld [vmem:[#allocation2] sm:$0xff]
    %v325 = vld [vmem:[#allocation2 + $0x8] sm:$0xff]
    %v326 = vld [vmem:[#allocation2 + $0x10] sm:$0xff]
    %v327 = vld [vmem:[#allocation2 + $0x18] sm:$0xff]
    %v328 = vld [vmem:[#allocation2 + $0x20] sm:$0xff]
    %v329 = vld [vmem:[#allocation2 + $0x28] sm:$0xff]
    %v330 = vld [vmem:[#allocation2 + $0x30] sm:$0xff]
    %v331 = vld [vmem:[#allocation2 + $0x38] sm:$0xff]
    %v332 = vld [vmem:[#allocation2 + $0x40] sm:$0xff]
    %v333 = vld [vmem:[#allocation2 + $0x48] sm:$0xff]
    %v334 = vld [vmem:[#allocation2 + $0x50] sm:$0xff]
    %v335 = vld [vmem:[#allocation2 + $0x58] sm:$0xff]
    %v336 = vld [vmem:[#allocation2 + $0x60] sm:$0xff]
    %v337 = vld [vmem:[#allocation2 + $0x68] sm:$0xff]
    %v338 = vld [vmem:[#allocation2 + $0x70] sm:$0xff]
    %v339 = vld [vmem:[#allocation2 + $0x78] sm:$0xff]
    %v340 = vpack.c.bf16 %v319, %v319
    %341 = vmatprep.subr.bf16.mxu0 %v325
    %342 = vmatpush1.bf16.msra.mxu0 %v324
    %343 = vmatprep.subr.bf16.mxu0 %v327
    %344 = vmatpush1.bf16.msra.mxu0 %v326
    %345 = vmatprep.subr.bf16.mxu0 %v329
    %346 = vmatpush1.bf16.msra.mxu0 %v328
    %347 = vmatprep.subr.bf16.mxu0 %v331
    %348 = vmatpush1.bf16.msra.mxu0 %v330
    %349 = vmatprep.subr.bf16.mxu0 %v333
    %350 = vmatpush1.bf16.msra.mxu0 %v332
    %351 = vmatprep.subr.bf16.mxu0 %v335
    %352 = vmatpush1.bf16.msra.mxu0 %v334
    %353 = vmatprep.subr.bf16.mxu0 %v337
    %354 = vmatpush1.bf16.msra.mxu0 %v336
    %355 = vmatprep.subr.bf16.mxu0 %v339
    %356 = vmatpush1.bf16.msra.mxu0 %v338
    %357 = vmatprep.subr.bf16.mxu0 0
    %358 = vmatpush1.bf16.msra.mxu0 0
    %359 = vmatprep.subr.bf16.mxu0 0
    %360 = vmatpush1.bf16.msra.mxu0 0
    %361 = vmatprep.subr.bf16.mxu0 0
    %362 = vmatpush1.bf16.msra.mxu0 0
    %363 = vmatprep.subr.bf16.mxu0 0
    %364 = vmatpush1.bf16.msra.mxu0 0
    %365 = vmatprep.subr.bf16.mxu0 0
    %366 = vmatpush1.bf16.msra.mxu0 0
    %367 = vmatprep.subr.bf16.mxu0 0
    %368 = vmatpush1.bf16.msra.mxu0 0
    %369 = vmatprep.subr.bf16.mxu0 0
    %370 = vmatpush1.bf16.msra.mxu0 0
    %371 = vmatprep.subr.bf16.mxu0 0
    %372 = vmatpush1.bf16.msra.mxu0 0
    %373 = vmatprep.mubr.bf16.mxu0 0
    %374 = vmatmul.mubr.bf16.gmra.mrb[0].mxu0 %v340
    %v375 = vpop.f32.mrb[0].mxu0
    %v376 = vadd.f32 0.0, %v375
    %v377 = vpop.f32.mrb[0].mxu0
    %v378 = vadd.f32 0.0, %v377
    %v379 = vpop.f32.mrb[0].mxu0
    %v380 = vpop.f32.mrb[0].mxu0
    %381 = vdwg.mxu0
    %v382 = vrot.slane %v376, 4
    %v383 = vadd.f32 %v376, %v382
    %v384 = vrot.slane %v383, 2
    %v385 = vadd.f32 %v383, %v384
    %v386 = vrot.slane %v385, 1
    %v387 = vadd.f32 %v385, %v386
    %v388 = vrot.slane %v378, 4
    %v389 = vadd.f32 %v378, %v388
    %v390 = vrot.slane %v389, 2
    %v391 = vadd.f32 %v389, %v390
    %v392 = vrot.slane %v391, 1
    %v393 = vadd.f32 %v391, %v392
    %v394 = vrcp.pop 8.0
    %v395 = vmul.f32 %v387, %v394
    %v396 = vmul.f32 %v393, %v394
    %v397 = vsub.f32 %v376, %v395
    %v398 = vsub.f32 %v378, %v396
    %v399 = vmul.f32 %v397, %v397
    %v400 = vmul.f32 %v398, %v398
    %v401 = vrot.slane %v399, 4
    %v402 = vadd.f32 %v399, %v401
    %v403 = vrot.slane %v402, 2
    %v404 = vadd.f32 %v402, %v403
    %v405 = vrot.slane %v404, 1
    %v406 = vadd.f32 %v404, %v405
    %v407 = vrot.slane %v400, 4
    %v408 = vadd.f32 %v400, %v407
    %v409 = vrot.slane %v408, 2
    %v410 = vadd.f32 %v408, %v409
    %v411 = vrot.slane %v410, 1
    %v412 = vadd.f32 %v410, %v411
    %v413 = vmul.f32 %v406, %v394
    %v414 = vmul.f32 %v412, %v394
    %v415 = vadd.f32 %v413, 1e-05
    %v416 = vadd.f32 %v414, 1e-05
    %v417 = vrsqrt.pop %v415
    %v418 = vrsqrt.pop %v416
    %v419 = vmul.f32 %v397, %v417
    %v420 = vmul.f32 %v398, %v418
    %v422 = vlaneseq
    %v423 = vshrl.u32 %v422, 7
    %v424 = vsub.s32 0, %v423
    %v425 = vrot.slane %v198, %v424
    %v426 = vlaneseq
    %v427 = vshrl.u32 %v426, 7
    %v428 = vsub.s32 1, %v427
    %v429 = vrot.slane %v198, %v428
    %v432 = vmul.f32 %v419, %v425
    %v433 = vmul.f32 %v420, %v429
    %v435 = vlaneseq
    %v436 = vshrl.u32 %v435, 7
    %v437 = vsub.s32 0, %v436
    %v438 = vrot.slane %v199, %v437
    %v439 = vlaneseq
    %v440 = vshrl.u32 %v439, 7
    %v441 = vsub.s32 1, %v440
    %v442 = vrot.slane %v199, %v441
    %v445 = vadd.f32 %v432, %v438
    %v446 = vadd.f32 %v433, %v442
    %vm447 = vcmp.gt.f32.partialorder %v445, 0.0
    %vm448 = vcmp.gt.f32.partialorder %v446, 0.0
    %v449 = vmul.f32 %v445, 0.2
    %v450 = vmul.f32 %v446, 0.2
    %v451 = vsel %vm447, %v445, %v449
    %v452 = vsel %vm448, %v446, %v450
    %s453 = smul.u32 4, 32
    %s454 = smul.u32 %s453, 4
    %s455 = sshll.u32 %s454, 4
    %456 = dma.done %s92, %s455
    %v457 = vld [vmem:[#allocation3] sm:$0xff]
    %v458 = vld [vmem:[#allocation3 + $0x8] sm:$0xff]
    %v459 = vld [vmem:[#allocation3 + $0x10] sm:$0xff]
    %v460 = vld [vmem:[#allocation3 + $0x18] sm:$0xff]
    %v461 = vld [vmem:[#allocation3 + $0x20] sm:$0xff]
    %v462 = vld [vmem:[#allocation3 + $0x28] sm:$0xff]
    %v463 = vld [vmem:[#allocation3 + $0x30] sm:$0xff]
    %v464 = vld [vmem:[#allocation3 + $0x38] sm:$0xff]
    %v465 = vld [vmem:[#allocation3 + $0x40] sm:$0xff]
    %v466 = vld [vmem:[#allocation3 + $0x48] sm:$0xff]
    %v467 = vld [vmem:[#allocation3 + $0x50] sm:$0xff]
    %v468 = vld [vmem:[#allocation3 + $0x58] sm:$0xff]
    %v469 = vld [vmem:[#allocation3 + $0x60] sm:$0xff]
    %v470 = vld [vmem:[#allocation3 + $0x68] sm:$0xff]
    %v471 = vld [vmem:[#allocation3 + $0x70] sm:$0xff]
    %v472 = vld [vmem:[#allocation3 + $0x78] sm:$0xff]
    %v473 = vld [vmem:[#allocation3 + $0x80] sm:$0xff]
    %v474 = vld [vmem:[#allocation3 + $0x88] sm:$0xff]
    %v475 = vld [vmem:[#allocation3 + $0x90] sm:$0xff]
    %v476 = vld [vmem:[#allocation3 + $0x98] sm:$0xff]
    %v477 = vld [vmem:[#allocation3 + $0xa0] sm:$0xff]
    %v478 = vld [vmem:[#allocation3 + $0xa8] sm:$0xff]
    %v479 = vld [vmem:[#allocation3 + $0xb0] sm:$0xff]
    %v480 = vld [vmem:[#allocation3 + $0xb8] sm:$0xff]
    %v481 = vld [vmem:[#allocation3 + $0xc0] sm:$0xff]
    %v482 = vld [vmem:[#allocation3 + $0xc8] sm:$0xff]
    %v483 = vld [vmem:[#allocation3 + $0xd0] sm:$0xff]
    %v484 = vld [vmem:[#allocation3 + $0xd8] sm:$0xff]
    %v485 = vld [vmem:[#allocation3 + $0xe0] sm:$0xff]
    %v486 = vld [vmem:[#allocation3 + $0xe8] sm:$0xff]
    %v487 = vld [vmem:[#allocation3 + $0xf0] sm:$0xff]
    %v488 = vld [vmem:[#allocation3 + $0xf8] sm:$0xff]
    %v489 = vld [vmem:[#allocation3 + $0x100] sm:$0xff]
    %v490 = vld [vmem:[#allocation3 + $0x108] sm:$0xff]
    %v491 = vld [vmem:[#allocation3 + $0x110] sm:$0xff]
    %v492 = vld [vmem:[#allocation3 + $0x118] sm:$0xff]
    %v493 = vld [vmem:[#allocation3 + $0x120] sm:$0xff]
    %v494 = vld [vmem:[#allocation3 + $0x128] sm:$0xff]
    %v495 = vld [vmem:[#allocation3 + $0x130] sm:$0xff]
    %v496 = vld [vmem:[#allocation3 + $0x138] sm:$0xff]
    %v497 = vld [vmem:[#allocation3 + $0x140] sm:$0xff]
    %v498 = vld [vmem:[#allocation3 + $0x148] sm:$0xff]
    %v499 = vld [vmem:[#allocation3 + $0x150] sm:$0xff]
    %v500 = vld [vmem:[#allocation3 + $0x158] sm:$0xff]
    %v501 = vld [vmem:[#allocation3 + $0x160] sm:$0xff]
    %v502 = vld [vmem:[#allocation3 + $0x168] sm:$0xff]
    %v503 = vld [vmem:[#allocation3 + $0x170] sm:$0xff]
    %v504 = vld [vmem:[#allocation3 + $0x178] sm:$0xff]
    %v505 = vld [vmem:[#allocation3 + $0x180] sm:$0xff]
    %v506 = vld [vmem:[#allocation3 + $0x188] sm:$0xff]
    %v507 = vld [vmem:[#allocation3 + $0x190] sm:$0xff]
    %v508 = vld [vmem:[#allocation3 + $0x198] sm:$0xff]
    %v509 = vld [vmem:[#allocation3 + $0x1a0] sm:$0xff]
    %v510 = vld [vmem:[#allocation3 + $0x1a8] sm:$0xff]
    %v511 = vld [vmem:[#allocation3 + $0x1b0] sm:$0xff]
    %v512 = vld [vmem:[#allocation3 + $0x1b8] sm:$0xff]
    %v513 = vld [vmem:[#allocation3 + $0x1c0] sm:$0xff]
    %v514 = vld [vmem:[#allocation3 + $0x1c8] sm:$0xff]
    %v515 = vld [vmem:[#allocation3 + $0x1d0] sm:$0xff]
    %v516 = vld [vmem:[#allocation3 + $0x1d8] sm:$0xff]
    %v517 = vld [vmem:[#allocation3 + $0x1e0] sm:$0xff]
    %v518 = vld [vmem:[#allocation3 + $0x1e8] sm:$0xff]
    %v519 = vld [vmem:[#allocation3 + $0x1f0] sm:$0xff]
    %v520 = vld [vmem:[#allocation3 + $0x1f8] sm:$0xff]
    %v521 = vpack.c.bf16 %v451, %v451
    %v522 = vpack.c.bf16 %v452, %v452
    %523 = vmatprep.subr.bf16.mxu0 %v458
    %524 = vmatpush1.bf16.msra.mxu0 %v457
    %525 = vmatprep.subr.bf16.mxu0 %v462
    %526 = vmatpush1.bf16.msra.mxu0 %v461
    %527 = vmatprep.subr.bf16.mxu0 %v466
    %528 = vmatpush1.bf16.msra.mxu0 %v465
    %529 = vmatprep.subr.bf16.mxu0 %v470
    %530 = vmatpush1.bf16.msra.mxu0 %v469
    %531 = vmatprep.subr.bf16.mxu0 %v474
    %532 = vmatpush1.bf16.msra.mxu0 %v473
    %533 = vmatprep.subr.bf16.mxu0 %v478
    %534 = vmatpush1.bf16.msra.mxu0 %v477
    %535 = vmatprep.subr.bf16.mxu0 %v482
    %536 = vmatpush1.bf16.msra.mxu0 %v481
    %537 = vmatprep.subr.bf16.mxu0 %v486
    %538 = vmatpush1.bf16.msra.mxu0 %v485
    %539 = vmatprep.subr.bf16.mxu0 %v490
    %540 = vmatpush1.bf16.msra.mxu0 %v489
    %541 = vmatprep.subr.bf16.mxu0 %v494
    %542 = vmatpush1.bf16.msra.mxu0 %v493
    %543 = vmatprep.subr.bf16.mxu0 %v498
    %544 = vmatpush1.bf16.msra.mxu0 %v497
    %545 = vmatprep.subr.bf16.mxu0 %v502
    %546 = vmatpush1.bf16.msra.mxu0 %v501
    %547 = vmatprep.subr.bf16.mxu0 %v506
    %548 = vmatpush1.bf16.msra.mxu0 %v505
    %549 = vmatprep.subr.bf16.mxu0 %v510
    %550 = vmatpush1.bf16.msra.mxu0 %v509
    %551 = vmatprep.subr.bf16.mxu0 %v514
    %552 = vmatpush1.bf16.msra.mxu0 %v513
    %553 = vmatprep.subr.bf16.mxu0 %v518
    %554 = vmatpush1.bf16.msra.mxu0 %v517
    %555 = vmatprep.mubr.bf16.mxu0 %v522
    %556 = vmatmul.mubr.bf16.gmra.mrb[0].mxu0 %v521
    %v557 = vpop.f32.mrb[0].mxu0
    %v558 = vadd.f32 0.0, %v557
    %v559 = vpop.f32.mrb[0].mxu0
    %v560 = vadd.f32 0.0, %v559
    %v561 = vpop.f32.mrb[0].mxu0
    %v562 = vpop.f32.mrb[0].mxu0
    %563 = vdwg.mxu0
    %564 = vmatprep.subr.bf16.mxu0 %v460
    %565 = vmatpush1.bf16.msra.mxu0 %v459
    %566 = vmatprep.subr.bf16.mxu0 %v464
    %567 = vmatpush1.bf16.msra.mxu0 %v463
    %568 = vmatprep.subr.bf16.mxu0 %v468
    %569 = vmatpush1.bf16.msra.mxu0 %v467
    %570 = vmatprep.subr.bf16.mxu0 %v472
    %571 = vmatpush1.bf16.msra.mxu0 %v471
    %572 = vmatprep.subr.bf16.mxu0 %v476
    %573 = vmatpush1.bf16.msra.mxu0 %v475
    %574 = vmatprep.subr.bf16.mxu0 %v480
    %575 = vmatpush1.bf16.msra.mxu0 %v479
    %576 = vmatprep.subr.bf16.mxu0 %v484
    %577 = vmatpush1.bf16.msra.mxu0 %v483
    %578 = vmatprep.subr.bf16.mxu0 %v488
    %579 = vmatpush1.bf16.msra.mxu0 %v487
    %580 = vmatprep.subr.bf16.mxu0 %v492
    %581 = vmatpush1.bf16.msra.mxu0 %v491
    %582 = vmatprep.subr.bf16.mxu0 %v496
    %583 = vmatpush1.bf16.msra.mxu0 %v495
    %584 = vmatprep.subr.bf16.mxu0 %v500
    %585 = vmatpush1.bf16.msra.mxu0 %v499
    %586 = vmatprep.subr.bf16.mxu0 %v504
    %587 = vmatpush1.bf16.msra.mxu0 %v503
    %588 = vmatprep.subr.bf16.mxu0 %v508
    %589 = vmatpush1.bf16.msra.mxu0 %v507
    %590 = vmatprep.subr.bf16.mxu0 %v512
    %591 = vmatpush1.bf16.msra.mxu0 %v511
    %592 = vmatprep.subr.bf16.mxu0 %v516
    %593 = vmatpush1.bf16.msra.mxu0 %v515
    %594 = vmatprep.subr.bf16.mxu0 %v520
    %595 = vmatpush1.bf16.msra.mxu0 %v519
    %596 = vmatprep.mubr.bf16.mxu0 %v522
    %597 = vmatmul.mubr.bf16.gmra.mrb[0].mxu0 %v521
    %v598 = vpop.f32.mrb[0].mxu0
    %v599 = vadd.f32 0.0, %v598
    %v600 = vpop.f32.mrb[0].mxu0
    %v601 = vadd.f32 0.0, %v600
    %v602 = vpop.f32.mrb[0].mxu0
    %v603 = vpop.f32.mrb[0].mxu0
    %604 = vdwg.mxu0
    %v605 = vrot.slane %v558, 4
    %v606 = vadd.f32 %v558, %v605
    %v607 = vrot.slane %v606, 2
    %v608 = vadd.f32 %v606, %v607
    %v609 = vrot.slane %v608, 1
    %v610 = vadd.f32 %v608, %v609
    %v611 = vrot.slane %v560, 4
    %v612 = vadd.f32 %v560, %v611
    %v613 = vrot.slane %v612, 2
    %v614 = vadd.f32 %v612, %v613
    %v615 = vrot.slane %v614, 1
    %v616 = vadd.f32 %v614, %v615
    %v617 = vrot.slane %v599, 4
    %v618 = vadd.f32 %v599, %v617
    %v619 = vrot.slane %v618, 2
    %v620 = vadd.f32 %v618, %v619
    %v621 = vrot.slane %v620, 1
    %v622 = vadd.f32 %v620, %v621
    %v623 = vrot.slane %v601, 4
    %v624 = vadd.f32 %v601, %v623
    %v625 = vrot.slane %v624, 2
    %v626 = vadd.f32 %v624, %v625
    %v627 = vrot.slane %v626, 1
    %v628 = vadd.f32 %v626, %v627
    %v629 = vmul.f32 %v610, %v394
    %v630 = vmul.f32 %v616, %v394
    %v631 = vmul.f32 %v622, %v394
    %v632 = vmul.f32 %v628, %v394
    %v633 = vsub.f32 %v558, %v629
    %v634 = vsub.f32 %v560, %v630
    %v635 = vsub.f32 %v599, %v631
    %v636 = vsub.f32 %v601, %v632
    %v637 = vmul.f32 %v633, %v633
    %v638 = vmul.f32 %v634, %v634
    %v639 = vmul.f32 %v635, %v635
    %v640 = vmul.f32 %v636, %v636
    %v641 = vrot.slane %v637, 4
    %v642 = vadd.f32 %v637, %v641
    %v643 = vrot.slane %v642, 2
    %v644 = vadd.f32 %v642, %v643
    %v645 = vrot.slane %v644, 1
    %v646 = vadd.f32 %v644, %v645
    %v647 = vrot.slane %v638, 4
    %v648 = vadd.f32 %v638, %v647
    %v649 = vrot.slane %v648, 2
    %v650 = vadd.f32 %v648, %v649
    %v651 = vrot.slane %v650, 1
    %v652 = vadd.f32 %v650, %v651
    %v653 = vrot.slane %v639, 4
    %v654 = vadd.f32 %v639, %v653
    %v655 = vrot.slane %v654, 2
    %v656 = vadd.f32 %v654, %v655
    %v657 = vrot.slane %v656, 1
    %v658 = vadd.f32 %v656, %v657
    %v659 = vrot.slane %v640, 4
    %v660 = vadd.f32 %v640, %v659
    %v661 = vrot.slane %v660, 2
    %v662 = vadd.f32 %v660, %v661
    %v663 = vrot.slane %v662, 1
    %v664 = vadd.f32 %v662, %v663
    %v665 = vmul.f32 %v646, %v394
    %v666 = vmul.f32 %v652, %v394
    %v667 = vmul.f32 %v658, %v394
    %v668 = vmul.f32 %v664, %v394
    %v669 = vadd.f32 %v665, 1e-05
    %v670 = vadd.f32 %v666, 1e-05
    %v671 = vadd.f32 %v667, 1e-05
    %v672 = vadd.f32 %v668, 1e-05
    %v673 = vrsqrt.pop %v669
    %v674 = vrsqrt.pop %v670
    %v675 = vrsqrt.pop %v671
    %v676 = vrsqrt.pop %v672
    %v677 = vmul.f32 %v633, %v673
    %v678 = vmul.f32 %v634, %v674
    %v679 = vmul.f32 %v635, %v675
    %v680 = vmul.f32 %v636, %v676
    %v682 = vlaneseq
    %v683 = vshrl.u32 %v682, 7
    %v684 = vsub.s32 0, %v683
    %v685 = vrot.slane %v200, %v684
    %v686 = vlaneseq
    %v687 = vshrl.u32 %v686, 7
    %v688 = vsub.s32 1, %v687
    %v689 = vrot.slane %v200, %v688
    %v690 = vlaneseq
    %v691 = vshrl.u32 %v690, 7
    %v692 = vsub.s32 2, %v691
    %v693 = vrot.slane %v200, %v692
    %v694 = vlaneseq
    %v695 = vshrl.u32 %v694, 7
    %v696 = vsub.s32 3, %v695
    %v697 = vrot.slane %v200, %v696
    %v702 = vmul.f32 %v677, %v685
    %v703 = vmul.f32 %v678, %v689
    %v704 = vmul.f32 %v679, %v693
    %v705 = vmul.f32 %v680, %v697
    %v707 = vlaneseq
    %v708 = vshrl.u32 %v707, 7
    %v709 = vsub.s32 0, %v708
    %v710 = vrot.slane %v201, %v709
    %v711 = vlaneseq
    %v712 = vshrl.u32 %v711, 7
    %v713 = vsub.s32 1, %v712
    %v714 = vrot.slane %v201, %v713
    %v715 = vlaneseq
    %v716 = vshrl.u32 %v715, 7
    %v717 = vsub.s32 2, %v716
    %v718 = vrot.slane %v201, %v717
    %v719 = vlaneseq
    %v720 = vshrl.u32 %v719, 7
    %v721 = vsub.s32 3, %v720
    %v722 = vrot.slane %v201, %v721
    %v727 = vadd.f32 %v702, %v710
    %v728 = vadd.f32 %v703, %v714
    %v729 = vadd.f32 %v704, %v718
    %v730 = vadd.f32 %v705, %v722
    %vm731 = vcmp.gt.f32.partialorder %v727, 0.0
    %vm732 = vcmp.gt.f32.partialorder %v728, 0.0
    %vm733 = vcmp.gt.f32.partialorder %v729, 0.0
    %vm734 = vcmp.gt.f32.partialorder %v730, 0.0
    %v735 = vmul.f32 %v727, 0.2
    %v736 = vmul.f32 %v728, 0.2
    %v737 = vmul.f32 %v729, 0.2
    %v738 = vmul.f32 %v730, 0.2
    %v739 = vsel %vm731, %v727, %v735
    %v740 = vsel %vm732, %v728, %v736
    %v741 = vsel %vm733, %v729, %v737
    %v742 = vsel %vm734, %v730, %v738
    %s743 = smul.u32 4, 64
    %s744 = smul.u32 %s743, 8
    %s745 = sshll.u32 %s744, 4
    %746 = dma.done %s127, %s745
    %v747 = vld [vmem:[#allocation4] sm:$0xff]
    %v748 = vld [vmem:[#allocation4 + $0x8] sm:$0xff]
    %v749 = vld [vmem:[#allocation4 + $0x10] sm:$0xff]
    %v750 = vld [vmem:[#allocation4 + $0x18] sm:$0xff]
    %v751 = vld [vmem:[#allocation4 + $0x20] sm:$0xff]
    %v752 = vld [vmem:[#allocation4 + $0x28] sm:$0xff]
    %v753 = vld [vmem:[#allocation4 + $0x30] sm:$0xff]
    %v754 = vld [vmem:[#allocation4 + $0x38] sm:$0xff]
    %v755 = vld [vmem:[#allocation4 + $0x40] sm:$0xff]
    %v756 = vld [vmem:[#allocation4 + $0x48] sm:$0xff]
    %v757 = vld [vmem:[#allocation4 + $0x50] sm:$0xff]
    %v758 = vld [vmem:[#allocation4 + $0x58] sm:$0xff]
    %v759 = vld [vmem:[#allocation4 + $0x60] sm:$0xff]
    %v760 = vld [vmem:[#allocation4 + $0x68] sm:$0xff]
    %v761 = vld [vmem:[#allocation4 + $0x70] sm:$0xff]
    %v762 = vld [vmem:[#allocation4 + $0x78] sm:$0xff]
    %v763 = vld [vmem:[#allocation4 + $0x80] sm:$0xff]
    %v764 = vld [vmem:[#allocation4 + $0x88] sm:$0xff]
    %v765 = vld [vmem:[#allocation4 + $0x90] sm:$0xff]
    %v766 = vld [vmem:[#allocation4 + $0x98] sm:$0xff]
    %v767 = vld [vmem:[#allocation4 + $0xa0] sm:$0xff]
    %v768 = vld [vmem:[#allocation4 + $0xa8] sm:$0xff]
    %v769 = vld [vmem:[#allocation4 + $0xb0] sm:$0xff]
    %v770 = vld [vmem:[#allocation4 + $0xb8] sm:$0xff]
    %v771 = vld [vmem:[#allocation4 + $0xc0] sm:$0xff]
    %v772 = vld [vmem:[#allocation4 + $0xc8] sm:$0xff]
    %v773 = vld [vmem:[#allocation4 + $0xd0] sm:$0xff]
    %v774 = vld [vmem:[#allocation4 + $0xd8] sm:$0xff]
    %v775 = vld [vmem:[#allocation4 + $0xe0] sm:$0xff]
    %v776 = vld [vmem:[#allocation4 + $0xe8] sm:$0xff]
    %v777 = vld [vmem:[#allocation4 + $0xf0] sm:$0xff]
    %v778 = vld [vmem:[#allocation4 + $0xf8] sm:$0xff]
    %v779 = vld [vmem:[#allocation4 + $0x100] sm:$0xff]
    %v780 = vld [vmem:[#allocation4 + $0x108] sm:$0xff]
    %v781 = vld [vmem:[#allocation4 + $0x110] sm:$0xff]
    %v782 = vld [vmem:[#allocation4 + $0x118] sm:$0xff]
    %v783 = vld [vmem:[#allocation4 + $0x120] sm:$0xff]
    %v784 = vld [vmem:[#allocation4 + $0x128] sm:$0xff]
    %v785 = vld [vmem:[#allocation4 + $0x130] sm:$0xff]
    %v786 = vld [vmem:[#allocation4 + $0x138] sm:$0xff]
    %v787 = vld [vmem:[#allocation4 + $0x140] sm:$0xff]
    %v788 = vld [vmem:[#allocation4 + $0x148] sm:$0xff]
    %v789 = vld [vmem:[#allocation4 + $0x150] sm:$0xff]
    %v790 = vld [vmem:[#allocation4 + $0x158] sm:$0xff]
    %v791 = vld [vmem:[#allocation4 + $0x160] sm:$0xff]
    %v792 = vld [vmem:[#allocation4 + $0x168] sm:$0xff]
    %v793 = vld [vmem:[#allocation4 + $0x170] sm:$0xff]
    %v794 = vld [vmem:[#allocation4 + $0x178] sm:$0xff]
    %v795 = vld [vmem:[#allocation4 + $0x180] sm:$0xff]
    %v796 = vld [vmem:[#allocation4 + $0x188] sm:$0xff]
    %v797 = vld [vmem:[#allocation4 + $0x190] sm:$0xff]
    %v798 = vld [vmem:[#allocation4 + $0x198] sm:$0xff]
    %v799 = vld [vmem:[#allocation4 + $0x1a0] sm:$0xff]
    %v800 = vld [vmem:[#allocation4 + $0x1a8] sm:$0xff]
    %v801 = vld [vmem:[#allocation4 + $0x1b0] sm:$0xff]
    %v802 = vld [vmem:[#allocation4 + $0x1b8] sm:$0xff]
    %v803 = vld [vmem:[#allocation4 + $0x1c0] sm:$0xff]
    %v804 = vld [vmem:[#allocation4 + $0x1c8] sm:$0xff]
    %v805 = vld [vmem:[#allocation4 + $0x1d0] sm:$0xff]
    %v806 = vld [vmem:[#allocation4 + $0x1d8] sm:$0xff]
    %v807 = vld [vmem:[#allocation4 + $0x1e0] sm:$0xff]
    %v808 = vld [vmem:[#allocation4 + $0x1e8] sm:$0xff]
    %v809 = vld [vmem:[#allocation4 + $0x1f0] sm:$0xff]
    %v810 = vld [vmem:[#allocation4 + $0x1f8] sm:$0xff]
    %v811 = vld [vmem:[#allocation4 + $0x200] sm:$0xff]
    %v812 = vld [vmem:[#allocation4 + $0x208] sm:$0xff]
    %v813 = vld [vmem:[#allocation4 + $0x210] sm:$0xff]
    %v814 = vld [vmem:[#allocation4 + $0x218] sm:$0xff]
    %v815 = vld [vmem:[#allocation4 + $0x220] sm:$0xff]
    %v816 = vld [vmem:[#allocation4 + $0x228] sm:$0xff]
    %v817 = vld [vmem:[#allocation4 + $0x230] sm:$0xff]
    %v818 = vld [vmem:[#allocation4 + $0x238] sm:$0xff]
    %v819 = vld [vmem:[#allocation4 + $0x240] sm:$0xff]
    %v820 = vld [vmem:[#allocation4 + $0x248] sm:$0xff]
    %v821 = vld [vmem:[#allocation4 + $0x250] sm:$0xff]
    %v822 = vld [vmem:[#allocation4 + $0x258] sm:$0xff]
    %v823 = vld [vmem:[#allocation4 + $0x260] sm:$0xff]
    %v824 = vld [vmem:[#allocation4 + $0x268] sm:$0xff]
    %v825 = vld [vmem:[#allocation4 + $0x270] sm:$0xff]
    %v826 = vld [vmem:[#allocation4 + $0x278] sm:$0xff]
    %v827 = vld [vmem:[#allocation4 + $0x280] sm:$0xff]
    %v828 = vld [vmem:[#allocation4 + $0x288] sm:$0xff]
    %v829 = vld [vmem:[#allocation4 + $0x290] sm:$0xff]
    %v830 = vld [vmem:[#allocation4 + $0x298] sm:$0xff]
    %v831 = vld [vmem:[#allocation4 + $0x2a0] sm:$0xff]
    %v832 = vld [vmem:[#allocation4 + $0x2a8] sm:$0xff]
    %v833 = vld [vmem:[#allocation4 + $0x2b0] sm:$0xff]
    %v834 = vld [vmem:[#allocation4 + $0x2b8] sm:$0xff]
    %v835 = vld [vmem:[#allocation4 + $0x2c0] sm:$0xff]
    %v836 = vld [vmem:[#allocation4 + $0x2c8] sm:$0xff]
    %v837 = vld [vmem:[#allocation4 + $0x2d0] sm:$0xff]
    %v838 = vld [vmem:[#allocation4 + $0x2d8] sm:$0xff]
    %v839 = vld [vmem:[#allocation4 + $0x2e0] sm:$0xff]
    %v840 = vld [vmem:[#allocation4 + $0x2e8] sm:$0xff]
    %v841 = vld [vmem:[#allocation4 + $0x2f0] sm:$0xff]
    %v842 = vld [vmem:[#allocation4 + $0x2f8] sm:$0xff]
    %v843 = vld [vmem:[#allocation4 + $0x300] sm:$0xff]
    %v844 = vld [vmem:[#allocation4 + $0x308] sm:$0xff]
    %v845 = vld [vmem:[#allocation4 + $0x310] sm:$0xff]
    %v846 = vld [vmem:[#allocation4 + $0x318] sm:$0xff]
    %v847 = vld [vmem:[#allocation4 + $0x320] sm:$0xff]
    %v848 = vld [vmem:[#allocation4 + $0x328] sm:$0xff]
    %v849 = vld [vmem:[#allocation4 + $0x330] sm:$0xff]
    %v850 = vld [vmem:[#allocation4 + $0x338] sm:$0xff]
    %v851 = vld [vmem:[#allocation4 + $0x340] sm:$0xff]
    %v852 = vld [vmem:[#allocation4 + $0x348] sm:$0xff]
    %v853 = vld [vmem:[#allocation4 + $0x350] sm:$0xff]
    %v854 = vld [vmem:[#allocation4 + $0x358] sm:$0xff]
    %v855 = vld [vmem:[#allocation4 + $0x360] sm:$0xff]
    %v856 = vld [vmem:[#allocation4 + $0x368] sm:$0xff]
    %v857 = vld [vmem:[#allocation4 + $0x370] sm:$0xff]
    %v858 = vld [vmem:[#allocation4 + $0x378] sm:$0xff]
    %v859 = vld [vmem:[#allocation4 + $0x380] sm:$0xff]
    %v860 = vld [vmem:[#allocation4 + $0x388] sm:$0xff]
    %v861 = vld [vmem:[#allocation4 + $0x390] sm:$0xff]
    %v862 = vld [vmem:[#allocation4 + $0x398] sm:$0xff]
    %v863 = vld [vmem:[#allocation4 + $0x3a0] sm:$0xff]
    %v864 = vld [vmem:[#allocation4 + $0x3a8] sm:$0xff]
    %v865 = vld [vmem:[#allocation4 + $0x3b0] sm:$0xff]
    %v866 = vld [vmem:[#allocation4 + $0x3b8] sm:$0xff]
    %v867 = vld [vmem:[#allocation4 + $0x3c0] sm:$0xff]
    %v868 = vld [vmem:[#allocation4 + $0x3c8] sm:$0xff]
    %v869 = vld [vmem:[#allocation4 + $0x3d0] sm:$0xff]
    %v870 = vld [vmem:[#allocation4 + $0x3d8] sm:$0xff]
    %v871 = vld [vmem:[#allocation4 + $0x3e0] sm:$0xff]
    %v872 = vld [vmem:[#allocation4 + $0x3e8] sm:$0xff]
    %v873 = vld [vmem:[#allocation4 + $0x3f0] sm:$0xff]
    %v874 = vld [vmem:[#allocation4 + $0x3f8] sm:$0xff]
    %v875 = vld [vmem:[#allocation4 + $0x400] sm:$0xff]
    %v876 = vld [vmem:[#allocation4 + $0x408] sm:$0xff]
    %v877 = vld [vmem:[#allocation4 + $0x410] sm:$0xff]
    %v878 = vld [vmem:[#allocation4 + $0x418] sm:$0xff]
    %v879 = vld [vmem:[#allocation4 + $0x420] sm:$0xff]
    %v880 = vld [vmem:[#allocation4 + $0x428] sm:$0xff]
    %v881 = vld [vmem:[#allocation4 + $0x430] sm:$0xff]
    %v882 = vld [vmem:[#allocation4 + $0x438] sm:$0xff]
    %v883 = vld [vmem:[#allocation4 + $0x440] sm:$0xff]
    %v884 = vld [vmem:[#allocation4 + $0x448] sm:$0xff]
    %v885 = vld [vmem:[#allocation4 + $0x450] sm:$0xff]
    %v886 = vld [vmem:[#allocation4 + $0x458] sm:$0xff]
    %v887 = vld [vmem:[#allocation4 + $0x460] sm:$0xff]
    %v888 = vld [vmem:[#allocation4 + $0x468] sm:$0xff]
    %v889 = vld [vmem:[#allocation4 + $0x470] sm:$0xff]
    %v890 = vld [vmem:[#allocation4 + $0x478] sm:$0xff]
    %v891 = vld [vmem:[#allocation4 + $0x480] sm:$0xff]
    %v892 = vld [vmem:[#allocation4 + $0x488] sm:$0xff]
    %v893 = vld [vmem:[#allocation4 + $0x490] sm:$0xff]
    %v894 = vld [vmem:[#allocation4 + $0x498] sm:$0xff]
    %v895 = vld [vmem:[#allocation4 + $0x4a0] sm:$0xff]
    %v896 = vld [vmem:[#allocation4 + $0x4a8] sm:$0xff]
    %v897 = vld [vmem:[#allocation4 + $0x4b0] sm:$0xff]
    %v898 = vld [vmem:[#allocation4 + $0x4b8] sm:$0xff]
    %v899 = vld [vmem:[#allocation4 + $0x4c0] sm:$0xff]
    %v900 = vld [vmem:[#allocation4 + $0x4c8] sm:$0xff]
    %v901 = vld [vmem:[#allocation4 + $0x4d0] sm:$0xff]
    %v902 = vld [vmem:[#allocation4 + $0x4d8] sm:$0xff]
    %v903 = vld [vmem:[#allocation4 + $0x4e0] sm:$0xff]
    %v904 = vld [vmem:[#allocation4 + $0x4e8] sm:$0xff]
    %v905 = vld [vmem:[#allocation4 + $0x4f0] sm:$0xff]
    %v906 = vld [vmem:[#allocation4 + $0x4f8] sm:$0xff]
    %v907 = vld [vmem:[#allocation4 + $0x500] sm:$0xff]
    %v908 = vld [vmem:[#allocation4 + $0x508] sm:$0xff]
    %v909 = vld [vmem:[#allocation4 + $0x510] sm:$0xff]
    %v910 = vld [vmem:[#allocation4 + $0x518] sm:$0xff]
    %v911 = vld [vmem:[#allocation4 + $0x520] sm:$0xff]
    %v912 = vld [vmem:[#allocation4 + $0x528] sm:$0xff]
    %v913 = vld [vmem:[#allocation4 + $0x530] sm:$0xff]
    %v914 = vld [vmem:[#allocation4 + $0x538] sm:$0xff]
    %v915 = vld [vmem:[#allocation4 + $0x540] sm:$0xff]
    %v916 = vld [vmem:[#allocation4 + $0x548] sm:$0xff]
    %v917 = vld [vmem:[#allocation4 + $0x550] sm:$0xff]
    %v918 = vld [vmem:[#allocation4 + $0x558] sm:$0xff]
    %v919 = vld [vmem:[#allocation4 + $0x560] sm:$0xff]
    %v920 = vld [vmem:[#allocation4 + $0x568] sm:$0xff]
    %v921 = vld [vmem:[#allocation4 + $0x570] sm:$0xff]
    %v922 = vld [vmem:[#allocation4 + $0x578] sm:$0xff]
    %v923 = vld [vmem:[#allocation4 + $0x580] sm:$0xff]
    %v924 = vld [vmem:[#allocation4 + $0x588] sm:$0xff]
    %v925 = vld [vmem:[#allocation4 + $0x590] sm:$0xff]
    %v926 = vld [vmem:[#allocation4 + $0x598] sm:$0xff]
    %v927 = vld [vmem:[#allocation4 + $0x5a0] sm:$0xff]
    %v928 = vld [vmem:[#allocation4 + $0x5a8] sm:$0xff]
    %v929 = vld [vmem:[#allocation4 + $0x5b0] sm:$0xff]
    %v930 = vld [vmem:[#allocation4 + $0x5b8] sm:$0xff]
    %v931 = vld [vmem:[#allocation4 + $0x5c0] sm:$0xff]
    %v932 = vld [vmem:[#allocation4 + $0x5c8] sm:$0xff]
    %v933 = vld [vmem:[#allocation4 + $0x5d0] sm:$0xff]
    %v934 = vld [vmem:[#allocation4 + $0x5d8] sm:$0xff]
    %v935 = vld [vmem:[#allocation4 + $0x5e0] sm:$0xff]
    %v936 = vld [vmem:[#allocation4 + $0x5e8] sm:$0xff]
    %v937 = vld [vmem:[#allocation4 + $0x5f0] sm:$0xff]
    %v938 = vld [vmem:[#allocation4 + $0x5f8] sm:$0xff]
    %v939 = vld [vmem:[#allocation4 + $0x600] sm:$0xff]
    %v940 = vld [vmem:[#allocation4 + $0x608] sm:$0xff]
    %v941 = vld [vmem:[#allocation4 + $0x610] sm:$0xff]
    %v942 = vld [vmem:[#allocation4 + $0x618] sm:$0xff]
    %v943 = vld [vmem:[#allocation4 + $0x620] sm:$0xff]
    %v944 = vld [vmem:[#allocation4 + $0x628] sm:$0xff]
    %v945 = vld [vmem:[#allocation4 + $0x630] sm:$0xff]
    %v946 = vld [vmem:[#allocation4 + $0x638] sm:$0xff]
    %v947 = vld [vmem:[#allocation4 + $0x640] sm:$0xff]
    %v948 = vld [vmem:[#allocation4 + $0x648] sm:$0xff]
    %v949 = vld [vmem:[#allocation4 + $0x650] sm:$0xff]
    %v950 = vld [vmem:[#allocation4 + $0x658] sm:$0xff]
    %v951 = vld [vmem:[#allocation4 + $0x660] sm:$0xff]
    %v952 = vld [vmem:[#allocation4 + $0x668] sm:$0xff]
    %v953 = vld [vmem:[#allocation4 + $0x670] sm:$0xff]
    %v954 = vld [vmem:[#allocation4 + $0x678] sm:$0xff]
    %v955 = vld [vmem:[#allocation4 + $0x680] sm:$0xff]
    %v956 = vld [vmem:[#allocation4 + $0x688] sm:$0xff]
    %v957 = vld [vmem:[#allocation4 + $0x690] sm:$0xff]
    %v958 = vld [vmem:[#allocation4 + $0x698] sm:$0xff]
    %v959 = vld [vmem:[#allocation4 + $0x6a0] sm:$0xff]
    %v960 = vld [vmem:[#allocation4 + $0x6a8] sm:$0xff]
    %v961 = vld [vmem:[#allocation4 + $0x6b0] sm:$0xff]
    %v962 = vld [vmem:[#allocation4 + $0x6b8] sm:$0xff]
    %v963 = vld [vmem:[#allocation4 + $0x6c0] sm:$0xff]
    %v964 = vld [vmem:[#allocation4 + $0x6c8] sm:$0xff]
    %v965 = vld [vmem:[#allocation4 + $0x6d0] sm:$0xff]
    %v966 = vld [vmem:[#allocation4 + $0x6d8] sm:$0xff]
    %v967 = vld [vmem:[#allocation4 + $0x6e0] sm:$0xff]
    %v968 = vld [vmem:[#allocation4 + $0x6e8] sm:$0xff]
    %v969 = vld [vmem:[#allocation4 + $0x6f0] sm:$0xff]
    %v970 = vld [vmem:[#allocation4 + $0x6f8] sm:$0xff]
    %v971 = vld [vmem:[#allocation4 + $0x700] sm:$0xff]
    %v972 = vld [vmem:[#allocation4 + $0x708] sm:$0xff]
    %v973 = vld [vmem:[#allocation4 + $0x710] sm:$0xff]
    %v974 = vld [vmem:[#allocation4 + $0x718] sm:$0xff]
    %v975 = vld [vmem:[#allocation4 + $0x720] sm:$0xff]
    %v976 = vld [vmem:[#allocation4 + $0x728] sm:$0xff]
    %v977 = vld [vmem:[#allocation4 + $0x730] sm:$0xff]
    %v978 = vld [vmem:[#allocation4 + $0x738] sm:$0xff]
    %v979 = vld [vmem:[#allocation4 + $0x740] sm:$0xff]
    %v980 = vld [vmem:[#allocation4 + $0x748] sm:$0xff]
    %v981 = vld [vmem:[#allocation4 + $0x750] sm:$0xff]
    %v982 = vld [vmem:[#allocation4 + $0x758] sm:$0xff]
    %v983 = vld [vmem:[#allocation4 + $0x760] sm:$0xff]
    %v984 = vld [vmem:[#allocation4 + $0x768] sm:$0xff]
    %v985 = vld [vmem:[#allocation4 + $0x770] sm:$0xff]
    %v986 = vld [vmem:[#allocation4 + $0x778] sm:$0xff]
    %v987 = vld [vmem:[#allocation4 + $0x780] sm:$0xff]
    %v988 = vld [vmem:[#allocation4 + $0x788] sm:$0xff]
    %v989 = vld [vmem:[#allocation4 + $0x790] sm:$0xff]
    %v990 = vld [vmem:[#allocation4 + $0x798] sm:$0xff]
    %v991 = vld [vmem:[#allocation4 + $0x7a0] sm:$0xff]
    %v992 = vld [vmem:[#allocation4 + $0x7a8] sm:$0xff]
    %v993 = vld [vmem:[#allocation4 + $0x7b0] sm:$0xff]
    %v994 = vld [vmem:[#allocation4 + $0x7b8] sm:$0xff]
    %v995 = vld [vmem:[#allocation4 + $0x7c0] sm:$0xff]
    %v996 = vld [vmem:[#allocation4 + $0x7c8] sm:$0xff]
    %v997 = vld [vmem:[#allocation4 + $0x7d0] sm:$0xff]
    %v998 = vld [vmem:[#allocation4 + $0x7d8] sm:$0xff]
    %v999 = vld [vmem:[#allocation4 + $0x7e0] sm:$0xff]
    %v1000 = vld [vmem:[#allocation4 + $0x7e8] sm:$0xff]
    %v1001 = vld [vmem:[#allocation4 + $0x7f0] sm:$0xff]
    %v1002 = vld [vmem:[#allocation4 + $0x7f8] sm:$0xff]
    %v1003 = vpack.c.bf16 %v739, %v739
    %v1004 = vpack.c.bf16 %v740, %v740
    %v1005 = vpack.c.bf16 %v741, %v741
    %v1006 = vpack.c.bf16 %v742, %v742
    %1007 = vmatprep.subr.bf16.mxu0 %v748
    %1008 = vmatpush1.bf16.msra.mxu0 %v747
    %1009 = vmatprep.subr.bf16.mxu0 %v756
    %1010 = vmatpush1.bf16.msra.mxu0 %v755
    %1011 = vmatprep.subr.bf16.mxu0 %v764
    %1012 = vmatpush1.bf16.msra.mxu0 %v763
    %1013 = vmatprep.subr.bf16.mxu0 %v772
    %1014 = vmatpush1.bf16.msra.mxu0 %v771
    %1015 = vmatprep.subr.bf16.mxu0 %v780
    %1016 = vmatpush1.bf16.msra.mxu0 %v779
    %1017 = vmatprep.subr.bf16.mxu0 %v788
    %1018 = vmatpush1.bf16.msra.mxu0 %v787
    %1019 = vmatprep.subr.bf16.mxu0 %v796
    %1020 = vmatpush1.bf16.msra.mxu0 %v795
    %1021 = vmatprep.subr.bf16.mxu0 %v804
    %1022 = vmatpush1.bf16.msra.mxu0 %v803
    %1023 = vmatprep.subr.bf16.mxu0 %v812
    %1024 = vmatpush1.bf16.msra.mxu0 %v811
    %1025 = vmatprep.subr.bf16.mxu0 %v820
    %1026 = vmatpush1.bf16.msra.mxu0 %v819
    %1027 = vmatprep.subr.bf16.mxu0 %v828
    %1028 = vmatpush1.bf16.msra.mxu0 %v827
    %1029 = vmatprep.subr.bf16.mxu0 %v836
    %1030 = vmatpush1.bf16.msra.mxu0 %v835
    %1031 = vmatprep.subr.bf16.mxu0 %v844
    %1032 = vmatpush1.bf16.msra.mxu0 %v843
    %1033 = vmatprep.subr.bf16.mxu0 %v852
    %1034 = vmatpush1.bf16.msra.mxu0 %v851
    %1035 = vmatprep.subr.bf16.mxu0 %v860
    %1036 = vmatpush1.bf16.msra.mxu0 %v859
    %1037 = vmatprep.subr.bf16.mxu0 %v868
    %1038 = vmatpush1.bf16.msra.mxu0 %v867
    %1039 = vmatprep.mubr.bf16.mxu0 %v1004
    %1040 = vmatmul.mubr.bf16.gmra.mrb[0].mxu0 %v1003
    %v1041 = vpop.f32.mrb[0].mxu0
    %v1042 = vadd.f32 0.0, %v1041
    %v1043 = vpop.f32.mrb[0].mxu0
    %v1044 = vadd.f32 0.0, %v1043
    %v1045 = vpop.f32.mrb[0].mxu0
    %v1046 = vpop.f32.mrb[0].mxu0
    %1047 = vdwg.mxu0
    %1048 = vmatprep.subr.bf16.mxu0 %v876
    %1049 = vmatpush1.bf16.msra.mxu0 %v875
    %1050 = vmatprep.subr.bf16.mxu0 %v884
    %1051 = vmatpush1.bf16.msra.mxu0 %v883
    %1052 = vmatprep.subr.bf16.mxu0 %v892
    %1053 = vmatpush1.bf16.msra.mxu0 %v891
    %1054 = vmatprep.subr.bf16.mxu0 %v900
    %1055 = vmatpush1.bf16.msra.mxu0 %v899
    %1056 = vmatprep.subr.bf16.mxu0 %v908
    %1057 = vmatpush1.bf16.msra.mxu0 %v907
    %1058 = vmatprep.subr.bf16.mxu0 %v916
    %1059 = vmatpush1.bf16.msra.mxu0 %v915
    %1060 = vmatprep.subr.bf16.mxu0 %v924
    %1061 = vmatpush1.bf16.msra.mxu0 %v923
    %1062 = vmatprep.subr.bf16.mxu0 %v932
    %1063 = vmatpush1.bf16.msra.mxu0 %v931
    %1064 = vmatprep.subr.bf16.mxu0 %v940
    %1065 = vmatpush1.bf16.msra.mxu0 %v939
    %1066 = vmatprep.subr.bf16.mxu0 %v948
    %1067 = vmatpush1.bf16.msra.mxu0 %v947
    %1068 = vmatprep.subr.bf16.mxu0 %v956
    %1069 = vmatpush1.bf16.msra.mxu0 %v955
    %1070 = vmatprep.subr.bf16.mxu0 %v964
    %1071 = vmatpush1.bf16.msra.mxu0 %v963
    %1072 = vmatprep.subr.bf16.mxu0 %v972
    %1073 = vmatpush1.bf16.msra.mxu0 %v971
    %1074 = vmatprep.subr.bf16.mxu0 %v980
    %1075 = vmatpush1.bf16.msra.mxu0 %v979
    %1076 = vmatprep.subr.bf16.mxu0 %v988
    %1077 = vmatpush1.bf16.msra.mxu0 %v987
    %1078 = vmatprep.subr.bf16.mxu0 %v996
    %1079 = vmatpush1.bf16.msra.mxu0 %v995
    %1080 = vmatprep.mubr.bf16.mxu0 %v1006
    %1081 = vmatmul.mubr.bf16.gmra.mrb[0].mxu0 %v1005
    %v1082 = vpop.f32.mrb[0].mxu0
    %v1083 = vadd.f32 %v1042, %v1082
    %v1084 = vpop.f32.mrb[0].mxu0
    %v1085 = vadd.f32 %v1044, %v1084
    %v1086 = vpop.f32.mrb[0].mxu0
    %v1087 = vpop.f32.mrb[0].mxu0
    %1088 = vdwg.mxu0
    %1089 = vmatprep.subr.bf16.mxu0 %v750
    %1090 = vmatpush1.bf16.msra.mxu0 %v749
    %1091 = vmatprep.subr.bf16.mxu0 %v758
    %1092 = vmatpush1.bf16.msra.mxu0 %v757
    %1093 = vmatprep.subr.bf16.mxu0 %v766
    %1094 = vmatpush1.bf16.msra.mxu0 %v765
    %1095 = vmatprep.subr.bf16.mxu0 %v774
    %1096 = vmatpush1.bf16.msra.mxu0 %v773
    %1097 = vmatprep.subr.bf16.mxu0 %v782
    %1098 = vmatpush1.bf16.msra.mxu0 %v781
    %1099 = vmatprep.subr.bf16.mxu0 %v790
    %1100 = vmatpush1.bf16.msra.mxu0 %v789
    %1101 = vmatprep.subr.bf16.mxu0 %v798
    %1102 = vmatpush1.bf16.msra.mxu0 %v797
    %1103 = vmatprep.subr.bf16.mxu0 %v806
    %1104 = vmatpush1.bf16.msra.mxu0 %v805
    %1105 = vmatprep.subr.bf16.mxu0 %v814
    %1106 = vmatpush1.bf16.msra.mxu0 %v813
    %1107 = vmatprep.subr.bf16.mxu0 %v822
    %1108 = vmatpush1.bf16.msra.mxu0 %v821
    %1109 = vmatprep.subr.bf16.mxu0 %v830
    %1110 = vmatpush1.bf16.msra.mxu0 %v829
    %1111 = vmatprep.subr.bf16.mxu0 %v838
    %1112 = vmatpush1.bf16.msra.mxu0 %v837
    %1113 = vmatprep.subr.bf16.mxu0 %v846
    %1114 = vmatpush1.bf16.msra.mxu0 %v845
    %1115 = vmatprep.subr.bf16.mxu0 %v854
    %1116 = vmatpush1.bf16.msra.mxu0 %v853
    %1117 = vmatprep.subr.bf16.mxu0 %v862
    %1118 = vmatpush1.bf16.msra.mxu0 %v861
    %1119 = vmatprep.subr.bf16.mxu0 %v870
    %1120 = vmatpush1.bf16.msra.mxu0 %v869
    %1121 = vmatprep.mubr.bf16.mxu0 %v1004
    %1122 = vmatmul.mubr.bf16.gmra.mrb[0].mxu0 %v1003
    %v1123 = vpop.f32.mrb[0].mxu0
    %v1124 = vadd.f32 0.0, %v1123
    %v1125 = vpop.f32.mrb[0].mxu0
    %v1126 = vadd.f32 0.0, %v1125
    %v1127 = vpop.f32.mrb[0].mxu0
    %v1128 = vpop.f32.mrb[0].mxu0
    %1129 = vdwg.mxu0
    %1130 = vmatprep.subr.bf16.mxu0 %v878
    %1131 = vmatpush1.bf16.msra.mxu0 %v877
    %1132 = vmatprep.subr.bf16.mxu0 %v886
    %1133 = vmatpush1.bf16.msra.mxu0 %v885
    %1134 = vmatprep.subr.bf16.mxu0 %v894
    %1135 = vmatpush1.bf16.msra.mxu0 %v893
    %1136 = vmatprep.subr.bf16.mxu0 %v902
    %1137 = vmatpush1.bf16.msra.mxu0 %v901
    %1138 = vmatprep.subr.bf16.mxu0 %v910
    %1139 = vmatpush1.bf16.msra.mxu0 %v909
    %1140 = vmatprep.subr.bf16.mxu0 %v918
    %1141 = vmatpush1.bf16.msra.mxu0 %v917
    %1142 = vmatprep.subr.bf16.mxu0 %v926
    %1143 = vmatpush1.bf16.msra.mxu0 %v925
    %1144 = vmatprep.subr.bf16.mxu0 %v934
    %1145 = vmatpush1.bf16.msra.mxu0 %v933
    %1146 = vmatprep.subr.bf16.mxu0 %v942
    %1147 = vmatpush1.bf16.msra.mxu0 %v941
    %1148 = vmatprep.subr.bf16.mxu0 %v950
    %1149 = vmatpush1.bf16.msra.mxu0 %v949
    %1150 = vmatprep.subr.bf16.mxu0 %v958
    %1151 = vmatpush1.bf16.msra.mxu0 %v957
    %1152 = vmatprep.subr.bf16.mxu0 %v966
    %1153 = vmatpush1.bf16.msra.mxu0 %v965
    %1154 = vmatprep.subr.bf16.mxu0 %v974
    %1155 = vmatpush1.bf16.msra.mxu0 %v973
    %1156 = vmatprep.subr.bf16.mxu0 %v982
    %1157 = vmatpush1.bf16.msra.mxu0 %v981
    %1158 = vmatprep.subr.bf16.mxu0 %v990
    %1159 = vmatpush1.bf16.msra.mxu0 %v989
    %1160 = vmatprep.subr.bf16.mxu0 %v998
    %1161 = vmatpush1.bf16.msra.mxu0 %v997
    %1162 = vmatprep.mubr.bf16.mxu0 %v1006
    %1163 = vmatmul.mubr.bf16.gmra.mrb[0].mxu0 %v1005
    %v1164 = vpop.f32.mrb[0].mxu0
    %v1165 = vadd.f32 %v1124, %v1164
    %v1166 = vpop.f32.mrb[0].mxu0
    %v1167 = vadd.f32 %v1126, %v1166
    %v1168 = vpop.f32.mrb[0].mxu0
    %v1169 = vpop.f32.mrb[0].mxu0
    %1170 = vdwg.mxu0
    %1171 = vmatprep.subr.bf16.mxu0 %v752
    %1172 = vmatpush1.bf16.msra.mxu0 %v751
    %1173 = vmatprep.subr.bf16.mxu0 %v760
    %1174 = vmatpush1.bf16.msra.mxu0 %v759
    %1175 = vmatprep.subr.bf16.mxu0 %v768
    %1176 = vmatpush1.bf16.msra.mxu0 %v767
    %1177 = vmatprep.subr.bf16.mxu0 %v776
    %1178 = vmatpush1.bf16.msra.mxu0 %v775
    %1179 = vmatprep.subr.bf16.mxu0 %v784
    %1180 = vmatpush1.bf16.msra.mxu0 %v783
    %1181 = vmatprep.subr.bf16.mxu0 %v792
    %1182 = vmatpush1.bf16.msra.mxu0 %v791
    %1183 = vmatprep.subr.bf16.mxu0 %v800
    %1184 = vmatpush1.bf16.msra.mxu0 %v799
    %1185 = vmatprep.subr.bf16.mxu0 %v808
    %1186 = vmatpush1.bf16.msra.mxu0 %v807
    %1187 = vmatprep.subr.bf16.mxu0 %v816
    %1188 = vmatpush1.bf16.msra.mxu0 %v815
    %1189 = vmatprep.subr.bf16.mxu0 %v824
    %1190 = vmatpush1.bf16.msra.mxu0 %v823
    %1191 = vmatprep.subr.bf16.mxu0 %v832
    %1192 = vmatpush1.bf16.msra.mxu0 %v831
    %1193 = vmatprep.subr.bf16.mxu0 %v840
    %1194 = vmatpush1.bf16.msra.mxu0 %v839
    %1195 = vmatprep.subr.bf16.mxu0 %v848
    %1196 = vmatpush1.bf16.msra.mxu0 %v847
    %1197 = vmatprep.subr.bf16.mxu0 %v856
    %1198 = vmatpush1.bf16.msra.mxu0 %v855
    %1199 = vmatprep.subr.bf16.mxu0 %v864
    %1200 = vmatpush1.bf16.msra.mxu0 %v863
    %1201 = vmatprep.subr.bf16.mxu0 %v872
    %1202 = vmatpush1.bf16.msra.mxu0 %v871
    %1203 = vmatprep.mubr.bf16.mxu0 %v1004
    %1204 = vmatmul.mubr.bf16.gmra.mrb[0].mxu0 %v1003
    %v1205 = vpop.f32.mrb[0].mxu0
    %v1206 = vadd.f32 0.0, %v1205
    %v1207 = vpop.f32.mrb[0].mxu0
    %v1208 = vadd.f32 0.0, %v1207
    %v1209 = vpop.f32.mrb[0].mxu0
    %v1210 = vpop.f32.mrb[0].mxu0
    %1211 = vdwg.mxu0
    %1212 = vmatprep.subr.bf16.mxu0 %v880
    %1213 = vmatpush1.bf16.msra.mxu0 %v879
    %1214 = vmatprep.subr.bf16.mxu0 %v888
    %1215 = vmatpush1.bf16.msra.mxu0 %v887
    %1216 = vmatprep.subr.bf16.mxu0 %v896
    %1217 = vmatpush1.bf16.msra.mxu0 %v895
    %1218 = vmatprep.subr.bf16.mxu0 %v904
    %1219 = vmatpush1.bf16.msra.mxu0 %v903
    %1220 = vmatprep.subr.bf16.mxu0 %v912
    %1221 = vmatpush1.bf16.msra.mxu0 %v911
    %1222 = vmatprep.subr.bf16.mxu0 %v920
    %1223 = vmatpush1.bf16.msra.mxu0 %v919
    %1224 = vmatprep.subr.bf16.mxu0 %v928
    %1225 = vmatpush1.bf16.msra.mxu0 %v927
    %1226 = vmatprep.subr.bf16.mxu0 %v936
    %1227 = vmatpush1.bf16.msra.mxu0 %v935
    %1228 = vmatprep.subr.bf16.mxu0 %v944
    %1229 = vmatpush1.bf16.msra.mxu0 %v943
    %1230 = vmatprep.subr.bf16.mxu0 %v952
    %1231 = vmatpush1.bf16.msra.mxu0 %v951
    %1232 = vmatprep.subr.bf16.mxu0 %v960
    %1233 = vmatpush1.bf16.msra.mxu0 %v959
    %1234 = vmatprep.subr.bf16.mxu0 %v968
    %1235 = vmatpush1.bf16.msra.mxu0 %v967
    %1236 = vmatprep.subr.bf16.mxu0 %v976
    %1237 = vmatpush1.bf16.msra.mxu0 %v975
    %1238 = vmatprep.subr.bf16.mxu0 %v984
    %1239 = vmatpush1.bf16.msra.mxu0 %v983
    %1240 = vmatprep.subr.bf16.mxu0 %v992
    %1241 = vmatpush1.bf16.msra.mxu0 %v991
    %1242 = vmatprep.subr.bf16.mxu0 %v1000
    %1243 = vmatpush1.bf16.msra.mxu0 %v999
    %1244 = vmatprep.mubr.bf16.mxu0 %v1006
    %1245 = vmatmul.mubr.bf16.gmra.mrb[0].mxu0 %v1005
    %v1246 = vpop.f32.mrb[0].mxu0
    %v1247 = vadd.f32 %v1206, %v1246
    %v1248 = vpop.f32.mrb[0].mxu0
    %v1249 = vadd.f32 %v1208, %v1248
    %v1250 = vpop.f32.mrb[0].mxu0
    %v1251 = vpop.f32.mrb[0].mxu0
    %1252 = vdwg.mxu0
    %1253 = vmatprep.subr.bf16.mxu0 %v754
    %1254 = vmatpush1.bf16.msra.mxu0 %v753
    %1255 = vmatprep.subr.bf16.mxu0 %v762
    %1256 = vmatpush1.bf16.msra.mxu0 %v761
    %1257 = vmatprep.subr.bf16.mxu0 %v770
    %1258 = vmatpush1.bf16.msra.mxu0 %v769
    %1259 = vmatprep.subr.bf16.mxu0 %v778
    %1260 = vmatpush1.bf16.msra.mxu0 %v777
    %1261 = vmatprep.subr.bf16.mxu0 %v786
    %1262 = vmatpush1.bf16.msra.mxu0 %v785
    %1263 = vmatprep.subr.bf16.mxu0 %v794
    %1264 = vmatpush1.bf16.msra.mxu0 %v793
    %1265 = vmatprep.subr.bf16.mxu0 %v802
    %1266 = vmatpush1.bf16.msra.mxu0 %v801
    %1267 = vmatprep.subr.bf16.mxu0 %v810
    %1268 = vmatpush1.bf16.msra.mxu0 %v809
    %1269 = vmatprep.subr.bf16.mxu0 %v818
    %1270 = vmatpush1.bf16.msra.mxu0 %v817
    %1271 = vmatprep.subr.bf16.mxu0 %v826
    %1272 = vmatpush1.bf16.msra.mxu0 %v825
    %1273 = vmatprep.subr.bf16.mxu0 %v834
    %1274 = vmatpush1.bf16.msra.mxu0 %v833
    %1275 = vmatprep.subr.bf16.mxu0 %v842
    %1276 = vmatpush1.bf16.msra.mxu0 %v841
    %1277 = vmatprep.subr.bf16.mxu0 %v850
    %1278 = vmatpush1.bf16.msra.mxu0 %v849
    %1279 = vmatprep.subr.bf16.mxu0 %v858
    %1280 = vmatpush1.bf16.msra.mxu0 %v857
    %1281 = vmatprep.subr.bf16.mxu0 %v866
    %1282 = vmatpush1.bf16.msra.mxu0 %v865
    %1283 = vmatprep.subr.bf16.mxu0 %v874
    %1284 = vmatpush1.bf16.msra.mxu0 %v873
    %1285 = vmatprep.mubr.bf16.mxu0 %v1004
    %1286 = vmatmul.mubr.bf16.gmra.mrb[0].mxu0 %v1003
    %v1287 = vpop.f32.mrb[0].mxu0
    %v1288 = vadd.f32 0.0, %v1287
    %v1289 = vpop.f32.mrb[0].mxu0
    %v1290 = vadd.f32 0.0, %v1289
    %v1291 = vpop.f32.mrb[0].mxu0
    %v1292 = vpop.f32.mrb[0].mxu0
    %1293 = vdwg.mxu0
    %1294 = vmatprep.subr.bf16.mxu0 %v882
    %1295 = vmatpush1.bf16.msra.mxu0 %v881
    %1296 = vmatprep.subr.bf16.mxu0 %v890
    %1297 = vmatpush1.bf16.msra.mxu0 %v889
    %1298 = vmatprep.subr.bf16.mxu0 %v898
    %1299 = vmatpush1.bf16.msra.mxu0 %v897
    %1300 = vmatprep.subr.bf16.mxu0 %v906
    %1301 = vmatpush1.bf16.msra.mxu0 %v905
    %1302 = vmatprep.subr.bf16.mxu0 %v914
    %1303 = vmatpush1.bf16.msra.mxu0 %v913
    %1304 = vmatprep.subr.bf16.mxu0 %v922
    %1305 = vmatpush1.bf16.msra.mxu0 %v921
    %1306 = vmatprep.subr.bf16.mxu0 %v930
    %1307 = vmatpush1.bf16.msra.mxu0 %v929
    %1308 = vmatprep.subr.bf16.mxu0 %v938
    %1309 = vmatpush1.bf16.msra.mxu0 %v937
    %1310 = vmatprep.subr.bf16.mxu0 %v946
    %1311 = vmatpush1.bf16.msra.mxu0 %v945
    %1312 = vmatprep.subr.bf16.mxu0 %v954
    %1313 = vmatpush1.bf16.msra.mxu0 %v953
    %1314 = vmatprep.subr.bf16.mxu0 %v962
    %1315 = vmatpush1.bf16.msra.mxu0 %v961
    %1316 = vmatprep.subr.bf16.mxu0 %v970
    %1317 = vmatpush1.bf16.msra.mxu0 %v969
    %1318 = vmatprep.subr.bf16.mxu0 %v978
    %1319 = vmatpush1.bf16.msra.mxu0 %v977
    %1320 = vmatprep.subr.bf16.mxu0 %v986
    %1321 = vmatpush1.bf16.msra.mxu0 %v985
    %1322 = vmatprep.subr.bf16.mxu0 %v994
    %1323 = vmatpush1.bf16.msra.mxu0 %v993
    %1324 = vmatprep.subr.bf16.mxu0 %v1002
    %1325 = vmatpush1.bf16.msra.mxu0 %v1001
    %1326 = vmatprep.mubr.bf16.mxu0 %v1006
    %1327 = vmatmul.mubr.bf16.gmra.mrb[0].mxu0 %v1005
    %v1328 = vpop.f32.mrb[0].mxu0
    %v1329 = vadd.f32 %v1288, %v1328
    %v1330 = vpop.f32.mrb[0].mxu0
    %v1331 = vadd.f32 %v1290, %v1330
    %v1332 = vpop.f32.mrb[0].mxu0
    %v1333 = vpop.f32.mrb[0].mxu0
    %1334 = vdwg.mxu0
    %v1335 = vrot.slane %v1083, 4
    %v1336 = vadd.f32 %v1083, %v1335
    %v1337 = vrot.slane %v1336, 2
    %v1338 = vadd.f32 %v1336, %v1337
    %v1339 = vrot.slane %v1338, 1
    %v1340 = vadd.f32 %v1338, %v1339
    %v1341 = vrot.slane %v1085, 4
    %v1342 = vadd.f32 %v1085, %v1341
    %v1343 = vrot.slane %v1342, 2
    %v1344 = vadd.f32 %v1342, %v1343
    %v1345 = vrot.slane %v1344, 1
    %v1346 = vadd.f32 %v1344, %v1345
    %v1347 = vrot.slane %v1165, 4
    %v1348 = vadd.f32 %v1165, %v1347
    %v1349 = vrot.slane %v1348, 2
    %v1350 = vadd.f32 %v1348, %v1349
    %v1351 = vrot.slane %v1350, 1
    %v1352 = vadd.f32 %v1350, %v1351
    %v1353 = vrot.slane %v1167, 4
    %v1354 = vadd.f32 %v1167, %v1353
    %v1355 = vrot.slane %v1354, 2
    %v1356 = vadd.f32 %v1354, %v1355
    %v1357 = vrot.slane %v1356, 1
    %v1358 = vadd.f32 %v1356, %v1357
    %v1359 = vrot.slane %v1247, 4
    %v1360 = vadd.f32 %v1247, %v1359
    %v1361 = vrot.slane %v1360, 2
    %v1362 = vadd.f32 %v1360, %v1361
    %v1363 = vrot.slane %v1362, 1
    %v1364 = vadd.f32 %v1362, %v1363
    %v1365 = vrot.slane %v1249, 4
    %v1366 = vadd.f32 %v1249, %v1365
    %v1367 = vrot.slane %v1366, 2
    %v1368 = vadd.f32 %v1366, %v1367
    %v1369 = vrot.slane %v1368, 1
    %v1370 = vadd.f32 %v1368, %v1369
    %v1371 = vrot.slane %v1329, 4
    %v1372 = vadd.f32 %v1329, %v1371
    %v1373 = vrot.slane %v1372, 2
    %v1374 = vadd.f32 %v1372, %v1373
    %v1375 = vrot.slane %v1374, 1
    %v1376 = vadd.f32 %v1374, %v1375
    %v1377 = vrot.slane %v1331, 4
    %v1378 = vadd.f32 %v1331, %v1377
    %v1379 = vrot.slane %v1378, 2
    %v1380 = vadd.f32 %v1378, %v1379
    %v1381 = vrot.slane %v1380, 1
    %v1382 = vadd.f32 %v1380, %v1381
    %v1383 = vmul.f32 %v1340, %v394
    %v1384 = vmul.f32 %v1346, %v394
    %v1385 = vmul.f32 %v1352, %v394
    %v1386 = vmul.f32 %v1358, %v394
    %v1387 = vmul.f32 %v1364, %v394
    %v1388 = vmul.f32 %v1370, %v394
    %v1389 = vmul.f32 %v1376, %v394
    %v1390 = vmul.f32 %v1382, %v394
    %v1391 = vsub.f32 %v1083, %v1383
    %v1392 = vsub.f32 %v1085, %v1384
    %v1393 = vsub.f32 %v1165, %v1385
    %v1394 = vsub.f32 %v1167, %v1386
    %v1395 = vsub.f32 %v1247, %v1387
    %v1396 = vsub.f32 %v1249, %v1388
    %v1397 = vsub.f32 %v1329, %v1389
    %v1398 = vsub.f32 %v1331, %v1390
    %v1399 = vmul.f32 %v1391, %v1391
    %v1400 = vmul.f32 %v1392, %v1392
    %v1401 = vmul.f32 %v1393, %v1393
    %v1402 = vmul.f32 %v1394, %v1394
    %v1403 = vmul.f32 %v1395, %v1395
    %v1404 = vmul.f32 %v1396, %v1396
    %v1405 = vmul.f32 %v1397, %v1397
    %v1406 = vmul.f32 %v1398, %v1398
    %v1407 = vrot.slane %v1399, 4
    %v1408 = vadd.f32 %v1399, %v1407
    %v1409 = vrot.slane %v1408, 2
    %v1410 = vadd.f32 %v1408, %v1409
    %v1411 = vrot.slane %v1410, 1
    %v1412 = vadd.f32 %v1410, %v1411
    %v1413 = vrot.slane %v1400, 4
    %v1414 = vadd.f32 %v1400, %v1413
    %v1415 = vrot.slane %v1414, 2
    %v1416 = vadd.f32 %v1414, %v1415
    %v1417 = vrot.slane %v1416, 1
    %v1418 = vadd.f32 %v1416, %v1417
    %v1419 = vrot.slane %v1401, 4
    %v1420 = vadd.f32 %v1401, %v1419
    %v1421 = vrot.slane %v1420, 2
    %v1422 = vadd.f32 %v1420, %v1421
    %v1423 = vrot.slane %v1422, 1
    %v1424 = vadd.f32 %v1422, %v1423
    %v1425 = vrot.slane %v1402, 4
    %v1426 = vadd.f32 %v1402, %v1425
    %v1427 = vrot.slane %v1426, 2
    %v1428 = vadd.f32 %v1426, %v1427
    %v1429 = vrot.slane %v1428, 1
    %v1430 = vadd.f32 %v1428, %v1429
    %v1431 = vrot.slane %v1403, 4
    %v1432 = vadd.f32 %v1403, %v1431
    %v1433 = vrot.slane %v1432, 2
    %v1434 = vadd.f32 %v1432, %v1433
    %v1435 = vrot.slane %v1434, 1
    %v1436 = vadd.f32 %v1434, %v1435
    %v1437 = vrot.slane %v1404, 4
    %v1438 = vadd.f32 %v1404, %v1437
    %v1439 = vrot.slane %v1438, 2
    %v1440 = vadd.f32 %v1438, %v1439
    %v1441 = vrot.slane %v1440, 1
    %v1442 = vadd.f32 %v1440, %v1441
    %v1443 = vrot.slane %v1405, 4
    %v1444 = vadd.f32 %v1405, %v1443
    %v1445 = vrot.slane %v1444, 2
    %v1446 = vadd.f32 %v1444, %v1445
    %v1447 = vrot.slane %v1446, 1
    %v1448 = vadd.f32 %v1446, %v1447
    %v1449 = vrot.slane %v1406, 4
    %v1450 = vadd.f32 %v1406, %v1449
    %v1451 = vrot.slane %v1450, 2
    %v1452 = vadd.f32 %v1450, %v1451
    %v1453 = vrot.slane %v1452, 1
    %v1454 = vadd.f32 %v1452, %v1453
    %v1455 = vmul.f32 %v1412, %v394
    %v1456 = vmul.f32 %v1418, %v394
    %v1457 = vmul.f32 %v1424, %v394
    %v1458 = vmul.f32 %v1430, %v394
    %v1459 = vmul.f32 %v1436, %v394
    %v1460 = vmul.f32 %v1442, %v394
    %v1461 = vmul.f32 %v1448, %v394
    %v1462 = vmul.f32 %v1454, %v394
    %v1463 = vadd.f32 %v1455, 1e-05
    %v1464 = vadd.f32 %v1456, 1e-05
    %v1465 = vadd.f32 %v1457, 1e-05
    %v1466 = vadd.f32 %v1458, 1e-05
    %v1467 = vadd.f32 %v1459, 1e-05
    %v1468 = vadd.f32 %v1460, 1e-05
    %v1469 = vadd.f32 %v1461, 1e-05
    %v1470 = vadd.f32 %v1462, 1e-05
    %v1471 = vrsqrt.pop %v1463
    %v1472 = vrsqrt.pop %v1464
    %v1473 = vrsqrt.pop %v1465
    %v1474 = vrsqrt.pop %v1466
    %v1475 = vrsqrt.pop %v1467
    %v1476 = vrsqrt.pop %v1468
    %v1477 = vrsqrt.pop %v1469
    %v1478 = vrsqrt.pop %v1470
    %v1479 = vmul.f32 %v1391, %v1471
    %v1480 = vmul.f32 %v1392, %v1472
    %v1481 = vmul.f32 %v1393, %v1473
    %v1482 = vmul.f32 %v1394, %v1474
    %v1483 = vmul.f32 %v1395, %v1475
    %v1484 = vmul.f32 %v1396, %v1476
    %v1485 = vmul.f32 %v1397, %v1477
    %v1486 = vmul.f32 %v1398, %v1478
    %v1488 = vlaneseq
    %v1489 = vshrl.u32 %v1488, 7
    %v1490 = vsub.s32 0, %v1489
    %v1491 = vrot.slane %v202, %v1490
    %v1492 = vlaneseq
    %v1493 = vshrl.u32 %v1492, 7
    %v1494 = vsub.s32 1, %v1493
    %v1495 = vrot.slane %v202, %v1494
    %v1496 = vlaneseq
    %v1497 = vshrl.u32 %v1496, 7
    %v1498 = vsub.s32 2, %v1497
    %v1499 = vrot.slane %v202, %v1498
    %v1500 = vlaneseq
    %v1501 = vshrl.u32 %v1500, 7
    %v1502 = vsub.s32 3, %v1501
    %v1503 = vrot.slane %v202, %v1502
    %v1504 = vlaneseq
    %v1505 = vshrl.u32 %v1504, 7
    %v1506 = vsub.s32 4, %v1505
    %v1507 = vrot.slane %v202, %v1506
    %v1508 = vlaneseq
    %v1509 = vshrl.u32 %v1508, 7
    %v1510 = vsub.s32 5, %v1509
    %v1511 = vrot.slane %v202, %v1510
    %v1512 = vlaneseq
    %v1513 = vshrl.u32 %v1512, 7
    %v1514 = vsub.s32 6, %v1513
    %v1515 = vrot.slane %v202, %v1514
    %v1516 = vlaneseq
    %v1517 = vshrl.u32 %v1516, 7
    %v1518 = vsub.s32 7, %v1517
    %v1519 = vrot.slane %v202, %v1518
    %v1528 = vmul.f32 %v1479, %v1491
    %v1529 = vmul.f32 %v1480, %v1495
    %v1530 = vmul.f32 %v1481, %v1499
    %v1531 = vmul.f32 %v1482, %v1503
    %v1532 = vmul.f32 %v1483, %v1507
    %v1533 = vmul.f32 %v1484, %v1511
    %v1534 = vmul.f32 %v1485, %v1515
    %v1535 = vmul.f32 %v1486, %v1519
    %v1537 = vlaneseq
    %v1538 = vshrl.u32 %v1537, 7
    %v1539 = vsub.s32 0, %v1538
    %v1540 = vrot.slane %v203, %v1539
    %v1541 = vlaneseq
    %v1542 = vshrl.u32 %v1541, 7
    %v1543 = vsub.s32 1, %v1542
    %v1544 = vrot.slane %v203, %v1543
    %v1545 = vlaneseq
    %v1546 = vshrl.u32 %v1545, 7
    %v1547 = vsub.s32 2, %v1546
    %v1548 = vrot.slane %v203, %v1547
    %v1549 = vlaneseq
    %v1550 = vshrl.u32 %v1549, 7
    %v1551 = vsub.s32 3, %v1550
    %v1552 = vrot.slane %v203, %v1551
    %v1553 = vlaneseq
    %v1554 = vshrl.u32 %v1553, 7
    %v1555 = vsub.s32 4, %v1554
    %v1556 = vrot.slane %v203, %v1555
    %v1557 = vlaneseq
    %v1558 = vshrl.u32 %v1557, 7
    %v1559 = vsub.s32 5, %v1558
    %v1560 = vrot.slane %v203, %v1559
    %v1561 = vlaneseq
    %v1562 = vshrl.u32 %v1561, 7
    %v1563 = vsub.s32 6, %v1562
    %v1564 = vrot.slane %v203, %v1563
    %v1565 = vlaneseq
    %v1566 = vshrl.u32 %v1565, 7
    %v1567 = vsub.s32 7, %v1566
    %v1568 = vrot.slane %v203, %v1567
    %v1577 = vadd.f32 %v1528, %v1540
    %v1578 = vadd.f32 %v1529, %v1544
    %v1579 = vadd.f32 %v1530, %v1548
    %v1580 = vadd.f32 %v1531, %v1552
    %v1581 = vadd.f32 %v1532, %v1556
    %v1582 = vadd.f32 %v1533, %v1560
    %v1583 = vadd.f32 %v1534, %v1564
    %v1584 = vadd.f32 %v1535, %v1568
    %vm1585 = vcmp.gt.f32.partialorder %v1577, 0.0
    %vm1586 = vcmp.gt.f32.partialorder %v1578, 0.0
    %vm1587 = vcmp.gt.f32.partialorder %v1579, 0.0
    %vm1588 = vcmp.gt.f32.partialorder %v1580, 0.0
    %vm1589 = vcmp.gt.f32.partialorder %v1581, 0.0
    %vm1590 = vcmp.gt.f32.partialorder %v1582, 0.0
    %vm1591 = vcmp.gt.f32.partialorder %v1583, 0.0
    %vm1592 = vcmp.gt.f32.partialorder %v1584, 0.0
    %v1593 = vmul.f32 %v1577, 0.2
    %v1594 = vmul.f32 %v1578, 0.2
    %v1595 = vmul.f32 %v1579, 0.2
    %v1596 = vmul.f32 %v1580, 0.2
    %v1597 = vmul.f32 %v1581, 0.2
    %v1598 = vmul.f32 %v1582, 0.2
    %v1599 = vmul.f32 %v1583, 0.2
    %v1600 = vmul.f32 %v1584, 0.2
    %v1601 = vsel %vm1585, %v1577, %v1593
    %v1602 = vsel %vm1586, %v1578, %v1594
    %v1603 = vsel %vm1587, %v1579, %v1595
    %v1604 = vsel %vm1588, %v1580, %v1596
    %v1605 = vsel %vm1589, %v1581, %v1597
    %v1606 = vsel %vm1590, %v1582, %v1598
    %v1607 = vsel %vm1591, %v1583, %v1599
    %v1608 = vsel %vm1592, %v1584, %v1600
    %s1609 = smul.u32 4, 128
    %s1610 = smul.u32 %s1609, 7
    %s1611 = sshll.u32 %s1610, 4
    %1612 = dma.done %s162, %s1611
    %v1613 = vld [vmem:[#allocation5] sm:$0xff]
    %v1614 = vld [vmem:[#allocation5 + $0x8] sm:$0xff]
    %v1615 = vld [vmem:[#allocation5 + $0x10] sm:$0xff]
    %v1616 = vld [vmem:[#allocation5 + $0x18] sm:$0xff]
    %v1617 = vld [vmem:[#allocation5 + $0x20] sm:$0xff]
    %v1618 = vld [vmem:[#allocation5 + $0x28] sm:$0xff]
    %v1619 = vld [vmem:[#allocation5 + $0x30] sm:$0xff]
    %v1620 = vld [vmem:[#allocation5 + $0x38] sm:$0xff]
    %v1621 = vld [vmem:[#allocation5 + $0x40] sm:$0xff]
    %v1622 = vld [vmem:[#allocation5 + $0x48] sm:$0xff]
    %v1623 = vld [vmem:[#allocation5 + $0x50] sm:$0xff]
    %v1624 = vld [vmem:[#allocation5 + $0x58] sm:$0xff]
    %v1625 = vld [vmem:[#allocation5 + $0x60] sm:$0xff]
    %v1626 = vld [vmem:[#allocation5 + $0x68] sm:$0xff]
    %v1627 = vld [vmem:[#allocation5 + $0x70] sm:$0xff]
    %v1628 = vld [vmem:[#allocation5 + $0x78] sm:$0xff]
    %v1629 = vld [vmem:[#allocation5 + $0x80] sm:$0xff]
    %v1630 = vld [vmem:[#allocation5 + $0x88] sm:$0xff]
    %v1631 = vld [vmem:[#allocation5 + $0x90] sm:$0xff]
    %v1632 = vld [vmem:[#allocation5 + $0x98] sm:$0xff]
    %v1633 = vld [vmem:[#allocation5 + $0xa0] sm:$0xff]
    %v1634 = vld [vmem:[#allocation5 + $0xa8] sm:$0xff]
    %v1635 = vld [vmem:[#allocation5 + $0xb0] sm:$0xff]
    %v1636 = vld [vmem:[#allocation5 + $0xb8] sm:$0xff]
    %v1637 = vld [vmem:[#allocation5 + $0xc0] sm:$0xff]
    %v1638 = vld [vmem:[#allocation5 + $0xc8] sm:$0xff]
    %v1639 = vld [vmem:[#allocation5 + $0xd0] sm:$0xff]
    %v1640 = vld [vmem:[#allocation5 + $0xd8] sm:$0xff]
    %v1641 = vld [vmem:[#allocation5 + $0xe0] sm:$0xff]
    %v1642 = vld [vmem:[#allocation5 + $0xe8] sm:$0xff]
    %v1643 = vld [vmem:[#allocation5 + $0xf0] sm:$0xff]
    %v1644 = vld [vmem:[#allocation5 + $0xf8] sm:$0xff]
    %v1645 = vld [vmem:[#allocation5 + $0x100] sm:$0xff]
    %v1646 = vld [vmem:[#allocation5 + $0x108] sm:$0xff]
    %v1647 = vld [vmem:[#allocation5 + $0x110] sm:$0xff]
    %v1648 = vld [vmem:[#allocation5 + $0x118] sm:$0xff]
    %v1649 = vld [vmem:[#allocation5 + $0x120] sm:$0xff]
    %v1650 = vld [vmem:[#allocation5 + $0x128] sm:$0xff]
    %v1651 = vld [vmem:[#allocation5 + $0x130] sm:$0xff]
    %v1652 = vld [vmem:[#allocation5 + $0x138] sm:$0xff]
    %v1653 = vld [vmem:[#allocation5 + $0x140] sm:$0xff]
    %v1654 = vld [vmem:[#allocation5 + $0x148] sm:$0xff]
    %v1655 = vld [vmem:[#allocation5 + $0x150] sm:$0xff]
    %v1656 = vld [vmem:[#allocation5 + $0x158] sm:$0xff]
    %v1657 = vld [vmem:[#allocation5 + $0x160] sm:$0xff]
    %v1658 = vld [vmem:[#allocation5 + $0x168] sm:$0xff]
    %v1659 = vld [vmem:[#allocation5 + $0x170] sm:$0xff]
    %v1660 = vld [vmem:[#allocation5 + $0x178] sm:$0xff]
    %v1661 = vld [vmem:[#allocation5 + $0x180] sm:$0xff]
    %v1662 = vld [vmem:[#allocation5 + $0x188] sm:$0xff]
    %v1663 = vld [vmem:[#allocation5 + $0x190] sm:$0xff]
    %v1664 = vld [vmem:[#allocation5 + $0x198] sm:$0xff]
    %v1665 = vld [vmem:[#allocation5 + $0x1a0] sm:$0xff]
    %v1666 = vld [vmem:[#allocation5 + $0x1a8] sm:$0xff]
    %v1667 = vld [vmem:[#allocation5 + $0x1b0] sm:$0xff]
    %v1668 = vld [vmem:[#allocation5 + $0x1b8] sm:$0xff]
    %v1669 = vld [vmem:[#allocation5 + $0x1c0] sm:$0xff]
    %v1670 = vld [vmem:[#allocation5 + $0x1c8] sm:$0xff]
    %v1671 = vld [vmem:[#allocation5 + $0x1d0] sm:$0xff]
    %v1672 = vld [vmem:[#allocation5 + $0x1d8] sm:$0xff]
    %v1673 = vld [vmem:[#allocation5 + $0x1e0] sm:$0xff]
    %v1674 = vld [vmem:[#allocation5 + $0x1e8] sm:$0xff]
    %v1675 = vld [vmem:[#allocation5 + $0x1f0] sm:$0xff]
    %v1676 = vld [vmem:[#allocation5 + $0x1f8] sm:$0xff]
    %v1677 = vld [vmem:[#allocation5 + $0x200] sm:$0xff]
    %v1678 = vld [vmem:[#allocation5 + $0x208] sm:$0xff]
    %v1679 = vld [vmem:[#allocation5 + $0x210] sm:$0xff]
    %v1680 = vld [vmem:[#allocation5 + $0x218] sm:$0xff]
    %v1681 = vld [vmem:[#allocation5 + $0x220] sm:$0xff]
    %v1682 = vld [vmem:[#allocation5 + $0x228] sm:$0xff]
    %v1683 = vld [vmem:[#allocation5 + $0x230] sm:$0xff]
    %v1684 = vld [vmem:[#allocation5 + $0x238] sm:$0xff]
    %v1685 = vld [vmem:[#allocation5 + $0x240] sm:$0xff]
    %v1686 = vld [vmem:[#allocation5 + $0x248] sm:$0xff]
    %v1687 = vld [vmem:[#allocation5 + $0x250] sm:$0xff]
    %v1688 = vld [vmem:[#allocation5 + $0x258] sm:$0xff]
    %v1689 = vld [vmem:[#allocation5 + $0x260] sm:$0xff]
    %v1690 = vld [vmem:[#allocation5 + $0x268] sm:$0xff]
    %v1691 = vld [vmem:[#allocation5 + $0x270] sm:$0xff]
    %v1692 = vld [vmem:[#allocation5 + $0x278] sm:$0xff]
    %v1693 = vld [vmem:[#allocation5 + $0x280] sm:$0xff]
    %v1694 = vld [vmem:[#allocation5 + $0x288] sm:$0xff]
    %v1695 = vld [vmem:[#allocation5 + $0x290] sm:$0xff]
    %v1696 = vld [vmem:[#allocation5 + $0x298] sm:$0xff]
    %v1697 = vld [vmem:[#allocation5 + $0x2a0] sm:$0xff]
    %v1698 = vld [vmem:[#allocation5 + $0x2a8] sm:$0xff]
    %v1699 = vld [vmem:[#allocation5 + $0x2b0] sm:$0xff]
    %v1700 = vld [vmem:[#allocation5 + $0x2b8] sm:$0xff]
    %v1701 = vld [vmem:[#allocation5 + $0x2c0] sm:$0xff]
    %v1702 = vld [vmem:[#allocation5 + $0x2c8] sm:$0xff]
    %v1703 = vld [vmem:[#allocation5 + $0x2d0] sm:$0xff]
    %v1704 = vld [vmem:[#allocation5 + $0x2d8] sm:$0xff]
    %v1705 = vld [vmem:[#allocation5 + $0x2e0] sm:$0xff]
    %v1706 = vld [vmem:[#allocation5 + $0x2e8] sm:$0xff]
    %v1707 = vld [vmem:[#allocation5 + $0x2f0] sm:$0xff]
    %v1708 = vld [vmem:[#allocation5 + $0x2f8] sm:$0xff]
    %v1709 = vld [vmem:[#allocation5 + $0x300] sm:$0xff]
    %v1710 = vld [vmem:[#allocation5 + $0x308] sm:$0xff]
    %v1711 = vld [vmem:[#allocation5 + $0x310] sm:$0xff]
    %v1712 = vld [vmem:[#allocation5 + $0x318] sm:$0xff]
    %v1713 = vld [vmem:[#allocation5 + $0x320] sm:$0xff]
    %v1714 = vld [vmem:[#allocation5 + $0x328] sm:$0xff]
    %v1715 = vld [vmem:[#allocation5 + $0x330] sm:$0xff]
    %v1716 = vld [vmem:[#allocation5 + $0x338] sm:$0xff]
    %v1717 = vld [vmem:[#allocation5 + $0x340] sm:$0xff]
    %v1718 = vld [vmem:[#allocation5 + $0x348] sm:$0xff]
    %v1719 = vld [vmem:[#allocation5 + $0x350] sm:$0xff]
    %v1720 = vld [vmem:[#allocation5 + $0x358] sm:$0xff]
    %v1721 = vld [vmem:[#allocation5 + $0x360] sm:$0xff]
    %v1722 = vld [vmem:[#allocation5 + $0x368] sm:$0xff]
    %v1723 = vld [vmem:[#allocation5 + $0x370] sm:$0xff]
    %v1724 = vld [vmem:[#allocation5 + $0x378] sm:$0xff]
    %v1725 = vld [vmem:[#allocation5 + $0x380] sm:$0xff]
    %v1726 = vld [vmem:[#allocation5 + $0x388] sm:$0xff]
    %v1727 = vld [vmem:[#allocation5 + $0x390] sm:$0xff]
    %v1728 = vld [vmem:[#allocation5 + $0x398] sm:$0xff]
    %v1729 = vld [vmem:[#allocation5 + $0x3a0] sm:$0xff]
    %v1730 = vld [vmem:[#allocation5 + $0x3a8] sm:$0xff]
    %v1731 = vld [vmem:[#allocation5 + $0x3b0] sm:$0xff]
    %v1732 = vld [vmem:[#allocation5 + $0x3b8] sm:$0xff]
    %v1733 = vld [vmem:[#allocation5 + $0x3c0] sm:$0xff]
    %v1734 = vld [vmem:[#allocation5 + $0x3c8] sm:$0xff]
    %v1735 = vld [vmem:[#allocation5 + $0x3d0] sm:$0xff]
    %v1736 = vld [vmem:[#allocation5 + $0x3d8] sm:$0xff]
    %v1737 = vld [vmem:[#allocation5 + $0x3e0] sm:$0xff]
    %v1738 = vld [vmem:[#allocation5 + $0x3e8] sm:$0xff]
    %v1739 = vld [vmem:[#allocation5 + $0x3f0] sm:$0xff]
    %v1740 = vld [vmem:[#allocation5 + $0x3f8] sm:$0xff]
    %v1741 = vld [vmem:[#allocation5 + $0x400] sm:$0xff]
    %v1742 = vld [vmem:[#allocation5 + $0x408] sm:$0xff]
    %v1743 = vld [vmem:[#allocation5 + $0x410] sm:$0xff]
    %v1744 = vld [vmem:[#allocation5 + $0x418] sm:$0xff]
    %v1745 = vld [vmem:[#allocation5 + $0x420] sm:$0xff]
    %v1746 = vld [vmem:[#allocation5 + $0x428] sm:$0xff]
    %v1747 = vld [vmem:[#allocation5 + $0x430] sm:$0xff]
    %v1748 = vld [vmem:[#allocation5 + $0x438] sm:$0xff]
    %v1749 = vld [vmem:[#allocation5 + $0x440] sm:$0xff]
    %v1750 = vld [vmem:[#allocation5 + $0x448] sm:$0xff]
    %v1751 = vld [vmem:[#allocation5 + $0x450] sm:$0xff]
    %v1752 = vld [vmem:[#allocation5 + $0x458] sm:$0xff]
    %v1753 = vld [vmem:[#allocation5 + $0x460] sm:$0xff]
    %v1754 = vld [vmem:[#allocation5 + $0x468] sm:$0xff]
    %v1755 = vld [vmem:[#allocation5 + $0x470] sm:$0xff]
    %v1756 = vld [vmem:[#allocation5 + $0x478] sm:$0xff]
    %v1757 = vld [vmem:[#allocation5 + $0x480] sm:$0xff]
    %v1758 = vld [vmem:[#allocation5 + $0x488] sm:$0xff]
    %v1759 = vld [vmem:[#allocation5 + $0x490] sm:$0xff]
    %v1760 = vld [vmem:[#allocation5 + $0x498] sm:$0xff]
    %v1761 = vld [vmem:[#allocation5 + $0x4a0] sm:$0xff]
    %v1762 = vld [vmem:[#allocation5 + $0x4a8] sm:$0xff]
    %v1763 = vld [vmem:[#allocation5 + $0x4b0] sm:$0xff]
    %v1764 = vld [vmem:[#allocation5 + $0x4b8] sm:$0xff]
    %v1765 = vld [vmem:[#allocation5 + $0x4c0] sm:$0xff]
    %v1766 = vld [vmem:[#allocation5 + $0x4c8] sm:$0xff]
    %v1767 = vld [vmem:[#allocation5 + $0x4d0] sm:$0xff]
    %v1768 = vld [vmem:[#allocation5 + $0x4d8] sm:$0xff]
    %v1769 = vld [vmem:[#allocation5 + $0x4e0] sm:$0xff]
    %v1770 = vld [vmem:[#allocation5 + $0x4e8] sm:$0xff]
    %v1771 = vld [vmem:[#allocation5 + $0x4f0] sm:$0xff]
    %v1772 = vld [vmem:[#allocation5 + $0x4f8] sm:$0xff]
    %v1773 = vld [vmem:[#allocation5 + $0x500] sm:$0xff]
    %v1774 = vld [vmem:[#allocation5 + $0x508] sm:$0xff]
    %v1775 = vld [vmem:[#allocation5 + $0x510] sm:$0xff]
    %v1776 = vld [vmem:[#allocation5 + $0x518] sm:$0xff]
    %v1777 = vld [vmem:[#allocation5 + $0x520] sm:$0xff]
    %v1778 = vld [vmem:[#allocation5 + $0x528] sm:$0xff]
    %v1779 = vld [vmem:[#allocation5 + $0x530] sm:$0xff]
    %v1780 = vld [vmem:[#allocation5 + $0x538] sm:$0xff]
    %v1781 = vld [vmem:[#allocation5 + $0x540] sm:$0xff]
    %v1782 = vld [vmem:[#allocation5 + $0x548] sm:$0xff]
    %v1783 = vld [vmem:[#allocation5 + $0x550] sm:$0xff]
    %v1784 = vld [vmem:[#allocation5 + $0x558] sm:$0xff]
    %v1785 = vld [vmem:[#allocation5 + $0x560] sm:$0xff]
    %v1786 = vld [vmem:[#allocation5 + $0x568] sm:$0xff]
    %v1787 = vld [vmem:[#allocation5 + $0x570] sm:$0xff]
    %v1788 = vld [vmem:[#allocation5 + $0x578] sm:$0xff]
    %v1789 = vld [vmem:[#allocation5 + $0x580] sm:$0xff]
    %v1790 = vld [vmem:[#allocation5 + $0x588] sm:$0xff]
    %v1791 = vld [vmem:[#allocation5 + $0x590] sm:$0xff]
    %v1792 = vld [vmem:[#allocation5 + $0x598] sm:$0xff]
    %v1793 = vld [vmem:[#allocation5 + $0x5a0] sm:$0xff]
    %v1794 = vld [vmem:[#allocation5 + $0x5a8] sm:$0xff]
    %v1795 = vld [vmem:[#allocation5 + $0x5b0] sm:$0xff]
    %v1796 = vld [vmem:[#allocation5 + $0x5b8] sm:$0xff]
    %v1797 = vld [vmem:[#allocation5 + $0x5c0] sm:$0xff]
    %v1798 = vld [vmem:[#allocation5 + $0x5c8] sm:$0xff]
    %v1799 = vld [vmem:[#allocation5 + $0x5d0] sm:$0xff]
    %v1800 = vld [vmem:[#allocation5 + $0x5d8] sm:$0xff]
    %v1801 = vld [vmem:[#allocation5 + $0x5e0] sm:$0xff]
    %v1802 = vld [vmem:[#allocation5 + $0x5e8] sm:$0xff]
    %v1803 = vld [vmem:[#allocation5 + $0x5f0] sm:$0xff]
    %v1804 = vld [vmem:[#allocation5 + $0x5f8] sm:$0xff]
    %v1805 = vld [vmem:[#allocation5 + $0x600] sm:$0xff]
    %v1806 = vld [vmem:[#allocation5 + $0x608] sm:$0xff]
    %v1807 = vld [vmem:[#allocation5 + $0x610] sm:$0xff]
    %v1808 = vld [vmem:[#allocation5 + $0x618] sm:$0xff]
    %v1809 = vld [vmem:[#allocation5 + $0x620] sm:$0xff]
    %v1810 = vld [vmem:[#allocation5 + $0x628] sm:$0xff]
    %v1811 = vld [vmem:[#allocation5 + $0x630] sm:$0xff]
    %v1812 = vld [vmem:[#allocation5 + $0x638] sm:$0xff]
    %v1813 = vld [vmem:[#allocation5 + $0x640] sm:$0xff]
    %v1814 = vld [vmem:[#allocation5 + $0x648] sm:$0xff]
    %v1815 = vld [vmem:[#allocation5 + $0x650] sm:$0xff]
    %v1816 = vld [vmem:[#allocation5 + $0x658] sm:$0xff]
    %v1817 = vld [vmem:[#allocation5 + $0x660] sm:$0xff]
    %v1818 = vld [vmem:[#allocation5 + $0x668] sm:$0xff]
    %v1819 = vld [vmem:[#allocation5 + $0x670] sm:$0xff]
    %v1820 = vld [vmem:[#allocation5 + $0x678] sm:$0xff]
    %v1821 = vld [vmem:[#allocation5 + $0x680] sm:$0xff]
    %v1822 = vld [vmem:[#allocation5 + $0x688] sm:$0xff]
    %v1823 = vld [vmem:[#allocation5 + $0x690] sm:$0xff]
    %v1824 = vld [vmem:[#allocation5 + $0x698] sm:$0xff]
    %v1825 = vld [vmem:[#allocation5 + $0x6a0] sm:$0xff]
    %v1826 = vld [vmem:[#allocation5 + $0x6a8] sm:$0xff]
    %v1827 = vld [vmem:[#allocation5 + $0x6b0] sm:$0xff]
    %v1828 = vld [vmem:[#allocation5 + $0x6b8] sm:$0xff]
    %v1829 = vld [vmem:[#allocation5 + $0x6c0] sm:$0xff]
    %v1830 = vld [vmem:[#allocation5 + $0x6c8] sm:$0xff]
    %v1831 = vld [vmem:[#allocation5 + $0x6d0] sm:$0xff]
    %v1832 = vld [vmem:[#allocation5 + $0x6d8] sm:$0xff]
    %v1833 = vld [vmem:[#allocation5 + $0x6e0] sm:$0xff]
    %v1834 = vld [vmem:[#allocation5 + $0x6e8] sm:$0xff]
    %v1835 = vld [vmem:[#allocation5 + $0x6f0] sm:$0xff]
    %v1836 = vld [vmem:[#allocation5 + $0x6f8] sm:$0xff]
    %v1837 = vld [vmem:[#allocation5 + $0x700] sm:$0xff]
    %v1838 = vld [vmem:[#allocation5 + $0x708] sm:$0xff]
    %v1839 = vld [vmem:[#allocation5 + $0x710] sm:$0xff]
    %v1840 = vld [vmem:[#allocation5 + $0x718] sm:$0xff]
    %v1841 = vld [vmem:[#allocation5 + $0x720] sm:$0xff]
    %v1842 = vld [vmem:[#allocation5 + $0x728] sm:$0xff]
    %v1843 = vld [vmem:[#allocation5 + $0x730] sm:$0xff]
    %v1844 = vld [vmem:[#allocation5 + $0x738] sm:$0xff]
    %v1845 = vld [vmem:[#allocation5 + $0x740] sm:$0xff]
    %v1846 = vld [vmem:[#allocation5 + $0x748] sm:$0xff]
    %v1847 = vld [vmem:[#allocation5 + $0x750] sm:$0xff]
    %v1848 = vld [vmem:[#allocation5 + $0x758] sm:$0xff]
    %v1849 = vld [vmem:[#allocation5 + $0x760] sm:$0xff]
    %v1850 = vld [vmem:[#allocation5 + $0x768] sm:$0xff]
    %v1851 = vld [vmem:[#allocation5 + $0x770] sm:$0xff]
    %v1852 = vld [vmem:[#allocation5 + $0x778] sm:$0xff]
    %v1853 = vld [vmem:[#allocation5 + $0x780] sm:$0xff]
    %v1854 = vld [vmem:[#allocation5 + $0x788] sm:$0xff]
    %v1855 = vld [vmem:[#allocation5 + $0x790] sm:$0xff]
    %v1856 = vld [vmem:[#allocation5 + $0x798] sm:$0xff]
    %v1857 = vld [vmem:[#allocation5 + $0x7a0] sm:$0xff]
    %v1858 = vld [vmem:[#allocation5 + $0x7a8] sm:$0xff]
    %v1859 = vld [vmem:[#allocation5 + $0x7b0] sm:$0xff]
    %v1860 = vld [vmem:[#allocation5 + $0x7b8] sm:$0xff]
    %v1861 = vld [vmem:[#allocation5 + $0x7c0] sm:$0xff]
    %v1862 = vld [vmem:[#allocation5 + $0x7c8] sm:$0xff]
    %v1863 = vld [vmem:[#allocation5 + $0x7d0] sm:$0xff]
    %v1864 = vld [vmem:[#allocation5 + $0x7d8] sm:$0xff]
    %v1865 = vld [vmem:[#allocation5 + $0x7e0] sm:$0xff]
    %v1866 = vld [vmem:[#allocation5 + $0x7e8] sm:$0xff]
    %v1867 = vld [vmem:[#allocation5 + $0x7f0] sm:$0xff]
    %v1868 = vld [vmem:[#allocation5 + $0x7f8] sm:$0xff]
    %v1869 = vld [vmem:[#allocation5 + $0x800] sm:$0xff]
    %v1870 = vld [vmem:[#allocation5 + $0x808] sm:$0xff]
    %v1871 = vld [vmem:[#allocation5 + $0x810] sm:$0xff]
    %v1872 = vld [vmem:[#allocation5 + $0x818] sm:$0xff]
    %v1873 = vld [vmem:[#allocation5 + $0x820] sm:$0xff]
    %v1874 = vld [vmem:[#allocation5 + $0x828] sm:$0xff]
    %v1875 = vld [vmem:[#allocation5 + $0x830] sm:$0xff]
    %v1876 = vld [vmem:[#allocation5 + $0x838] sm:$0xff]
    %v1877 = vld [vmem:[#allocation5 + $0x840] sm:$0xff]
    %v1878 = vld [vmem:[#allocation5 + $0x848] sm:$0xff]
    %v1879 = vld [vmem:[#allocation5 + $0x850] sm:$0xff]
    %v1880 = vld [vmem:[#allocation5 + $0x858] sm:$0xff]
    %v1881 = vld [vmem:[#allocation5 + $0x860] sm:$0xff]
    %v1882 = vld [vmem:[#allocation5 + $0x868] sm:$0xff]
    %v1883 = vld [vmem:[#allocation5 + $0x870] sm:$0xff]
    %v1884 = vld [vmem:[#allocation5 + $0x878] sm:$0xff]
    %v1885 = vld [vmem:[#allocation5 + $0x880] sm:$0xff]
    %v1886 = vld [vmem:[#allocation5 + $0x888] sm:$0xff]
    %v1887 = vld [vmem:[#allocation5 + $0x890] sm:$0xff]
    %v1888 = vld [vmem:[#allocation5 + $0x898] sm:$0xff]
    %v1889 = vld [vmem:[#allocation5 + $0x8a0] sm:$0xff]
    %v1890 = vld [vmem:[#allocation5 + $0x8a8] sm:$0xff]
    %v1891 = vld [vmem:[#allocation5 + $0x8b0] sm:$0xff]
    %v1892 = vld [vmem:[#allocation5 + $0x8b8] sm:$0xff]
    %v1893 = vld [vmem:[#allocation5 + $0x8c0] sm:$0xff]
    %v1894 = vld [vmem:[#allocation5 + $0x8c8] sm:$0xff]
    %v1895 = vld [vmem:[#allocation5 + $0x8d0] sm:$0xff]
    %v1896 = vld [vmem:[#allocation5 + $0x8d8] sm:$0xff]
    %v1897 = vld [vmem:[#allocation5 + $0x8e0] sm:$0xff]
    %v1898 = vld [vmem:[#allocation5 + $0x8e8] sm:$0xff]
    %v1899 = vld [vmem:[#allocation5 + $0x8f0] sm:$0xff]
    %v1900 = vld [vmem:[#allocation5 + $0x8f8] sm:$0xff]
    %v1901 = vld [vmem:[#allocation5 + $0x900] sm:$0xff]
    %v1902 = vld [vmem:[#allocation5 + $0x908] sm:$0xff]
    %v1903 = vld [vmem:[#allocation5 + $0x910] sm:$0xff]
    %v1904 = vld [vmem:[#allocation5 + $0x918] sm:$0xff]
    %v1905 = vld [vmem:[#allocation5 + $0x920] sm:$0xff]
    %v1906 = vld [vmem:[#allocation5 + $0x928] sm:$0xff]
    %v1907 = vld [vmem:[#allocation5 + $0x930] sm:$0xff]
    %v1908 = vld [vmem:[#allocation5 + $0x938] sm:$0xff]
    %v1909 = vld [vmem:[#allocation5 + $0x940] sm:$0xff]
    %v1910 = vld [vmem:[#allocation5 + $0x948] sm:$0xff]
    %v1911 = vld [vmem:[#allocation5 + $0x950] sm:$0xff]
    %v1912 = vld [vmem:[#allocation5 + $0x958] sm:$0xff]
    %v1913 = vld [vmem:[#allocation5 + $0x960] sm:$0xff]
    %v1914 = vld [vmem:[#allocation5 + $0x968] sm:$0xff]
    %v1915 = vld [vmem:[#allocation5 + $0x970] sm:$0xff]
    %v1916 = vld [vmem:[#allocation5 + $0x978] sm:$0xff]
    %v1917 = vld [vmem:[#allocation5 + $0x980] sm:$0xff]
    %v1918 = vld [vmem:[#allocation5 + $0x988] sm:$0xff]
    %v1919 = vld [vmem:[#allocation5 + $0x990] sm:$0xff]
    %v1920 = vld [vmem:[#allocation5 + $0x998] sm:$0xff]
    %v1921 = vld [vmem:[#allocation5 + $0x9a0] sm:$0xff]
    %v1922 = vld [vmem:[#allocation5 + $0x9a8] sm:$0xff]
    %v1923 = vld [vmem:[#allocation5 + $0x9b0] sm:$0xff]
    %v1924 = vld [vmem:[#allocation5 + $0x9b8] sm:$0xff]
    %v1925 = vld [vmem:[#allocation5 + $0x9c0] sm:$0xff]
    %v1926 = vld [vmem:[#allocation5 + $0x9c8] sm:$0xff]
    %v1927 = vld [vmem:[#allocation5 + $0x9d0] sm:$0xff]
    %v1928 = vld [vmem:[#allocation5 + $0x9d8] sm:$0xff]
    %v1929 = vld [vmem:[#allocation5 + $0x9e0] sm:$0xff]
    %v1930 = vld [vmem:[#allocation5 + $0x9e8] sm:$0xff]
    %v1931 = vld [vmem:[#allocation5 + $0x9f0] sm:$0xff]
    %v1932 = vld [vmem:[#allocation5 + $0x9f8] sm:$0xff]
    %v1933 = vld [vmem:[#allocation5 + $0xa00] sm:$0xff]
    %v1934 = vld [vmem:[#allocation5 + $0xa08] sm:$0xff]
    %v1935 = vld [vmem:[#allocation5 + $0xa10] sm:$0xff]
    %v1936 = vld [vmem:[#allocation5 + $0xa18] sm:$0xff]
    %v1937 = vld [vmem:[#allocation5 + $0xa20] sm:$0xff]
    %v1938 = vld [vmem:[#allocation5 + $0xa28] sm:$0xff]
    %v1939 = vld [vmem:[#allocation5 + $0xa30] sm:$0xff]
    %v1940 = vld [vmem:[#allocation5 + $0xa38] sm:$0xff]
    %v1941 = vld [vmem:[#allocation5 + $0xa40] sm:$0xff]
    %v1942 = vld [vmem:[#allocation5 + $0xa48] sm:$0xff]
    %v1943 = vld [vmem:[#allocation5 + $0xa50] sm:$0xff]
    %v1944 = vld [vmem:[#allocation5 + $0xa58] sm:$0xff]
    %v1945 = vld [vmem:[#allocation5 + $0xa60] sm:$0xff]
    %v1946 = vld [vmem:[#allocation5 + $0xa68] sm:$0xff]
    %v1947 = vld [vmem:[#allocation5 + $0xa70] sm:$0xff]
    %v1948 = vld [vmem:[#allocation5 + $0xa78] sm:$0xff]
    %v1949 = vld [vmem:[#allocation5 + $0xa80] sm:$0xff]
    %v1950 = vld [vmem:[#allocation5 + $0xa88] sm:$0xff]
    %v1951 = vld [vmem:[#allocation5 + $0xa90] sm:$0xff]
    %v1952 = vld [vmem:[#allocation5 + $0xa98] sm:$0xff]
    %v1953 = vld [vmem:[#allocation5 + $0xaa0] sm:$0xff]
    %v1954 = vld [vmem:[#allocation5 + $0xaa8] sm:$0xff]
    %v1955 = vld [vmem:[#allocation5 + $0xab0] sm:$0xff]
    %v1956 = vld [vmem:[#allocation5 + $0xab8] sm:$0xff]
    %v1957 = vld [vmem:[#allocation5 + $0xac0] sm:$0xff]
    %v1958 = vld [vmem:[#allocation5 + $0xac8] sm:$0xff]
    %v1959 = vld [vmem:[#allocation5 + $0xad0] sm:$0xff]
    %v1960 = vld [vmem:[#allocation5 + $0xad8] sm:$0xff]
    %v1961 = vld [vmem:[#allocation5 + $0xae0] sm:$0xff]
    %v1962 = vld [vmem:[#allocation5 + $0xae8] sm:$0xff]
    %v1963 = vld [vmem:[#allocation5 + $0xaf0] sm:$0xff]
    %v1964 = vld [vmem:[#allocation5 + $0xaf8] sm:$0xff]
    %v1965 = vld [vmem:[#allocation5 + $0xb00] sm:$0xff]
    %v1966 = vld [vmem:[#allocation5 + $0xb08] sm:$0xff]
    %v1967 = vld [vmem:[#allocation5 + $0xb10] sm:$0xff]
    %v1968 = vld [vmem:[#allocation5 + $0xb18] sm:$0xff]
    %v1969 = vld [vmem:[#allocation5 + $0xb20] sm:$0xff]
    %v1970 = vld [vmem:[#allocation5 + $0xb28] sm:$0xff]
    %v1971 = vld [vmem:[#allocation5 + $0xb30] sm:$0xff]
    %v1972 = vld [vmem:[#allocation5 + $0xb38] sm:$0xff]
    %v1973 = vld [vmem:[#allocation5 + $0xb40] sm:$0xff]
    %v1974 = vld [vmem:[#allocation5 + $0xb48] sm:$0xff]
    %v1975 = vld [vmem:[#allocation5 + $0xb50] sm:$0xff]
    %v1976 = vld [vmem:[#allocation5 + $0xb58] sm:$0xff]
    %v1977 = vld [vmem:[#allocation5 + $0xb60] sm:$0xff]
    %v1978 = vld [vmem:[#allocation5 + $0xb68] sm:$0xff]
    %v1979 = vld [vmem:[#allocation5 + $0xb70] sm:$0xff]
    %v1980 = vld [vmem:[#allocation5 + $0xb78] sm:$0xff]
    %v1981 = vld [vmem:[#allocation5 + $0xb80] sm:$0xff]
    %v1982 = vld [vmem:[#allocation5 + $0xb88] sm:$0xff]
    %v1983 = vld [vmem:[#allocation5 + $0xb90] sm:$0xff]
    %v1984 = vld [vmem:[#allocation5 + $0xb98] sm:$0xff]
    %v1985 = vld [vmem:[#allocation5 + $0xba0] sm:$0xff]
    %v1986 = vld [vmem:[#allocation5 + $0xba8] sm:$0xff]
    %v1987 = vld [vmem:[#allocation5 + $0xbb0] sm:$0xff]
    %v1988 = vld [vmem:[#allocation5 + $0xbb8] sm:$0xff]
    %v1989 = vld [vmem:[#allocation5 + $0xbc0] sm:$0xff]
    %v1990 = vld [vmem:[#allocation5 + $0xbc8] sm:$0xff]
    %v1991 = vld [vmem:[#allocation5 + $0xbd0] sm:$0xff]
    %v1992 = vld [vmem:[#allocation5 + $0xbd8] sm:$0xff]
    %v1993 = vld [vmem:[#allocation5 + $0xbe0] sm:$0xff]
    %v1994 = vld [vmem:[#allocation5 + $0xbe8] sm:$0xff]
    %v1995 = vld [vmem:[#allocation5 + $0xbf0] sm:$0xff]
    %v1996 = vld [vmem:[#allocation5 + $0xbf8] sm:$0xff]
    %v1997 = vld [vmem:[#allocation5 + $0xc00] sm:$0xff]
    %v1998 = vld [vmem:[#allocation5 + $0xc08] sm:$0xff]
    %v1999 = vld [vmem:[#allocation5 + $0xc10] sm:$0xff]
    %v2000 = vld [vmem:[#allocation5 + $0xc18] sm:$0xff]
    %v2001 = vld [vmem:[#allocation5 + $0xc20] sm:$0xff]
    %v2002 = vld [vmem:[#allocation5 + $0xc28] sm:$0xff]
    %v2003 = vld [vmem:[#allocation5 + $0xc30] sm:$0xff]
    %v2004 = vld [vmem:[#allocation5 + $0xc38] sm:$0xff]
    %v2005 = vld [vmem:[#allocation5 + $0xc40] sm:$0xff]
    %v2006 = vld [vmem:[#allocation5 + $0xc48] sm:$0xff]
    %v2007 = vld [vmem:[#allocation5 + $0xc50] sm:$0xff]
    %v2008 = vld [vmem:[#allocation5 + $0xc58] sm:$0xff]
    %v2009 = vld [vmem:[#allocation5 + $0xc60] sm:$0xff]
    %v2010 = vld [vmem:[#allocation5 + $0xc68] sm:$0xff]
    %v2011 = vld [vmem:[#allocation5 + $0xc70] sm:$0xff]
    %v2012 = vld [vmem:[#allocation5 + $0xc78] sm:$0xff]
    %v2013 = vld [vmem:[#allocation5 + $0xc80] sm:$0xff]
    %v2014 = vld [vmem:[#allocation5 + $0xc88] sm:$0xff]
    %v2015 = vld [vmem:[#allocation5 + $0xc90] sm:$0xff]
    %v2016 = vld [vmem:[#allocation5 + $0xc98] sm:$0xff]
    %v2017 = vld [vmem:[#allocation5 + $0xca0] sm:$0xff]
    %v2018 = vld [vmem:[#allocation5 + $0xca8] sm:$0xff]
    %v2019 = vld [vmem:[#allocation5 + $0xcb0] sm:$0xff]
    %v2020 = vld [vmem:[#allocation5 + $0xcb8] sm:$0xff]
    %v2021 = vld [vmem:[#allocation5 + $0xcc0] sm:$0xff]
    %v2022 = vld [vmem:[#allocation5 + $0xcc8] sm:$0xff]
    %v2023 = vld [vmem:[#allocation5 + $0xcd0] sm:$0xff]
    %v2024 = vld [vmem:[#allocation5 + $0xcd8] sm:$0xff]
    %v2025 = vld [vmem:[#allocation5 + $0xce0] sm:$0xff]
    %v2026 = vld [vmem:[#allocation5 + $0xce8] sm:$0xff]
    %v2027 = vld [vmem:[#allocation5 + $0xcf0] sm:$0xff]
    %v2028 = vld [vmem:[#allocation5 + $0xcf8] sm:$0xff]
    %v2029 = vld [vmem:[#allocation5 + $0xd00] sm:$0xff]
    %v2030 = vld [vmem:[#allocation5 + $0xd08] sm:$0xff]
    %v2031 = vld [vmem:[#allocation5 + $0xd10] sm:$0xff]
    %v2032 = vld [vmem:[#allocation5 + $0xd18] sm:$0xff]
    %v2033 = vld [vmem:[#allocation5 + $0xd20] sm:$0xff]
    %v2034 = vld [vmem:[#allocation5 + $0xd28] sm:$0xff]
    %v2035 = vld [vmem:[#allocation5 + $0xd30] sm:$0xff]
    %v2036 = vld [vmem:[#allocation5 + $0xd38] sm:$0xff]
    %v2037 = vld [vmem:[#allocation5 + $0xd40] sm:$0xff]
    %v2038 = vld [vmem:[#allocation5 + $0xd48] sm:$0xff]
    %v2039 = vld [vmem:[#allocation5 + $0xd50] sm:$0xff]
    %v2040 = vld [vmem:[#allocation5 + $0xd58] sm:$0xff]
    %v2041 = vld [vmem:[#allocation5 + $0xd60] sm:$0xff]
    %v2042 = vld [vmem:[#allocation5 + $0xd68] sm:$0xff]
    %v2043 = vld [vmem:[#allocation5 + $0xd70] sm:$0xff]
    %v2044 = vld [vmem:[#allocation5 + $0xd78] sm:$0xff]
    %v2045 = vld [vmem:[#allocation5 + $0xd80] sm:$0xff]
    %v2046 = vld [vmem:[#allocation5 + $0xd88] sm:$0xff]
    %v2047 = vld [vmem:[#allocation5 + $0xd90] sm:$0xff]
    %v2048 = vld [vmem:[#allocation5 + $0xd98] sm:$0xff]
    %v2049 = vld [vmem:[#allocation5 + $0xda0] sm:$0xff]
    %v2050 = vld [vmem:[#allocation5 + $0xda8] sm:$0xff]
    %v2051 = vld [vmem:[#allocation5 + $0xdb0] sm:$0xff]
    %v2052 = vld [vmem:[#allocation5 + $0xdb8] sm:$0xff]
    %v2053 = vld [vmem:[#allocation5 + $0xdc0] sm:$0xff]
    %v2054 = vld [vmem:[#allocation5 + $0xdc8] sm:$0xff]
    %v2055 = vld [vmem:[#allocation5 + $0xdd0] sm:$0xff]
    %v2056 = vld [vmem:[#allocation5 + $0xdd8] sm:$0xff]
    %v2057 = vld [vmem:[#allocation5 + $0xde0] sm:$0xff]
    %v2058 = vld [vmem:[#allocation5 + $0xde8] sm:$0xff]
    %v2059 = vld [vmem:[#allocation5 + $0xdf0] sm:$0xff]
    %v2060 = vld [vmem:[#allocation5 + $0xdf8] sm:$0xff]
    %v2061 = vpack.c.bf16 %v1601, %v1601
    %v2062 = vpack.c.bf16 %v1602, %v1602
    %v2063 = vpack.c.bf16 %v1603, %v1603
    %v2064 = vpack.c.bf16 %v1604, %v1604
    %v2065 = vpack.c.bf16 %v1605, %v1605
    %v2066 = vpack.c.bf16 %v1606, %v1606
    %v2067 = vpack.c.bf16 %v1607, %v1607
    %v2068 = vpack.c.bf16 %v1608, %v1608
    %v2070 = vlaneseq
    %v2071 = vshrl.u32 %v2070, 7
    %v2072 = vsub.s32 0, %v2071
    %v2073 = vrot.slane %v204, %v2072
    %v2074 = vlaneseq
    %v2075 = vshrl.u32 %v2074, 7
    %v2076 = vsub.s32 1, %v2075
    %v2077 = vrot.slane %v204, %v2076
    %v2078 = vlaneseq
    %v2079 = vshrl.u32 %v2078, 7
    %v2080 = vsub.s32 2, %v2079
    %v2081 = vrot.slane %v204, %v2080
    %v2082 = vlaneseq
    %v2083 = vshrl.u32 %v2082, 7
    %v2084 = vsub.s32 3, %v2083
    %v2085 = vrot.slane %v204, %v2084
    %v2086 = vlaneseq
    %v2087 = vshrl.u32 %v2086, 7
    %v2088 = vsub.s32 4, %v2087
    %v2089 = vrot.slane %v204, %v2088
    %v2090 = vlaneseq
    %v2091 = vshrl.u32 %v2090, 7
    %v2092 = vsub.s32 5, %v2091
    %v2093 = vrot.slane %v204, %v2092
    %v2094 = vlaneseq
    %v2095 = vshrl.u32 %v2094, 7
    %v2096 = vsub.s32 6, %v2095
    %v2097 = vrot.slane %v204, %v2096
    %2105 = vmatprep.subr.bf16.mxu0 %v1614
    %2106 = vmatpush1.bf16.msra.mxu0 %v1613
    %2107 = vmatprep.subr.bf16.mxu0 %v1621
    %2108 = vmatpush1.bf16.msra.mxu0 %v1620
    %2109 = vmatprep.subr.bf16.mxu0 %v1628
    %2110 = vmatpush1.bf16.msra.mxu0 %v1627
    %2111 = vmatprep.subr.bf16.mxu0 %v1635
    %2112 = vmatpush1.bf16.msra.mxu0 %v1634
    %2113 = vmatprep.subr.bf16.mxu0 %v1642
    %2114 = vmatpush1.bf16.msra.mxu0 %v1641
    %2115 = vmatprep.subr.bf16.mxu0 %v1649
    %2116 = vmatpush1.bf16.msra.mxu0 %v1648
    %2117 = vmatprep.subr.bf16.mxu0 %v1656
    %2118 = vmatpush1.bf16.msra.mxu0 %v1655
    %2119 = vmatprep.subr.bf16.mxu0 %v1663
    %2120 = vmatpush1.bf16.msra.mxu0 %v1662
    %2121 = vmatprep.subr.bf16.mxu0 %v1670
    %2122 = vmatpush1.bf16.msra.mxu0 %v1669
    %2123 = vmatprep.subr.bf16.mxu0 %v1677
    %2124 = vmatpush1.bf16.msra.mxu0 %v1676
    %2125 = vmatprep.subr.bf16.mxu0 %v1684
    %2126 = vmatpush1.bf16.msra.mxu0 %v1683
    %2127 = vmatprep.subr.bf16.mxu0 %v1691
    %2128 = vmatpush1.bf16.msra.mxu0 %v1690
    %2129 = vmatprep.subr.bf16.mxu0 %v1698
    %2130 = vmatpush1.bf16.msra.mxu0 %v1697
    %2131 = vmatprep.subr.bf16.mxu0 %v1705
    %2132 = vmatpush1.bf16.msra.mxu0 %v1704
    %2133 = vmatprep.subr.bf16.mxu0 %v1712
    %2134 = vmatpush1.bf16.msra.mxu0 %v1711
    %2135 = vmatprep.subr.bf16.mxu0 %v1719
    %2136 = vmatpush1.bf16.msra.mxu0 %v1718
    %2137 = vmatprep.mubr.bf16.mxu0 %v2062
    %2138 = vmatmul.mubr.bf16.gmra.mrb[0].mxu0 %v2061
    %v2139 = vpop.f32.mrb[0].mxu0
    %v2140 = vadd.f32 %v2073, %v2139
    %v2141 = vpop.f32.mrb[0].mxu0
    %v2142 = vadd.f32 %v2077, %v2141
    %v2143 = vpop.f32.mrb[0].mxu0
    %v2144 = vpop.f32.mrb[0].mxu0
    %2145 = vdwg.mxu0
    %2146 = vmatprep.subr.bf16.mxu0 %v1726
    %2147 = vmatpush1.bf16.msra.mxu0 %v1725
    %2148 = vmatprep.subr.bf16.mxu0 %v1733
    %2149 = vmatpush1.bf16.msra.mxu0 %v1732
    %2150 = vmatprep.subr.bf16.mxu0 %v1740
    %2151 = vmatpush1.bf16.msra.mxu0 %v1739
    %2152 = vmatprep.subr.bf16.mxu0 %v1747
    %2153 = vmatpush1.bf16.msra.mxu0 %v1746
    %2154 = vmatprep.subr.bf16.mxu0 %v1754
    %2155 = vmatpush1.bf16.msra.mxu0 %v1753
    %2156 = vmatprep.subr.bf16.mxu0 %v1761
    %2157 = vmatpush1.bf16.msra.mxu0 %v1760
    %2158 = vmatprep.subr.bf16.mxu0 %v1768
    %2159 = vmatpush1.bf16.msra.mxu0 %v1767
    %2160 = vmatprep.subr.bf16.mxu0 %v1775
    %2161 = vmatpush1.bf16.msra.mxu0 %v1774
    %2162 = vmatprep.subr.bf16.mxu0 %v1782
    %2163 = vmatpush1.bf16.msra.mxu0 %v1781
    %2164 = vmatprep.subr.bf16.mxu0 %v1789
    %2165 = vmatpush1.bf16.msra.mxu0 %v1788
    %2166 = vmatprep.subr.bf16.mxu0 %v1796
    %2167 = vmatpush1.bf16.msra.mxu0 %v1795
    %2168 = vmatprep.subr.bf16.mxu0 %v1803
    %2169 = vmatpush1.bf16.msra.mxu0 %v1802
    %2170 = vmatprep.subr.bf16.mxu0 %v1810
    %2171 = vmatpush1.bf16.msra.mxu0 %v1809
    %2172 = vmatprep.subr.bf16.mxu0 %v1817
    %2173 = vmatpush1.bf16.msra.mxu0 %v1816
    %2174 = vmatprep.subr.bf16.mxu0 %v1824
    %2175 = vmatpush1.bf16.msra.mxu0 %v1823
    %2176 = vmatprep.subr.bf16.mxu0 %v1831
    %2177 = vmatpush1.bf16.msra.mxu0 %v1830
    %2178 = vmatprep.mubr.bf16.mxu0 %v2064
    %2179 = vmatmul.mubr.bf16.gmra.mrb[0].mxu0 %v2063
    %v2180 = vpop.f32.mrb[0].mxu0
    %v2181 = vadd.f32 %v2140, %v2180
    %v2182 = vpop.f32.mrb[0].mxu0
    %v2183 = vadd.f32 %v2142, %v2182
    %v2184 = vpop.f32.mrb[0].mxu0
    %v2185 = vpop.f32.mrb[0].mxu0
    %2186 = vdwg.mxu0
    %2187 = vmatprep.subr.bf16.mxu0 %v1838
    %2188 = vmatpush1.bf16.msra.mxu0 %v1837
    %2189 = vmatprep.subr.bf16.mxu0 %v1845
    %2190 = vmatpush1.bf16.msra.mxu0 %v1844
    %2191 = vmatprep.subr.bf16.mxu0 %v1852
    %2192 = vmatpush1.bf16.msra.mxu0 %v1851
    %2193 = vmatprep.subr.bf16.mxu0 %v1859
    %2194 = vmatpush1.bf16.msra.mxu0 %v1858
    %2195 = vmatprep.subr.bf16.mxu0 %v1866
    %2196 = vmatpush1.bf16.msra.mxu0 %v1865
    %2197 = vmatprep.subr.bf16.mxu0 %v1873
    %2198 = vmatpush1.bf16.msra.mxu0 %v1872
    %2199 = vmatprep.subr.bf16.mxu0 %v1880
    %2200 = vmatpush1.bf16.msra.mxu0 %v1879
    %2201 = vmatprep.subr.bf16.mxu0 %v1887
    %2202 = vmatpush1.bf16.msra.mxu0 %v1886
    %2203 = vmatprep.subr.bf16.mxu0 %v1894
    %2204 = vmatpush1.bf16.msra.mxu0 %v1893
    %2205 = vmatprep.subr.bf16.mxu0 %v1901
    %2206 = vmatpush1.bf16.msra.mxu0 %v1900
    %2207 = vmatprep.subr.bf16.mxu0 %v1908
    %2208 = vmatpush1.bf16.msra.mxu0 %v1907
    %2209 = vmatprep.subr.bf16.mxu0 %v1915
    %2210 = vmatpush1.bf16.msra.mxu0 %v1914
    %2211 = vmatprep.subr.bf16.mxu0 %v1922
    %2212 = vmatpush1.bf16.msra.mxu0 %v1921
    %2213 = vmatprep.subr.bf16.mxu0 %v1929
    %2214 = vmatpush1.bf16.msra.mxu0 %v1928
    %2215 = vmatprep.subr.bf16.mxu0 %v1936
    %2216 = vmatpush1.bf16.msra.mxu0 %v1935
    %2217 = vmatprep.subr.bf16.mxu0 %v1943
    %2218 = vmatpush1.bf16.msra.mxu0 %v1942
    %2219 = vmatprep.mubr.bf16.mxu0 %v2066
    %2220 = vmatmul.mubr.bf16.gmra.mrb[0].mxu0 %v2065
    %v2221 = vpop.f32.mrb[0].mxu0
    %v2222 = vadd.f32 %v2181, %v2221
    %v2223 = vpop.f32.mrb[0].mxu0
    %v2224 = vadd.f32 %v2183, %v2223
    %v2225 = vpop.f32.mrb[0].mxu0
    %v2226 = vpop.f32.mrb[0].mxu0
    %2227 = vdwg.mxu0
    %2228 = vmatprep.subr.bf16.mxu0 %v1950
    %2229 = vmatpush1.bf16.msra.mxu0 %v1949
    %2230 = vmatprep.subr.bf16.mxu0 %v1957
    %2231 = vmatpush1.bf16.msra.mxu0 %v1956
    %2232 = vmatprep.subr.bf16.mxu0 %v1964
    %2233 = vmatpush1.bf16.msra.mxu0 %v1963
    %2234 = vmatprep.subr.bf16.mxu0 %v1971
    %2235 = vmatpush1.bf16.msra.mxu0 %v1970
    %2236 = vmatprep.subr.bf16.mxu0 %v1978
    %2237 = vmatpush1.bf16.msra.mxu0 %v1977
    %2238 = vmatprep.subr.bf16.mxu0 %v1985
    %2239 = vmatpush1.bf16.msra.mxu0 %v1984
    %2240 = vmatprep.subr.bf16.mxu0 %v1992
    %2241 = vmatpush1.bf16.msra.mxu0 %v1991
    %2242 = vmatprep.subr.bf16.mxu0 %v1999
    %2243 = vmatpush1.bf16.msra.mxu0 %v1998
    %2244 = vmatprep.subr.bf16.mxu0 %v2006
    %2245 = vmatpush1.bf16.msra.mxu0 %v2005
    %2246 = vmatprep.subr.bf16.mxu0 %v2013
    %2247 = vmatpush1.bf16.msra.mxu0 %v2012
    %2248 = vmatprep.subr.bf16.mxu0 %v2020
    %2249 = vmatpush1.bf16.msra.mxu0 %v2019
    %2250 = vmatprep.subr.bf16.mxu0 %v2027
    %2251 = vmatpush1.bf16.msra.mxu0 %v2026
    %2252 = vmatprep.subr.bf16.mxu0 %v2034
    %2253 = vmatpush1.bf16.msra.mxu0 %v2033
    %2254 = vmatprep.subr.bf16.mxu0 %v2041
    %2255 = vmatpush1.bf16.msra.mxu0 %v2040
    %2256 = vmatprep.subr.bf16.mxu0 %v2048
    %2257 = vmatpush1.bf16.msra.mxu0 %v2047
    %2258 = vmatprep.subr.bf16.mxu0 %v2055
    %2259 = vmatpush1.bf16.msra.mxu0 %v2054
    %2260 = vmatprep.mubr.bf16.mxu0 %v2068
    %2261 = vmatmul.mubr.bf16.gmra.mrb[0].mxu0 %v2067
    %v2262 = vpop.f32.mrb[0].mxu0
    %v2263 = vadd.f32 %v2222, %v2262
    %v2264 = vpop.f32.mrb[0].mxu0
    %v2265 = vadd.f32 %v2224, %v2264
    %v2266 = vpop.f32.mrb[0].mxu0
    %v2267 = vpop.f32.mrb[0].mxu0
    %2268 = vdwg.mxu0
    %2269 = vmatprep.subr.bf16.mxu0 %v1616
    %2270 = vmatpush1.bf16.msra.mxu0 %v1615
    %2271 = vmatprep.subr.bf16.mxu0 %v1623
    %2272 = vmatpush1.bf16.msra.mxu0 %v1622
    %2273 = vmatprep.subr.bf16.mxu0 %v1630
    %2274 = vmatpush1.bf16.msra.mxu0 %v1629
    %2275 = vmatprep.subr.bf16.mxu0 %v1637
    %2276 = vmatpush1.bf16.msra.mxu0 %v1636
    %2277 = vmatprep.subr.bf16.mxu0 %v1644
    %2278 = vmatpush1.bf16.msra.mxu0 %v1643
    %2279 = vmatprep.subr.bf16.mxu0 %v1651
    %2280 = vmatpush1.bf16.msra.mxu0 %v1650
    %2281 = vmatprep.subr.bf16.mxu0 %v1658
    %2282 = vmatpush1.bf16.msra.mxu0 %v1657
    %2283 = vmatprep.subr.bf16.mxu0 %v1665
    %2284 = vmatpush1.bf16.msra.mxu0 %v1664
    %2285 = vmatprep.subr.bf16.mxu0 %v1672
    %2286 = vmatpush1.bf16.msra.mxu0 %v1671
    %2287 = vmatprep.subr.bf16.mxu0 %v1679
    %2288 = vmatpush1.bf16.msra.mxu0 %v1678
    %2289 = vmatprep.subr.bf16.mxu0 %v1686
    %2290 = vmatpush1.bf16.msra.mxu0 %v1685
    %2291 = vmatprep.subr.bf16.mxu0 %v1693
    %2292 = vmatpush1.bf16.msra.mxu0 %v1692
    %2293 = vmatprep.subr.bf16.mxu0 %v1700
    %2294 = vmatpush1.bf16.msra.mxu0 %v1699
    %2295 = vmatprep.subr.bf16.mxu0 %v1707
    %2296 = vmatpush1.bf16.msra.mxu0 %v1706
    %2297 = vmatprep.subr.bf16.mxu0 %v1714
    %2298 = vmatpush1.bf16.msra.mxu0 %v1713
    %2299 = vmatprep.subr.bf16.mxu0 %v1721
    %2300 = vmatpush1.bf16.msra.mxu0 %v1720
    %2301 = vmatprep.mubr.bf16.mxu0 %v2062
    %2302 = vmatmul.mubr.bf16.gmra.mrb[0].mxu0 %v2061
    %v2303 = vpop.f32.mrb[0].mxu0
    %v2304 = vadd.f32 %v2081, %v2303
    %v2305 = vpop.f32.mrb[0].mxu0
    %v2306 = vadd.f32 %v2085, %v2305
    %v2307 = vpop.f32.mrb[0].mxu0
    %v2308 = vpop.f32.mrb[0].mxu0
    %2309 = vdwg.mxu0
    %2310 = vmatprep.subr.bf16.mxu0 %v1728
    %2311 = vmatpush1.bf16.msra.mxu0 %v1727
    %2312 = vmatprep.subr.bf16.mxu0 %v1735
    %2313 = vmatpush1.bf16.msra.mxu0 %v1734
    %2314 = vmatprep.subr.bf16.mxu0 %v1742
    %2315 = vmatpush1.bf16.msra.mxu0 %v1741
    %2316 = vmatprep.subr.bf16.mxu0 %v1749
    %2317 = vmatpush1.bf16.msra.mxu0 %v1748
    %2318 = vmatprep.subr.bf16.mxu0 %v1756
    %2319 = vmatpush1.bf16.msra.mxu0 %v1755
    %2320 = vmatprep.subr.bf16.mxu0 %v1763
    %2321 = vmatpush1.bf16.msra.mxu0 %v1762
    %2322 = vmatprep.subr.bf16.mxu0 %v1770
    %2323 = vmatpush1.bf16.msra.mxu0 %v1769
    %2324 = vmatprep.subr.bf16.mxu0 %v1777
    %2325 = vmatpush1.bf16.msra.mxu0 %v1776
    %2326 = vmatprep.subr.bf16.mxu0 %v1784
    %2327 = vmatpush1.bf16.msra.mxu0 %v1783
    %2328 = vmatprep.subr.bf16.mxu0 %v1791
    %2329 = vmatpush1.bf16.msra.mxu0 %v1790
    %2330 = vmatprep.subr.bf16.mxu0 %v1798
    %2331 = vmatpush1.bf16.msra.mxu0 %v1797
    %2332 = vmatprep.subr.bf16.mxu0 %v1805
    %2333 = vmatpush1.bf16.msra.mxu0 %v1804
    %2334 = vmatprep.subr.bf16.mxu0 %v1812
    %2335 = vmatpush1.bf16.msra.mxu0 %v1811
    %2336 = vmatprep.subr.bf16.mxu0 %v1819
    %2337 = vmatpush1.bf16.msra.mxu0 %v1818
    %2338 = vmatprep.subr.bf16.mxu0 %v1826
    %2339 = vmatpush1.bf16.msra.mxu0 %v1825
    %2340 = vmatprep.subr.bf16.mxu0 %v1833
    %2341 = vmatpush1.bf16.msra.mxu0 %v1832
    %2342 = vmatprep.mubr.bf16.mxu0 %v2064
    %2343 = vmatmul.mubr.bf16.gmra.mrb[0].mxu0 %v2063
    %v2344 = vpop.f32.mrb[0].mxu0
    %v2345 = vadd.f32 %v2304, %v2344
    %v2346 = vpop.f32.mrb[0].mxu0
    %v2347 = vadd.f32 %v2306, %v2346
    %v2348 = vpop.f32.mrb[0].mxu0
    %v2349 = vpop.f32.mrb[0].mxu0
    %2350 = vdwg.mxu0
    %2351 = vmatprep.subr.bf16.mxu0 %v1840
    %2352 = vmatpush1.bf16.msra.mxu0 %v1839
    %2353 = vmatprep.subr.bf16.mxu0 %v1847
    %2354 = vmatpush1.bf16.msra.mxu0 %v1846
    %2355 = vmatprep.subr.bf16.mxu0 %v1854
    %2356 = vmatpush1.bf16.msra.mxu0 %v1853
    %2357 = vmatprep.subr.bf16.mxu0 %v1861
    %2358 = vmatpush1.bf16.msra.mxu0 %v1860
    %2359 = vmatprep.subr.bf16.mxu0 %v1868
    %2360 = vmatpush1.bf16.msra.mxu0 %v1867
    %2361 = vmatprep.subr.bf16.mxu0 %v1875
    %2362 = vmatpush1.bf16.msra.mxu0 %v1874
    %2363 = vmatprep.subr.bf16.mxu0 %v1882
    %2364 = vmatpush1.bf16.msra.mxu0 %v1881
    %2365 = vmatprep.subr.bf16.mxu0 %v1889
    %2366 = vmatpush1.bf16.msra.mxu0 %v1888
    %2367 = vmatprep.subr.bf16.mxu0 %v1896
    %2368 = vmatpush1.bf16.msra.mxu0 %v1895
    %2369 = vmatprep.subr.bf16.mxu0 %v1903
    %2370 = vmatpush1.bf16.msra.mxu0 %v1902
    %2371 = vmatprep.subr.bf16.mxu0 %v1910
    %2372 = vmatpush1.bf16.msra.mxu0 %v1909
    %2373 = vmatprep.subr.bf16.mxu0 %v1917
    %2374 = vmatpush1.bf16.msra.mxu0 %v1916
    %2375 = vmatprep.subr.bf16.mxu0 %v1924
    %2376 = vmatpush1.bf16.msra.mxu0 %v1923
    %2377 = vmatprep.subr.bf16.mxu0 %v1931
    %2378 = vmatpush1.bf16.msra.mxu0 %v1930
    %2379 = vmatprep.subr.bf16.mxu0 %v1938
    %2380 = vmatpush1.bf16.msra.mxu0 %v1937
    %2381 = vmatprep.subr.bf16.mxu0 %v1945
    %2382 = vmatpush1.bf16.msra.mxu0 %v1944
    %2383 = vmatprep.mubr.bf16.mxu0 %v2066
    %2384 = vmatmul.mubr.bf16.gmra.mrb[0].mxu0 %v2065
    %v2385 = vpop.f32.mrb[0].mxu0
    %v2386 = vadd.f32 %v2345, %v2385
    %v2387 = vpop.f32.mrb[0].mxu0
    %v2388 = vadd.f32 %v2347, %v2387
    %v2389 = vpop.f32.mrb[0].mxu0
    %v2390 = vpop.f32.mrb[0].mxu0
    %2391 = vdwg.mxu0
    %2392 = vmatprep.subr.bf16.mxu0 %v1952
    %2393 = vmatpush1.bf16.msra.mxu0 %v1951
    %2394 = vmatprep.subr.bf16.mxu0 %v1959
    %2395 = vmatpush1.bf16.msra.mxu0 %v1958
    %2396 = vmatprep.subr.bf16.mxu0 %v1966
    %2397 = vmatpush1.bf16.msra.mxu0 %v1965
    %2398 = vmatprep.subr.bf16.mxu0 %v1973
    %2399 = vmatpush1.bf16.msra.mxu0 %v1972
    %2400 = vmatprep.subr.bf16.mxu0 %v1980
    %2401 = vmatpush1.bf16.msra.mxu0 %v1979
    %2402 = vmatprep.subr.bf16.mxu0 %v1987
    %2403 = vmatpush1.bf16.msra.mxu0 %v1986
    %2404 = vmatprep.subr.bf16.mxu0 %v1994
    %2405 = vmatpush1.bf16.msra.mxu0 %v1993
    %2406 = vmatprep.subr.bf16.mxu0 %v2001
    %2407 = vmatpush1.bf16.msra.mxu0 %v2000
    %2408 = vmatprep.subr.bf16.mxu0 %v2008
    %2409 = vmatpush1.bf16.msra.mxu0 %v2007
    %2410 = vmatprep.subr.bf16.mxu0 %v2015
    %2411 = vmatpush1.bf16.msra.mxu0 %v2014
    %2412 = vmatprep.subr.bf16.mxu0 %v2022
    %2413 = vmatpush1.bf16.msra.mxu0 %v2021
    %2414 = vmatprep.subr.bf16.mxu0 %v2029
    %2415 = vmatpush1.bf16.msra.mxu0 %v2028
    %2416 = vmatprep.subr.bf16.mxu0 %v2036
    %2417 = vmatpush1.bf16.msra.mxu0 %v2035
    %2418 = vmatprep.subr.bf16.mxu0 %v2043
    %2419 = vmatpush1.bf16.msra.mxu0 %v2042
    %2420 = vmatprep.subr.bf16.mxu0 %v2050
    %2421 = vmatpush1.bf16.msra.mxu0 %v2049
    %2422 = vmatprep.subr.bf16.mxu0 %v2057
    %2423 = vmatpush1.bf16.msra.mxu0 %v2056
    %2424 = vmatprep.mubr.bf16.mxu0 %v2068
    %2425 = vmatmul.mubr.bf16.gmra.mrb[0].mxu0 %v2067
    %v2426 = vpop.f32.mrb[0].mxu0
    %v2427 = vadd.f32 %v2386, %v2426
    %v2428 = vpop.f32.mrb[0].mxu0
    %v2429 = vadd.f32 %v2388, %v2428
    %v2430 = vpop.f32.mrb[0].mxu0
    %v2431 = vpop.f32.mrb[0].mxu0
    %2432 = vdwg.mxu0
    %2433 = vmatprep.subr.bf16.mxu0 %v1618
    %2434 = vmatpush1.bf16.msra.mxu0 %v1617
    %2435 = vmatprep.subr.bf16.mxu0 %v1625
    %2436 = vmatpush1.bf16.msra.mxu0 %v1624
    %2437 = vmatprep.subr.bf16.mxu0 %v1632
    %2438 = vmatpush1.bf16.msra.mxu0 %v1631
    %2439 = vmatprep.subr.bf16.mxu0 %v1639
    %2440 = vmatpush1.bf16.msra.mxu0 %v1638
    %2441 = vmatprep.subr.bf16.mxu0 %v1646
    %2442 = vmatpush1.bf16.msra.mxu0 %v1645
    %2443 = vmatprep.subr.bf16.mxu0 %v1653
    %2444 = vmatpush1.bf16.msra.mxu0 %v1652
    %2445 = vmatprep.subr.bf16.mxu0 %v1660
    %2446 = vmatpush1.bf16.msra.mxu0 %v1659
    %2447 = vmatprep.subr.bf16.mxu0 %v1667
    %2448 = vmatpush1.bf16.msra.mxu0 %v1666
    %2449 = vmatprep.subr.bf16.mxu0 %v1674
    %2450 = vmatpush1.bf16.msra.mxu0 %v1673
    %2451 = vmatprep.subr.bf16.mxu0 %v1681
    %2452 = vmatpush1.bf16.msra.mxu0 %v1680
    %2453 = vmatprep.subr.bf16.mxu0 %v1688
    %2454 = vmatpush1.bf16.msra.mxu0 %v1687
    %2455 = vmatprep.subr.bf16.mxu0 %v1695
    %2456 = vmatpush1.bf16.msra.mxu0 %v1694
    %2457 = vmatprep.subr.bf16.mxu0 %v1702
    %2458 = vmatpush1.bf16.msra.mxu0 %v1701
    %2459 = vmatprep.subr.bf16.mxu0 %v1709
    %2460 = vmatpush1.bf16.msra.mxu0 %v1708
    %2461 = vmatprep.subr.bf16.mxu0 %v1716
    %2462 = vmatpush1.bf16.msra.mxu0 %v1715
    %2463 = vmatprep.subr.bf16.mxu0 %v1723
    %2464 = vmatpush1.bf16.msra.mxu0 %v1722
    %2465 = vmatprep.mubr.bf16.mxu0 %v2062
    %2466 = vmatmul.mubr.bf16.gmra.mrb[0].mxu0 %v2061
    %v2467 = vpop.f32.mrb[0].mxu0
    %v2468 = vadd.f32 %v2089, %v2467
    %v2469 = vpop.f32.mrb[0].mxu0
    %v2470 = vadd.f32 %v2093, %v2469
    %v2471 = vpop.f32.mrb[0].mxu0
    %v2472 = vpop.f32.mrb[0].mxu0
    %2473 = vdwg.mxu0
    %2474 = vmatprep.subr.bf16.mxu0 %v1730
    %2475 = vmatpush1.bf16.msra.mxu0 %v1729
    %2476 = vmatprep.subr.bf16.mxu0 %v1737
    %2477 = vmatpush1.bf16.msra.mxu0 %v1736
    %2478 = vmatprep.subr.bf16.mxu0 %v1744
    %2479 = vmatpush1.bf16.msra.mxu0 %v1743
    %2480 = vmatprep.subr.bf16.mxu0 %v1751
    %2481 = vmatpush1.bf16.msra.mxu0 %v1750
    %2482 = vmatprep.subr.bf16.mxu0 %v1758
    %2483 = vmatpush1.bf16.msra.mxu0 %v1757
    %2484 = vmatprep.subr.bf16.mxu0 %v1765
    %2485 = vmatpush1.bf16.msra.mxu0 %v1764
    %2486 = vmatprep.subr.bf16.mxu0 %v1772
    %2487 = vmatpush1.bf16.msra.mxu0 %v1771
    %2488 = vmatprep.subr.bf16.mxu0 %v1779
    %2489 = vmatpush1.bf16.msra.mxu0 %v1778
    %2490 = vmatprep.subr.bf16.mxu0 %v1786
    %2491 = vmatpush1.bf16.msra.mxu0 %v1785
    %2492 = vmatprep.subr.bf16.mxu0 %v1793
    %2493 = vmatpush1.bf16.msra.mxu0 %v1792
    %2494 = vmatprep.subr.bf16.mxu0 %v1800
    %2495 = vmatpush1.bf16.msra.mxu0 %v1799
    %2496 = vmatprep.subr.bf16.mxu0 %v1807
    %2497 = vmatpush1.bf16.msra.mxu0 %v1806
    %2498 = vmatprep.subr.bf16.mxu0 %v1814
    %2499 = vmatpush1.bf16.msra.mxu0 %v1813
    %2500 = vmatprep.subr.bf16.mxu0 %v1821
    %2501 = vmatpush1.bf16.msra.mxu0 %v1820
    %2502 = vmatprep.subr.bf16.mxu0 %v1828
    %2503 = vmatpush1.bf16.msra.mxu0 %v1827
    %2504 = vmatprep.subr.bf16.mxu0 %v1835
    %2505 = vmatpush1.bf16.msra.mxu0 %v1834
    %2506 = vmatprep.mubr.bf16.mxu0 %v2064
    %2507 = vmatmul.mubr.bf16.gmra.mrb[0].mxu0 %v2063
    %v2508 = vpop.f32.mrb[0].mxu0
    %v2509 = vadd.f32 %v2468, %v2508
    %v2510 = vpop.f32.mrb[0].mxu0
    %v2511 = vadd.f32 %v2470, %v2510
    %v2512 = vpop.f32.mrb[0].mxu0
    %v2513 = vpop.f32.mrb[0].mxu0
    %2514 = vdwg.mxu0
    %2515 = vmatprep.subr.bf16.mxu0 %v1842
    %2516 = vmatpush1.bf16.msra.mxu0 %v1841
    %2517 = vmatprep.subr.bf16.mxu0 %v1849
    %2518 = vmatpush1.bf16.msra.mxu0 %v1848
    %2519 = vmatprep.subr.bf16.mxu0 %v1856
    %2520 = vmatpush1.bf16.msra.mxu0 %v1855
    %2521 = vmatprep.subr.bf16.mxu0 %v1863
    %2522 = vmatpush1.bf16.msra.mxu0 %v1862
    %2523 = vmatprep.subr.bf16.mxu0 %v1870
    %2524 = vmatpush1.bf16.msra.mxu0 %v1869
    %2525 = vmatprep.subr.bf16.mxu0 %v1877
    %2526 = vmatpush1.bf16.msra.mxu0 %v1876
    %2527 = vmatprep.subr.bf16.mxu0 %v1884
    %2528 = vmatpush1.bf16.msra.mxu0 %v1883
    %2529 = vmatprep.subr.bf16.mxu0 %v1891
    %2530 = vmatpush1.bf16.msra.mxu0 %v1890
    %2531 = vmatprep.subr.bf16.mxu0 %v1898
    %2532 = vmatpush1.bf16.msra.mxu0 %v1897
    %2533 = vmatprep.subr.bf16.mxu0 %v1905
    %2534 = vmatpush1.bf16.msra.mxu0 %v1904
    %2535 = vmatprep.subr.bf16.mxu0 %v1912
    %2536 = vmatpush1.bf16.msra.mxu0 %v1911
    %2537 = vmatprep.subr.bf16.mxu0 %v1919
    %2538 = vmatpush1.bf16.msra.mxu0 %v1918
    %2539 = vmatprep.subr.bf16.mxu0 %v1926
    %2540 = vmatpush1.bf16.msra.mxu0 %v1925
    %2541 = vmatprep.subr.bf16.mxu0 %v1933
    %2542 = vmatpush1.bf16.msra.mxu0 %v1932
    %2543 = vmatprep.subr.bf16.mxu0 %v1940
    %2544 = vmatpush1.bf16.msra.mxu0 %v1939
    %2545 = vmatprep.subr.bf16.mxu0 %v1947
    %2546 = vmatpush1.bf16.msra.mxu0 %v1946
    %2547 = vmatprep.mubr.bf16.mxu0 %v2066
    %2548 = vmatmul.mubr.bf16.gmra.mrb[0].mxu0 %v2065
    %v2549 = vpop.f32.mrb[0].mxu0
    %v2550 = vadd.f32 %v2509, %v2549
    %v2551 = vpop.f32.mrb[0].mxu0
    %v2552 = vadd.f32 %v2511, %v2551
    %v2553 = vpop.f32.mrb[0].mxu0
    %v2554 = vpop.f32.mrb[0].mxu0
    %2555 = vdwg.mxu0
    %2556 = vmatprep.subr.bf16.mxu0 %v1954
    %2557 = vmatpush1.bf16.msra.mxu0 %v1953
    %2558 = vmatprep.subr.bf16.mxu0 %v1961
    %2559 = vmatpush1.bf16.msra.mxu0 %v1960
    %2560 = vmatprep.subr.bf16.mxu0 %v1968
    %2561 = vmatpush1.bf16.msra.mxu0 %v1967
    %2562 = vmatprep.subr.bf16.mxu0 %v1975
    %2563 = vmatpush1.bf16.msra.mxu0 %v1974
    %2564 = vmatprep.subr.bf16.mxu0 %v1982
    %2565 = vmatpush1.bf16.msra.mxu0 %v1981
    %2566 = vmatprep.subr.bf16.mxu0 %v1989
    %2567 = vmatpush1.bf16.msra.mxu0 %v1988
    %2568 = vmatprep.subr.bf16.mxu0 %v1996
    %2569 = vmatpush1.bf16.msra.mxu0 %v1995
    %2570 = vmatprep.subr.bf16.mxu0 %v2003
    %2571 = vmatpush1.bf16.msra.mxu0 %v2002
    %2572 = vmatprep.subr.bf16.mxu0 %v2010
    %2573 = vmatpush1.bf16.msra.mxu0 %v2009
    %2574 = vmatprep.subr.bf16.mxu0 %v2017
    %2575 = vmatpush1.bf16.msra.mxu0 %v2016
    %2576 = vmatprep.subr.bf16.mxu0 %v2024
    %2577 = vmatpush1.bf16.msra.mxu0 %v2023
    %2578 = vmatprep.subr.bf16.mxu0 %v2031
    %2579 = vmatpush1.bf16.msra.mxu0 %v2030
    %2580 = vmatprep.subr.bf16.mxu0 %v2038
    %2581 = vmatpush1.bf16.msra.mxu0 %v2037
    %2582 = vmatprep.subr.bf16.mxu0 %v2045
    %2583 = vmatpush1.bf16.msra.mxu0 %v2044
    %2584 = vmatprep.subr.bf16.mxu0 %v2052
    %2585 = vmatpush1.bf16.msra.mxu0 %v2051
    %2586 = vmatprep.subr.bf16.mxu0 %v2059
    %2587 = vmatpush1.bf16.msra.mxu0 %v2058
    %2588 = vmatprep.mubr.bf16.mxu0 %v2068
    %2589 = vmatmul.mubr.bf16.gmra.mrb[0].mxu0 %v2067
    %v2590 = vpop.f32.mrb[0].mxu0
    %v2591 = vadd.f32 %v2550, %v2590
    %v2592 = vpop.f32.mrb[0].mxu0
    %v2593 = vadd.f32 %v2552, %v2592
    %v2594 = vpop.f32.mrb[0].mxu0
    %v2595 = vpop.f32.mrb[0].mxu0
    %2596 = vdwg.mxu0
    %2597 = vmatprep.subr.bf16.mxu0 0
    %2598 = vmatpush1.bf16.msra.mxu0 %v1619
    %2599 = vmatprep.subr.bf16.mxu0 0
    %2600 = vmatpush1.bf16.msra.mxu0 %v1626
    %2601 = vmatprep.subr.bf16.mxu0 0
    %2602 = vmatpush1.bf16.msra.mxu0 %v1633
    %2603 = vmatprep.subr.bf16.mxu0 0
    %2604 = vmatpush1.bf16.msra.mxu0 %v1640
    %2605 = vmatprep.subr.bf16.mxu0 0
    %2606 = vmatpush1.bf16.msra.mxu0 %v1647
    %2607 = vmatprep.subr.bf16.mxu0 0
    %2608 = vmatpush1.bf16.msra.mxu0 %v1654
    %2609 = vmatprep.subr.bf16.mxu0 0
    %2610 = vmatpush1.bf16.msra.mxu0 %v1661
    %2611 = vmatprep.subr.bf16.mxu0 0
    %2612 = vmatpush1.bf16.msra.mxu0 %v1668
    %2613 = vmatprep.subr.bf16.mxu0 0
    %2614 = vmatpush1.bf16.msra.mxu0 %v1675
    %2615 = vmatprep.subr.bf16.mxu0 0
    %2616 = vmatpush1.bf16.msra.mxu0 %v1682
    %2617 = vmatprep.subr.bf16.mxu0 0
    %2618 = vmatpush1.bf16.msra.mxu0 %v1689
    %2619 = vmatprep.subr.bf16.mxu0 0
    %2620 = vmatpush1.bf16.msra.mxu0 %v1696
    %2621 = vmatprep.subr.bf16.mxu0 0
    %2622 = vmatpush1.bf16.msra.mxu0 %v1703
    %2623 = vmatprep.subr.bf16.mxu0 0
    %2624 = vmatpush1.bf16.msra.mxu0 %v1710
    %2625 = vmatprep.subr.bf16.mxu0 0
    %2626 = vmatpush1.bf16.msra.mxu0 %v1717
    %2627 = vmatprep.subr.bf16.mxu0 0
    %2628 = vmatpush1.bf16.msra.mxu0 %v1724
    %2629 = vmatprep.mubr.bf16.mxu0 %v2062
    %2630 = vmatmul.mubr.bf16.gmra.mrb[0].mxu0 %v2061
    %v2631 = vpop.f32.mrb[0].mxu0
    %v2632 = vadd.f32 %v2097, %v2631
    %v2633 = vpop.f32.mrb[0].mxu0
    %v2634 = vpop.f32.mrb[0].mxu0
    %v2635 = vpop.f32.mrb[0].mxu0
    %2636 = vdwg.mxu0
    %2637 = vmatprep.subr.bf16.mxu0 0
    %2638 = vmatpush1.bf16.msra.mxu0 %v1731
    %2639 = vmatprep.subr.bf16.mxu0 0
    %2640 = vmatpush1.bf16.msra.mxu0 %v1738
    %2641 = vmatprep.subr.bf16.mxu0 0
    %2642 = vmatpush1.bf16.msra.mxu0 %v1745
    %2643 = vmatprep.subr.bf16.mxu0 0
    %2644 = vmatpush1.bf16.msra.mxu0 %v1752
    %2645 = vmatprep.subr.bf16.mxu0 0
    %2646 = vmatpush1.bf16.msra.mxu0 %v1759
    %2647 = vmatprep.subr.bf16.mxu0 0
    %2648 = vmatpush1.bf16.msra.mxu0 %v1766
    %2649 = vmatprep.subr.bf16.mxu0 0
    %2650 = vmatpush1.bf16.msra.mxu0 %v1773
    %2651 = vmatprep.subr.bf16.mxu0 0
    %2652 = vmatpush1.bf16.msra.mxu0 %v1780
    %2653 = vmatprep.subr.bf16.mxu0 0
    %2654 = vmatpush1.bf16.msra.mxu0 %v1787
    %2655 = vmatprep.subr.bf16.mxu0 0
    %2656 = vmatpush1.bf16.msra.mxu0 %v1794
    %2657 = vmatprep.subr.bf16.mxu0 0
    %2658 = vmatpush1.bf16.msra.mxu0 %v1801
    %2659 = vmatprep.subr.bf16.mxu0 0
    %2660 = vmatpush1.bf16.msra.mxu0 %v1808
    %2661 = vmatprep.subr.bf16.mxu0 0
    %2662 = vmatpush1.bf16.msra.mxu0 %v1815
    %2663 = vmatprep.subr.bf16.mxu0 0
    %2664 = vmatpush1.bf16.msra.mxu0 %v1822
    %2665 = vmatprep.subr.bf16.mxu0 0
    %2666 = vmatpush1.bf16.msra.mxu0 %v1829
    %2667 = vmatprep.subr.bf16.mxu0 0
    %2668 = vmatpush1.bf16.msra.mxu0 %v1836
    %2669 = vmatprep.mubr.bf16.mxu0 %v2064
    %2670 = vmatmul.mubr.bf16.gmra.mrb[0].mxu0 %v2063
    %v2671 = vpop.f32.mrb[0].mxu0
    %v2672 = vadd.f32 %v2632, %v2671
    %v2673 = vpop.f32.mrb[0].mxu0
    %v2674 = vpop.f32.mrb[0].mxu0
    %v2675 = vpop.f32.mrb[0].mxu0
    %2676 = vdwg.mxu0
    %2677 = vmatprep.subr.bf16.mxu0 0
    %2678 = vmatpush1.bf16.msra.mxu0 %v1843
    %2679 = vmatprep.subr.bf16.mxu0 0
    %2680 = vmatpush1.bf16.msra.mxu0 %v1850
    %2681 = vmatprep.subr.bf16.mxu0 0
    %2682 = vmatpush1.bf16.msra.mxu0 %v1857
    %2683 = vmatprep.subr.bf16.mxu0 0
    %2684 = vmatpush1.bf16.msra.mxu0 %v1864
    %2685 = vmatprep.subr.bf16.mxu0 0
    %2686 = vmatpush1.bf16.msra.mxu0 %v1871
    %2687 = vmatprep.subr.bf16.mxu0 0
    %2688 = vmatpush1.bf16.msra.mxu0 %v1878
    %2689 = vmatprep.subr.bf16.mxu0 0
    %2690 = vmatpush1.bf16.msra.mxu0 %v1885
    %2691 = vmatprep.subr.bf16.mxu0 0
    %2692 = vmatpush1.bf16.msra.mxu0 %v1892
    %2693 = vmatprep.subr.bf16.mxu0 0
    %2694 = vmatpush1.bf16.msra.mxu0 %v1899
    %2695 = vmatprep.subr.bf16.mxu0 0
    %2696 = vmatpush1.bf16.msra.mxu0 %v1906
    %2697 = vmatprep.subr.bf16.mxu0 0
    %2698 = vmatpush1.bf16.msra.mxu0 %v1913
    %2699 = vmatprep.subr.bf16.mxu0 0
    %2700 = vmatpush1.bf16.msra.mxu0 %v1920
    %2701 = vmatprep.subr.bf16.mxu0 0
    %2702 = vmatpush1.bf16.msra.mxu0 %v1927
    %2703 = vmatprep.subr.bf16.mxu0 0
    %2704 = vmatpush1.bf16.msra.mxu0 %v1934
    %2705 = vmatprep.subr.bf16.mxu0 0
    %2706 = vmatpush1.bf16.msra.mxu0 %v1941
    %2707 = vmatprep.subr.bf16.mxu0 0
    %2708 = vmatpush1.bf16.msra.mxu0 %v1948
    %2709 = vmatprep.mubr.bf16.mxu0 %v2066
    %2710 = vmatmul.mubr.bf16.gmra.mrb[0].mxu0 %v2065
    %v2711 = vpop.f32.mrb[0].mxu0
    %v2712 = vadd.f32 %v2672, %v2711
    %v2713 = vpop.f32.mrb[0].mxu0
    %v2714 = vpop.f32.mrb[0].mxu0
    %v2715 = vpop.f32.mrb[0].mxu0
    %2716 = vdwg.mxu0
    %2717 = vmatprep.subr.bf16.mxu0 0
    %2718 = vmatpush1.bf16.msra.mxu0 %v1955
    %2719 = vmatprep.subr.bf16.mxu0 0
    %2720 = vmatpush1.bf16.msra.mxu0 %v1962
    %2721 = vmatprep.subr.bf16.mxu0 0
    %2722 = vmatpush1.bf16.msra.mxu0 %v1969
    %2723 = vmatprep.subr.bf16.mxu0 0
    %2724 = vmatpush1.bf16.msra.mxu0 %v1976
    %2725 = vmatprep.subr.bf16.mxu0 0
    %2726 = vmatpush1.bf16.msra.mxu0 %v1983
    %2727 = vmatprep.subr.bf16.mxu0 0
    %2728 = vmatpush1.bf16.msra.mxu0 %v1990
    %2729 = vmatprep.subr.bf16.mxu0 0
    %2730 = vmatpush1.bf16.msra.mxu0 %v1997
    %2731 = vmatprep.subr.bf16.mxu0 0
    %2732 = vmatpush1.bf16.msra.mxu0 %v2004
    %2733 = vmatprep.subr.bf16.mxu0 0
    %2734 = vmatpush1.bf16.msra.mxu0 %v2011
    %2735 = vmatprep.subr.bf16.mxu0 0
    %2736 = vmatpush1.bf16.msra.mxu0 %v2018
    %2737 = vmatprep.subr.bf16.mxu0 0
    %2738 = vmatpush1.bf16.msra.mxu0 %v2025
    %2739 = vmatprep.subr.bf16.mxu0 0
    %2740 = vmatpush1.bf16.msra.mxu0 %v2032
    %2741 = vmatprep.subr.bf16.mxu0 0
    %2742 = vmatpush1.bf16.msra.mxu0 %v2039
    %2743 = vmatprep.subr.bf16.mxu0 0
    %2744 = vmatpush1.bf16.msra.mxu0 %v2046
    %2745 = vmatprep.subr.bf16.mxu0 0
    %2746 = vmatpush1.bf16.msra.mxu0 %v2053
    %2747 = vmatprep.subr.bf16.mxu0 0
    %2748 = vmatpush1.bf16.msra.mxu0 %v2060
    %2749 = vmatprep.mubr.bf16.mxu0 %v2068
    %2750 = vmatmul.mubr.bf16.gmra.mrb[0].mxu0 %v2067
    %v2751 = vpop.f32.mrb[0].mxu0
    %v2752 = vadd.f32 %v2712, %v2751
    %v2753 = vpop.f32.mrb[0].mxu0
    %v2754 = vpop.f32.mrb[0].mxu0
    %v2755 = vpop.f32.mrb[0].mxu0
    %2756 = vdwg.mxu0
    %v2757 = vtanh.pop %v2263
    %v2758 = vtanh.pop %v2265
    %v2759 = vtanh.pop %v2427
    %v2760 = vtanh.pop %v2429
    %v2761 = vtanh.pop %v2591
    %v2762 = vtanh.pop %v2593
    %v2763 = vtanh.pop %v2752
    %2764 = vst [vmem:[#allocation13] sm:$0xff] %v2757
    %2765 = vst [vmem:[#allocation13 + $0x8] sm:$0xff] %v2758
    %2766 = vst [vmem:[#allocation13 + $0x10] sm:$0xff] %v2759
    %2767 = vst [vmem:[#allocation13 + $0x18] sm:$0xff] %v2760
    %2768 = vst [vmem:[#allocation13 + $0x20] sm:$0xff] %v2761
    %2769 = vst [vmem:[#allocation13 + $0x28] sm:$0xff] %v2762
    %2770 = vst [vmem:[#allocation13 + $0x30] sm:$0xff] %v2763
    // Predicated region
    $region26: #{tpu_custom_call.1} parent=1 // pred_check
      _
    $region27: #{tpu_custom_call.1} parent=1 // pred_check_branch
      %2772 = sbr.rel (0) target = $region29
    $region28: #{tpu_custom_call.1} parent=1 // pred_region
      %s2774 = ssub.s32 896, 896
      %2775 = vsyncadd [#allocation9], %s2774
      %s2777 = sshll.u32 [#allocation13], 4
      %s2778 = int_to_ptr.vmem [resolvable:$true] %s2777
      %2780 = dma.vmem_to_hbm [thread:$0]  %s2778, 896, %s7, [#allocation9]
    $region29: #{tpu_custom_call.1} parent=1 // pred_fallthru
      _
    // Predicated region
    $region30: #{tpu_custom_call.1} parent=1 // pred_check
      _
    $region31: #{tpu_custom_call.1} parent=1 // pred_check_branch
      %2782 = sbr.rel (0) target = $region33
    $region32: #{tpu_custom_call.1} parent=1 // pred_region
      %2783 = dma.done [#allocation9], 896
    $region33: #{tpu_custom_call.1} parent=1 // pred_fallthru
      _
    %2784 = vsyncpa [#allocation8], 1
    %2785 = vsyncpa [#allocation11], 1
    %2786 = vsyncpa [#allocation9], 1
  %2787 = vsyncmov [#allocation6]
  %s2788 = vpop.sfrf %2787
  %p2789 = scmp.eq.s32.totalorder %s2788, 0
  %p2790 = pneg %p2789
  %2792 = shalt.err (%p2790)
  %s2793 = scalar_lea.sflag [#allocation6], 1
  %2794 = vsyncmov %s2793
  %s2795 = vpop.sfrf %2794
  %p2796 = scmp.eq.s32.totalorder %s2795, 0
  %p2797 = pneg %p2796
  %2799 = shalt.err (%p2797)
  %s2800 = scalar_lea.sflag [#allocation6], 2
  %2801 = vsyncmov %s2800
  %s2802 = vpop.sfrf %2801
  %p2803 = scmp.eq.s32.totalorder %s2802, 0
  %p2804 = pneg %p2803
  %2806 = shalt.err (%p2804)
  %s2807 = scalar_lea.sflag [#allocation6], 3
  %2808 = vsyncmov %s2807
  %s2809 = vpop.sfrf %2808
  %p2810 = scmp.eq.s32.totalorder %s2809, 0
  %p2811 = pneg %p2810
  %2813 = shalt.err (%p2811)

</llo_original>
